<compile_context>
chip_gen: v7x
topology: tpu7x:2x2x1
jax: 0.10.0
libtpu: 0.0.40
codegen_flags: <defaults>
</compile_context>

<pallas_src>
import numpy as np

import jax
import jax.numpy as jnp
from jax import lax
from jax.experimental import pallas as pl
from jax.experimental.pallas import tpu as pltpu


# Tap order (dy, dx), row-major over the 3x3 window; must match _flatten_w3x3
# and _edge_masks.
_OFFSETS = tuple((dy, dx) for dy in (-1, 0, 1) for dx in (-1, 0, 1))


def _leaky(v):
    return jnp.where(v > 0, v, 0.2 * v)


def _edge_masks(H, W):
    """(9, H*W) f32; mask[t, p] == 1 iff pixel p shifted by tap t stays in-bounds."""
    ii, jj = np.meshgrid(np.arange(H), np.arange(W), indexing="ij")
    rows = []
    for dy, dx in _OFFSETS:
        valid = ((ii + dy >= 0) & (ii + dy < H) &
                 (jj + dx >= 0) & (jj + dx < W))
        rows.append(valid.reshape(-1))
    return jnp.asarray(np.stack(rows, 0).astype(np.float32))


def _flatten_w3x3(w_hwio):
    """HWIO (3,3,Cin,Cout) -> (Cout, 9*Cin), tap-major, matching _OFFSETS order."""
    kh, kw, cin, cout = w_hwio.shape
    w = w_hwio.reshape(kh * kw, cin, cout)
    return jnp.transpose(w, (2, 0, 1)).reshape(cout, kh * kw * cin)


def _blockdiag(a, b):
    """(m1,n1),(m2,n2) -> (m1+m2, n1+n2) block-diagonal."""
    m1, n1 = a.shape
    m2, n2 = b.shape
    top = jnp.concatenate([a, jnp.zeros((m1, n2), a.dtype)], axis=1)
    bot = jnp.concatenate([jnp.zeros((m2, n1), b.dtype), b], axis=1)
    return jnp.concatenate([top, bot], axis=0)


def dpcg_forward(x0_nchw, x1_nchw, block_params):
    """x0_nchw: (B, nf1, H, W); x1_nchw: (B, nf2, H, W); block_params: list of
    per-DPCB tuples (w1a, b1a, w1b, b1b, w2a, b2a, w2b, b2b), all 3x3 HWIO.
    Returns the two NCHW outputs of DPCG."""
    B, C1, H, W = x0_nchw.shape
    C2 = x1_nchw.shape[1]
    assert C1 == C2, "DanKerEstimator uses nf1 == nf2 inside DPCG"
    HW = H * W
    nb = len(block_params)
    K = 9 * C1 + 9 * C2          # combined im2col depth per fused dot

    # ---- host-side prep (tiny, traced once) ----
    masks = _edge_masks(H, W)                                   # (9, HW)
    wc1_l, bc1_l, wc2_l, bc2_l = [], [], [], []
    for (w1a, b1a, w1b, b1b, w2a, b2a, w2b, b2b) in block_params:
        wc1_l.append(_blockdiag(_flatten_w3x3(w1a), _flatten_w3x3(w2a)))
        wc2_l.append(_blockdiag(_flatten_w3x3(w1b), _flatten_w3x3(w2b)))
        bc1_l.append(jnp.concatenate([b1a.reshape(-1), b2a.reshape(-1)]).reshape(-1, 1))
        bc2_l.append(jnp.concatenate([b1b.reshape(-1), b2b.reshape(-1)]).reshape(-1, 1))
    wc1 = jnp.stack(wc1_l)                                      # (nb, 2*C1, K)
    wc2 = jnp.stack(wc2_l)                                      # (nb, 2*C1, K)
    bc1 = jnp.stack(bc1_l)                                      # (nb, 2*C1, 1)
    bc2 = jnp.stack(bc2_l)                                      # (nb, 2*C1, 1)

    # Lane-dense working layout: channels on sublanes, flat pixels on lanes.
    x0 = x0_nchw.reshape(B, C1, HW)
    x1 = x1_nchw.reshape(B, C2, HW)

    def kernel(masks_ref, x0_ref, x1_ref, wc1_ref, bc1_ref, wc2_ref, bc2_ref,
               o0_ref, o1_ref, patch_ref):
        x0_in = x0_ref[0]                                       # (C1, HW)
        x1_in = x1_ref[0]                                       # (C2, HW)

        # Hoisted once; reused by every conv in every block.
        tap_mask = [masks_ref[pl.ds(t, 1), :] for t in range(9)]

        def fill_patch(x, row_off, cin):
            # im2col for one stream: 9 static XLU lane rotations into scratch.
            for t, (dy, dx) in enumerate(_OFFSETS):
                shift = (-(dy * W + dx)) % HW                   # static, >= 0
                sh = x if shift == 0 else pltpu.roll(x, shift, 1)
                tap = sh if (dy == 0 and dx == 0) else sh * tap_mask[t]
                patch_ref[pl.ds(row_off + t * cin, cin), :] = tap

        y0, y1 = x0_in, x1_in
        for bp in range(nb):                                    # static unroll, nb small
            # stage 1: conv3x3_a on both streams, one block-diagonal MXU dot
            fill_patch(y0, 0, C1)
            fill_patch(y1, 9 * C1, C2)
            h = _leaky(jnp.dot(wc1_ref[bp], patch_ref[...],
                               preferred_element_type=jnp.float32) + bc1_ref[bp])
            h1 = h[:C1, :]
            h2 = h[C1:, :]

            # stage 2: conv3x3_b on both streams, one block-diagonal MXU dot
            fill_patch(h1, 0, C1)
            fill_patch(h2, 9 * C1, C1)
            f = jnp.dot(wc2_ref[bp], patch_ref[...],
                        preferred_element_type=jnp.float32) + bc2_ref[bp]
            f1 = f[:C1, :]
            f2 = f[C1:, :]

            # DPCB residual update
            y0 = y0 + f1 * f2
            y1 = y1 + f2

        # DPCG outer residual; lane-dense full-width stores (HW multiple of 128).
        o0_ref[0] = x0_in + y0
        o1_ref[0] = x1_in + y1

    def full(a):
        nd = a.ndim
        return pl.BlockSpec(a.shape, lambda b: (0,) * nd)

    out0, out1 = pl.pallas_call(
        kernel,
        out_shape=(jax.ShapeDtypeStruct((B, C1, HW), jnp.float32),
                   jax.ShapeDtypeStruct((B, C2, HW), jnp.float32)),
        grid_spec=pltpu.PrefetchScalarGridSpec(
            num_scalar_prefetch=0,
            grid=(B,),
            in_specs=[
                full(masks),
                pl.BlockSpec((1, C1, HW), lambda b: (b, 0, 0)),
                pl.BlockSpec((1, C2, HW), lambda b: (b, 0, 0)),
                full(wc1), full(bc1), full(wc2), full(bc2),
            ],
            out_specs=[
                pl.BlockSpec((1, C1, HW), lambda b: (b, 0, 0)),
                pl.BlockSpec((1, C2, HW), lambda b: (b, 0, 0)),
            ],
            scratch_shapes=[pltpu.VMEM((K, HW), jnp.float32)],
        ),
        compiler_params=pltpu.CompilerParams(
            dimension_semantics=("parallel",),
            vmem_limit_bytes=32 * 1024 * 1024,
        ),
    )(masks, x0, x1, wc1, bc1, wc2, bc2)

    return out0.reshape(B, C1, H, W), out1.reshape(B, C2, H, W)


def ref_forward(x0, x1, block_params):
    """Pure-JAX NCHW reference (lax.conv) for verification of DPCG."""
    def conv3(x, w_hwio, b):
        y = lax.conv_general_dilated(
            x, w_hwio, window_strides=(1, 1), padding=[(1, 1), (1, 1)],
            dimension_numbers=('NCHW', 'HWIO', 'NCHW'))
        return y + b.reshape(1, -1, 1, 1)

    y0, y1 = x0, x1
    for (w1a, b1a, w1b, b1b, w2a, b2a, w2b, b2b) in block_params:
        f1 = conv3(_leaky(conv3(y0, w1a, b1a)), w1b, b1b)
        f2 = conv3(_leaky(conv3(y1, w2a, b2a)), w2b, b2b)
        y0 = y0 + f1 * f2
        y1 = y1 + f2
    return x0 + y0, x1 + y1


if __name__ == "__main__":
    key = jax.random.PRNGKey(0)
    B, nf1, nf2, H, W, nb = 2, 4, 4, 16, 16, 3   # nf1 == nf2, as in DanKerEstimator

    keys = jax.random.split(key, 2 + 8 * nb)
    x0 = jax.random.normal(keys[0], (B, nf1, H, W), jnp.float32)
    x1 = jax.random.normal(keys[1], (B, nf2, H, W), jnp.float32)

    # Deterministic synthetic parameters: 3x3 HWIO weights, per-channel biases.
    block_params = []
    k = 2
    for _ in range(nb):
        w1a = 0.1 * jax.random.normal(keys[k + 0], (3, 3, nf1, nf1), jnp.float32)
        b1a = 0.1 * jax.random.normal(keys[k + 1], (nf1,), jnp.float32)
        w1b = 0.1 * jax.random.normal(keys[k + 2], (3, 3, nf1, nf1), jnp.float32)
        b1b = 0.1 * jax.random.normal(keys[k + 3], (nf1,), jnp.float32)
        w2a = 0.1 * jax.random.normal(keys[k + 4], (3, 3, nf2, nf1), jnp.float32)
        b2a = 0.1 * jax.random.normal(keys[k + 5], (nf1,), jnp.float32)
        w2b = 0.1 * jax.random.normal(keys[k + 6], (3, 3, nf1, nf1), jnp.float32)
        b2b = 0.1 * jax.random.normal(keys[k + 7], (nf1,), jnp.float32)
        block_params.append((w1a, b1a, w1b, b1b, w2a, b2a, w2b, b2b))
        k += 8

    out0, out1 = jax.jit(dpcg_forward)(x0, x1, block_params)
    jax.block_until_ready((out0, out1))

    r0, r1 = ref_forward(x0, x1, block_params)
    assert jnp.allclose(out0, r0, rtol=1e-3, atol=1e-3), "out0 mismatch"
    assert jnp.allclose(out1, r1, rtol=1e-3, atol=1e-3), "out1 mismatch"

    print("KERNEL_OK")
</pallas_src>

<mosaic_0001>
module attributes {stable_mosaic.version = 11 : i64} {
  func.func @kernel(%arg0: i32, %arg1: memref<9x256xf32, #tpu.memory_space<vmem>>, %arg2: memref<1x4x256xf32, #tpu.memory_space<vmem>>, %arg3: memref<1x4x256xf32, #tpu.memory_space<vmem>>, %arg4: memref<3x8x72xf32, #tpu.memory_space<vmem>>, %arg5: memref<3x8x1xf32, #tpu.memory_space<vmem>>, %arg6: memref<3x8x72xf32, #tpu.memory_space<vmem>>, %arg7: memref<3x8x1xf32, #tpu.memory_space<vmem>>, %arg8: memref<1x4x256xf32, #tpu.memory_space<vmem>>, %arg9: memref<1x4x256xf32, #tpu.memory_space<vmem>>, %arg10: memref<72x256xf32, #tpu.memory_space<vmem>>) attributes {dimension_semantics = [#tpu.dimension_semantics<parallel>], iteration_bounds = array<i64: 2>, scalar_prefetch = 0 : i64, scratch_operands = 1 : i64, tpu.core_type = #tpu.core_type<tc>, window_params = [{pipeline_mode = #tpu.pipeline_mode<synchronous>, transform_indices = @transform_0, window_bounds = array<i64: 9, 256>}, {transform_indices = @transform_1, window_bounds = array<i64: 1, 4, 256>}, {transform_indices = @transform_2, window_bounds = array<i64: 1, 4, 256>}, {pipeline_mode = #tpu.pipeline_mode<synchronous>, transform_indices = @transform_3, window_bounds = array<i64: 3, 8, 72>}, {pipeline_mode = #tpu.pipeline_mode<synchronous>, transform_indices = @transform_4, window_bounds = array<i64: 3, 8, 1>}, {pipeline_mode = #tpu.pipeline_mode<synchronous>, transform_indices = @transform_5, window_bounds = array<i64: 3, 8, 72>}, {pipeline_mode = #tpu.pipeline_mode<synchronous>, transform_indices = @transform_6, window_bounds = array<i64: 3, 8, 1>}, {transform_indices = @transform_7, window_bounds = array<i64: 1, 4, 256>}, {transform_indices = @transform_8, window_bounds = array<i64: 1, 4, 256>}]} {
    %c0 = arith.constant 0 : index
    %c0_0 = arith.constant 0 : index
    %c0_1 = arith.constant 0 : index
    %0 = vector.load %arg2[%c0, %c0_0, %c0_1] : memref<1x4x256xf32, #tpu.memory_space<vmem>>, vector<1x4x256xf32>
    %1 = vector.shape_cast %0 : vector<1x4x256xf32> to vector<4x256xf32>
    %c0_2 = arith.constant 0 : index
    %c0_3 = arith.constant 0 : index
    %c0_4 = arith.constant 0 : index
    %2 = vector.load %arg3[%c0_2, %c0_3, %c0_4] : memref<1x4x256xf32, #tpu.memory_space<vmem>>, vector<1x4x256xf32>
    %3 = vector.shape_cast %2 : vector<1x4x256xf32> to vector<4x256xf32>
    %c0_5 = arith.constant 0 : index
    %c0_6 = arith.constant 0 : index
    %4 = vector.load %arg1[%c0_5, %c0_6] : memref<9x256xf32, #tpu.memory_space<vmem>>, vector<1x256xf32>
    %c1 = arith.constant 1 : index
    %c0_7 = arith.constant 0 : index
    %5 = vector.load %arg1[%c1, %c0_7] : memref<9x256xf32, #tpu.memory_space<vmem>>, vector<1x256xf32>
    %c2 = arith.constant 2 : index
    %c0_8 = arith.constant 0 : index
    %6 = vector.load %arg1[%c2, %c0_8] : memref<9x256xf32, #tpu.memory_space<vmem>>, vector<1x256xf32>
    %c3 = arith.constant 3 : index
    %c0_9 = arith.constant 0 : index
    %7 = vector.load %arg1[%c3, %c0_9] : memref<9x256xf32, #tpu.memory_space<vmem>>, vector<1x256xf32>
    %c5 = arith.constant 5 : index
    %c0_10 = arith.constant 0 : index
    %8 = vector.load %arg1[%c5, %c0_10] : memref<9x256xf32, #tpu.memory_space<vmem>>, vector<1x256xf32>
    %c6 = arith.constant 6 : index
    %c0_11 = arith.constant 0 : index
    %9 = vector.load %arg1[%c6, %c0_11] : memref<9x256xf32, #tpu.memory_space<vmem>>, vector<1x256xf32>
    %c7 = arith.constant 7 : index
    %c0_12 = arith.constant 0 : index
    %10 = vector.load %arg1[%c7, %c0_12] : memref<9x256xf32, #tpu.memory_space<vmem>>, vector<1x256xf32>
    %c8 = arith.constant 8 : index
    %c0_13 = arith.constant 0 : index
    %11 = vector.load %arg1[%c8, %c0_13] : memref<9x256xf32, #tpu.memory_space<vmem>>, vector<1x256xf32>
    %c17_i32 = arith.constant 17 : i32
    %12 = tpu.dynamic_rotate %1 by %c17_i32 dim 1 : vector<4x256xf32>, i32 -> vector<4x256xf32>
    %13 = vector.broadcast %4 : vector<1x256xf32> to vector<4x256xf32>
    %14 = arith.mulf %12, %13 : vector<4x256xf32>
    %c0_14 = arith.constant 0 : index
    %c0_15 = arith.constant 0 : index
    %15 = vector.load %arg10[%c0_14, %c0_15] : memref<72x256xf32, #tpu.memory_space<vmem>>, vector<4x256xf32>
    tpu.vector_store %arg10[%c0_14, %c0_15], %14 {strides = array<i32>} : memref<72x256xf32, #tpu.memory_space<vmem>>, vector<4x256xf32>,
    %c16_i32 = arith.constant 16 : i32
    %16 = tpu.dynamic_rotate %1 by %c16_i32 dim 1 : vector<4x256xf32>, i32 -> vector<4x256xf32>
    %17 = vector.broadcast %5 : vector<1x256xf32> to vector<4x256xf32>
    %18 = arith.mulf %16, %17 : vector<4x256xf32>
    %c4 = arith.constant 4 : index
    %c0_16 = arith.constant 0 : index
    %19 = vector.load %arg10[%c4, %c0_16] : memref<72x256xf32, #tpu.memory_space<vmem>>, vector<4x256xf32>
    tpu.vector_store %arg10[%c4, %c0_16], %18 {strides = array<i32>} : memref<72x256xf32, #tpu.memory_space<vmem>>, vector<4x256xf32>,
    %c15_i32 = arith.constant 15 : i32
    %20 = tpu.dynamic_rotate %1 by %c15_i32 dim 1 : vector<4x256xf32>, i32 -> vector<4x256xf32>
    %21 = vector.broadcast %6 : vector<1x256xf32> to vector<4x256xf32>
    %22 = arith.mulf %20, %21 : vector<4x256xf32>
    %c8_17 = arith.constant 8 : index
    %c0_18 = arith.constant 0 : index
    %23 = vector.load %arg10[%c8_17, %c0_18] : memref<72x256xf32, #tpu.memory_space<vmem>>, vector<4x256xf32>
    tpu.vector_store %arg10[%c8_17, %c0_18], %22 {strides = array<i32>} : memref<72x256xf32, #tpu.memory_space<vmem>>, vector<4x256xf32>,
    %c1_i32 = arith.constant 1 : i32
    %24 = tpu.dynamic_rotate %1 by %c1_i32 dim 1 : vector<4x256xf32>, i32 -> vector<4x256xf32>
    %25 = vector.broadcast %7 : vector<1x256xf32> to vector<4x256xf32>
    %26 = arith.mulf %24, %25 : vector<4x256xf32>
    %c12 = arith.constant 12 : index
    %c0_19 = arith.constant 0 : index
    %27 = vector.load %arg10[%c12, %c0_19] : memref<72x256xf32, #tpu.memory_space<vmem>>, vector<4x256xf32>
    tpu.vector_store %arg10[%c12, %c0_19], %26 {strides = array<i32>} : memref<72x256xf32, #tpu.memory_space<vmem>>, vector<4x256xf32>,
    %c16 = arith.constant 16 : index
    %c0_20 = arith.constant 0 : index
    %28 = vector.load %arg10[%c16, %c0_20] : memref<72x256xf32, #tpu.memory_space<vmem>>, vector<4x256xf32>
    tpu.vector_store %arg10[%c16, %c0_20], %1 {strides = array<i32>} : memref<72x256xf32, #tpu.memory_space<vmem>>, vector<4x256xf32>,
    %c255_i32 = arith.constant 255 : i32
    %29 = tpu.dynamic_rotate %1 by %c255_i32 dim 1 : vector<4x256xf32>, i32 -> vector<4x256xf32>
    %30 = vector.broadcast %8 : vector<1x256xf32> to vector<4x256xf32>
    %31 = arith.mulf %29, %30 : vector<4x256xf32>
    %c20 = arith.constant 20 : index
    %c0_21 = arith.constant 0 : index
    %32 = vector.load %arg10[%c20, %c0_21] : memref<72x256xf32, #tpu.memory_space<vmem>>, vector<4x256xf32>
    tpu.vector_store %arg10[%c20, %c0_21], %31 {strides = array<i32>} : memref<72x256xf32, #tpu.memory_space<vmem>>, vector<4x256xf32>,
    %c241_i32 = arith.constant 241 : i32
    %33 = tpu.dynamic_rotate %1 by %c241_i32 dim 1 : vector<4x256xf32>, i32 -> vector<4x256xf32>
    %34 = vector.broadcast %9 : vector<1x256xf32> to vector<4x256xf32>
    %35 = arith.mulf %33, %34 : vector<4x256xf32>
    %c24 = arith.constant 24 : index
    %c0_22 = arith.constant 0 : index
    %36 = vector.load %arg10[%c24, %c0_22] : memref<72x256xf32, #tpu.memory_space<vmem>>, vector<4x256xf32>
    tpu.vector_store %arg10[%c24, %c0_22], %35 {strides = array<i32>} : memref<72x256xf32, #tpu.memory_space<vmem>>, vector<4x256xf32>,
    %c240_i32 = arith.constant 240 : i32
    %37 = tpu.dynamic_rotate %1 by %c240_i32 dim 1 : vector<4x256xf32>, i32 -> vector<4x256xf32>
    %38 = vector.broadcast %10 : vector<1x256xf32> to vector<4x256xf32>
    %39 = arith.mulf %37, %38 : vector<4x256xf32>
    %c28 = arith.constant 28 : index
    %c0_23 = arith.constant 0 : index
    %40 = vector.load %arg10[%c28, %c0_23] : memref<72x256xf32, #tpu.memory_space<vmem>>, vector<4x256xf32>
    tpu.vector_store %arg10[%c28, %c0_23], %39 {strides = array<i32>} : memref<72x256xf32, #tpu.memory_space<vmem>>, vector<4x256xf32>,
    %c239_i32 = arith.constant 239 : i32
    %41 = tpu.dynamic_rotate %1 by %c239_i32 dim 1 : vector<4x256xf32>, i32 -> vector<4x256xf32>
    %42 = vector.broadcast %11 : vector<1x256xf32> to vector<4x256xf32>
    %43 = arith.mulf %41, %42 : vector<4x256xf32>
    %c32 = arith.constant 32 : index
    %c0_24 = arith.constant 0 : index
    %44 = vector.load %arg10[%c32, %c0_24] : memref<72x256xf32, #tpu.memory_space<vmem>>, vector<4x256xf32>
    tpu.vector_store %arg10[%c32, %c0_24], %43 {strides = array<i32>} : memref<72x256xf32, #tpu.memory_space<vmem>>, vector<4x256xf32>,
    %c17_i32_25 = arith.constant 17 : i32
    %45 = tpu.dynamic_rotate %3 by %c17_i32_25 dim 1 : vector<4x256xf32>, i32 -> vector<4x256xf32>
    %46 = vector.broadcast %4 : vector<1x256xf32> to vector<4x256xf32>
    %47 = arith.mulf %45, %46 : vector<4x256xf32>
    %c36 = arith.constant 36 : index
    %c0_26 = arith.constant 0 : index
    %48 = vector.load %arg10[%c36, %c0_26] : memref<72x256xf32, #tpu.memory_space<vmem>>, vector<4x256xf32>
    tpu.vector_store %arg10[%c36, %c0_26], %47 {strides = array<i32>} : memref<72x256xf32, #tpu.memory_space<vmem>>, vector<4x256xf32>,
    %c16_i32_27 = arith.constant 16 : i32
    %49 = tpu.dynamic_rotate %3 by %c16_i32_27 dim 1 : vector<4x256xf32>, i32 -> vector<4x256xf32>
    %50 = vector.broadcast %5 : vector<1x256xf32> to vector<4x256xf32>
    %51 = arith.mulf %49, %50 : vector<4x256xf32>
    %c40 = arith.constant 40 : index
    %c0_28 = arith.constant 0 : index
    %52 = vector.load %arg10[%c40, %c0_28] : memref<72x256xf32, #tpu.memory_space<vmem>>, vector<4x256xf32>
    tpu.vector_store %arg10[%c40, %c0_28], %51 {strides = array<i32>} : memref<72x256xf32, #tpu.memory_space<vmem>>, vector<4x256xf32>,
    %c15_i32_29 = arith.constant 15 : i32
    %53 = tpu.dynamic_rotate %3 by %c15_i32_29 dim 1 : vector<4x256xf32>, i32 -> vector<4x256xf32>
    %54 = vector.broadcast %6 : vector<1x256xf32> to vector<4x256xf32>
    %55 = arith.mulf %53, %54 : vector<4x256xf32>
    %c44 = arith.constant 44 : index
    %c0_30 = arith.constant 0 : index
    %56 = vector.load %arg10[%c44, %c0_30] : memref<72x256xf32, #tpu.memory_space<vmem>>, vector<4x256xf32>
    tpu.vector_store %arg10[%c44, %c0_30], %55 {strides = array<i32>} : memref<72x256xf32, #tpu.memory_space<vmem>>, vector<4x256xf32>,
    %c1_i32_31 = arith.constant 1 : i32
    %57 = tpu.dynamic_rotate %3 by %c1_i32_31 dim 1 : vector<4x256xf32>, i32 -> vector<4x256xf32>
    %58 = vector.broadcast %7 : vector<1x256xf32> to vector<4x256xf32>
    %59 = arith.mulf %57, %58 : vector<4x256xf32>
    %c48 = arith.constant 48 : index
    %c0_32 = arith.constant 0 : index
    %60 = vector.load %arg10[%c48, %c0_32] : memref<72x256xf32, #tpu.memory_space<vmem>>, vector<4x256xf32>
    tpu.vector_store %arg10[%c48, %c0_32], %59 {strides = array<i32>} : memref<72x256xf32, #tpu.memory_space<vmem>>, vector<4x256xf32>,
    %c52 = arith.constant 52 : index
    %c0_33 = arith.constant 0 : index
    %61 = vector.load %arg10[%c52, %c0_33] : memref<72x256xf32, #tpu.memory_space<vmem>>, vector<4x256xf32>
    tpu.vector_store %arg10[%c52, %c0_33], %3 {strides = array<i32>} : memref<72x256xf32, #tpu.memory_space<vmem>>, vector<4x256xf32>,
    %c255_i32_34 = arith.constant 255 : i32
    %62 = tpu.dynamic_rotate %3 by %c255_i32_34 dim 1 : vector<4x256xf32>, i32 -> vector<4x256xf32>
    %63 = vector.broadcast %8 : vector<1x256xf32> to vector<4x256xf32>
    %64 = arith.mulf %62, %63 : vector<4x256xf32>
    %c56 = arith.constant 56 : index
    %c0_35 = arith.constant 0 : index
    %65 = vector.load %arg10[%c56, %c0_35] : memref<72x256xf32, #tpu.memory_space<vmem>>, vector<4x256xf32>
    tpu.vector_store %arg10[%c56, %c0_35], %64 {strides = array<i32>} : memref<72x256xf32, #tpu.memory_space<vmem>>, vector<4x256xf32>,
    %c241_i32_36 = arith.constant 241 : i32
    %66 = tpu.dynamic_rotate %3 by %c241_i32_36 dim 1 : vector<4x256xf32>, i32 -> vector<4x256xf32>
    %67 = vector.broadcast %9 : vector<1x256xf32> to vector<4x256xf32>
    %68 = arith.mulf %66, %67 : vector<4x256xf32>
    %c60 = arith.constant 60 : index
    %c0_37 = arith.constant 0 : index
    %69 = vector.load %arg10[%c60, %c0_37] : memref<72x256xf32, #tpu.memory_space<vmem>>, vector<4x256xf32>
    tpu.vector_store %arg10[%c60, %c0_37], %68 {strides = array<i32>} : memref<72x256xf32, #tpu.memory_space<vmem>>, vector<4x256xf32>,
    %c240_i32_38 = arith.constant 240 : i32
    %70 = tpu.dynamic_rotate %3 by %c240_i32_38 dim 1 : vector<4x256xf32>, i32 -> vector<4x256xf32>
    %71 = vector.broadcast %10 : vector<1x256xf32> to vector<4x256xf32>
    %72 = arith.mulf %70, %71 : vector<4x256xf32>
    %c64 = arith.constant 64 : index
    %c0_39 = arith.constant 0 : index
    %73 = vector.load %arg10[%c64, %c0_39] : memref<72x256xf32, #tpu.memory_space<vmem>>, vector<4x256xf32>
    tpu.vector_store %arg10[%c64, %c0_39], %72 {strides = array<i32>} : memref<72x256xf32, #tpu.memory_space<vmem>>, vector<4x256xf32>,
    %c239_i32_40 = arith.constant 239 : i32
    %74 = tpu.dynamic_rotate %3 by %c239_i32_40 dim 1 : vector<4x256xf32>, i32 -> vector<4x256xf32>
    %75 = vector.broadcast %11 : vector<1x256xf32> to vector<4x256xf32>
    %76 = arith.mulf %74, %75 : vector<4x256xf32>
    %c68 = arith.constant 68 : index
    %c0_41 = arith.constant 0 : index
    %77 = vector.load %arg10[%c68, %c0_41] : memref<72x256xf32, #tpu.memory_space<vmem>>, vector<4x256xf32>
    tpu.vector_store %arg10[%c68, %c0_41], %76 {strides = array<i32>} : memref<72x256xf32, #tpu.memory_space<vmem>>, vector<4x256xf32>,
    %c0_42 = arith.constant 0 : index
    %c0_43 = arith.constant 0 : index
    %c0_44 = arith.constant 0 : index
    %78 = vector.load %arg4[%c0_42, %c0_43, %c0_44] : memref<3x8x72xf32, #tpu.memory_space<vmem>>, vector<1x8x72xf32>
    %79 = vector.shape_cast %78 : vector<1x8x72xf32> to vector<8x72xf32>
    %c0_45 = arith.constant 0 : index
    %c0_46 = arith.constant 0 : index
    %80 = vector.load %arg10[%c0_45, %c0_46] : memref<72x256xf32, #tpu.memory_space<vmem>>, vector<72x256xf32>
    %cst = arith.constant dense<0.000000e+00> : vector<8x256xf32>
    %81 = tpu.matmul %79, %80, %cst {dimension_numbers = #tpu.dot_dimension_numbers<[1], [0], [0], [1], [0, 0, 1, 1], [], []>} : vector<8x72xf32>, vector<72x256xf32>, vector<8x256xf32> -> vector<8x256xf32>
    %c0_47 = arith.constant 0 : index
    %c0_48 = arith.constant 0 : index
    %c0_49 = arith.constant 0 : index
    %82 = vector.load %arg5[%c0_47, %c0_48, %c0_49] : memref<3x8x1xf32, #tpu.memory_space<vmem>>, vector<1x8x1xf32>
    %83 = vector.shape_cast %82 : vector<1x8x1xf32> to vector<8x1xf32>
    %84 = vector.broadcast %83 : vector<8x1xf32> to vector<8x256xf32>
    %85 = arith.addf %81, %84 : vector<8x256xf32>
    %cst_50 = arith.constant 0.000000e+00 : f32
    %86 = vector.broadcast %cst_50 : f32 to vector<8x256xf32>
    %87 = arith.cmpf ogt, %85, %86 : vector<8x256xf32>
    %cst_51 = arith.constant 2.000000e-01 : f32
    %88 = vector.broadcast %cst_51 : f32 to vector<8x256xf32>
    %89 = arith.mulf %88, %85 : vector<8x256xf32>
    %90 = arith.select %87, %85, %89 : vector<8x256xi1>, vector<8x256xf32>
    %91 = vector.extract_strided_slice %90 {offsets = [0, 0], sizes = [4, 256], strides = [1, 1]} : vector<8x256xf32> to vector<4x256xf32>
    %92 = vector.extract_strided_slice %90 {offsets = [4, 0], sizes = [4, 256], strides = [1, 1]} : vector<8x256xf32> to vector<4x256xf32>
    %c17_i32_52 = arith.constant 17 : i32
    %93 = tpu.dynamic_rotate %91 by %c17_i32_52 dim 1 : vector<4x256xf32>, i32 -> vector<4x256xf32>
    %94 = vector.broadcast %4 : vector<1x256xf32> to vector<4x256xf32>
    %95 = arith.mulf %93, %94 : vector<4x256xf32>
    %c0_53 = arith.constant 0 : index
    %c0_54 = arith.constant 0 : index
    %96 = vector.load %arg10[%c0_53, %c0_54] : memref<72x256xf32, #tpu.memory_space<vmem>>, vector<4x256xf32>
    tpu.vector_store %arg10[%c0_53, %c0_54], %95 {strides = array<i32>} : memref<72x256xf32, #tpu.memory_space<vmem>>, vector<4x256xf32>,
    %c16_i32_55 = arith.constant 16 : i32
    %97 = tpu.dynamic_rotate %91 by %c16_i32_55 dim 1 : vector<4x256xf32>, i32 -> vector<4x256xf32>
    %98 = vector.broadcast %5 : vector<1x256xf32> to vector<4x256xf32>
    %99 = arith.mulf %97, %98 : vector<4x256xf32>
    %c4_56 = arith.constant 4 : index
    %c0_57 = arith.constant 0 : index
    %100 = vector.load %arg10[%c4_56, %c0_57] : memref<72x256xf32, #tpu.memory_space<vmem>>, vector<4x256xf32>
    tpu.vector_store %arg10[%c4_56, %c0_57], %99 {strides = array<i32>} : memref<72x256xf32, #tpu.memory_space<vmem>>, vector<4x256xf32>,
    %c15_i32_58 = arith.constant 15 : i32
    %101 = tpu.dynamic_rotate %91 by %c15_i32_58 dim 1 : vector<4x256xf32>, i32 -> vector<4x256xf32>
    %102 = vector.broadcast %6 : vector<1x256xf32> to vector<4x256xf32>
    %103 = arith.mulf %101, %102 : vector<4x256xf32>
    %c8_59 = arith.constant 8 : index
    %c0_60 = arith.constant 0 : index
    %104 = vector.load %arg10[%c8_59, %c0_60] : memref<72x256xf32, #tpu.memory_space<vmem>>, vector<4x256xf32>
    tpu.vector_store %arg10[%c8_59, %c0_60], %103 {strides = array<i32>} : memref<72x256xf32, #tpu.memory_space<vmem>>, vector<4x256xf32>,
    %c1_i32_61 = arith.constant 1 : i32
    %105 = tpu.dynamic_rotate %91 by %c1_i32_61 dim 1 : vector<4x256xf32>, i32 -> vector<4x256xf32>
    %106 = vector.broadcast %7 : vector<1x256xf32> to vector<4x256xf32>
    %107 = arith.mulf %105, %106 : vector<4x256xf32>
    %c12_62 = arith.constant 12 : index
    %c0_63 = arith.constant 0 : index
    %108 = vector.load %arg10[%c12_62, %c0_63] : memref<72x256xf32, #tpu.memory_space<vmem>>, vector<4x256xf32>
    tpu.vector_store %arg10[%c12_62, %c0_63], %107 {strides = array<i32>} : memref<72x256xf32, #tpu.memory_space<vmem>>, vector<4x256xf32>,
    %c16_64 = arith.constant 16 : index
    %c0_65 = arith.constant 0 : index
    %109 = vector.load %arg10[%c16_64, %c0_65] : memref<72x256xf32, #tpu.memory_space<vmem>>, vector<4x256xf32>
    tpu.vector_store %arg10[%c16_64, %c0_65], %91 {strides = array<i32>} : memref<72x256xf32, #tpu.memory_space<vmem>>, vector<4x256xf32>,
    %c255_i32_66 = arith.constant 255 : i32
    %110 = tpu.dynamic_rotate %91 by %c255_i32_66 dim 1 : vector<4x256xf32>, i32 -> vector<4x256xf32>
    %111 = vector.broadcast %8 : vector<1x256xf32> to vector<4x256xf32>
    %112 = arith.mulf %110, %111 : vector<4x256xf32>
    %c20_67 = arith.constant 20 : index
    %c0_68 = arith.constant 0 : index
    %113 = vector.load %arg10[%c20_67, %c0_68] : memref<72x256xf32, #tpu.memory_space<vmem>>, vector<4x256xf32>
    tpu.vector_store %arg10[%c20_67, %c0_68], %112 {strides = array<i32>} : memref<72x256xf32, #tpu.memory_space<vmem>>, vector<4x256xf32>,
    %c241_i32_69 = arith.constant 241 : i32
    %114 = tpu.dynamic_rotate %91 by %c241_i32_69 dim 1 : vector<4x256xf32>, i32 -> vector<4x256xf32>
    %115 = vector.broadcast %9 : vector<1x256xf32> to vector<4x256xf32>
    %116 = arith.mulf %114, %115 : vector<4x256xf32>
    %c24_70 = arith.constant 24 : index
    %c0_71 = arith.constant 0 : index
    %117 = vector.load %arg10[%c24_70, %c0_71] : memref<72x256xf32, #tpu.memory_space<vmem>>, vector<4x256xf32>
    tpu.vector_store %arg10[%c24_70, %c0_71], %116 {strides = array<i32>} : memref<72x256xf32, #tpu.memory_space<vmem>>, vector<4x256xf32>,
    %c240_i32_72 = arith.constant 240 : i32
    %118 = tpu.dynamic_rotate %91 by %c240_i32_72 dim 1 : vector<4x256xf32>, i32 -> vector<4x256xf32>
    %119 = vector.broadcast %10 : vector<1x256xf32> to vector<4x256xf32>
    %120 = arith.mulf %118, %119 : vector<4x256xf32>
    %c28_73 = arith.constant 28 : index
    %c0_74 = arith.constant 0 : index
    %121 = vector.load %arg10[%c28_73, %c0_74] : memref<72x256xf32, #tpu.memory_space<vmem>>, vector<4x256xf32>
    tpu.vector_store %arg10[%c28_73, %c0_74], %120 {strides = array<i32>} : memref<72x256xf32, #tpu.memory_space<vmem>>, vector<4x256xf32>,
    %c239_i32_75 = arith.constant 239 : i32
    %122 = tpu.dynamic_rotate %91 by %c239_i32_75 dim 1 : vector<4x256xf32>, i32 -> vector<4x256xf32>
    %123 = vector.broadcast %11 : vector<1x256xf32> to vector<4x256xf32>
    %124 = arith.mulf %122, %123 : vector<4x256xf32>
    %c32_76 = arith.constant 32 : index
    %c0_77 = arith.constant 0 : index
    %125 = vector.load %arg10[%c32_76, %c0_77] : memref<72x256xf32, #tpu.memory_space<vmem>>, vector<4x256xf32>
    tpu.vector_store %arg10[%c32_76, %c0_77], %124 {strides = array<i32>} : memref<72x256xf32, #tpu.memory_space<vmem>>, vector<4x256xf32>,
    %c17_i32_78 = arith.constant 17 : i32
    %126 = tpu.dynamic_rotate %92 by %c17_i32_78 dim 1 : vector<4x256xf32>, i32 -> vector<4x256xf32>
    %127 = vector.broadcast %4 : vector<1x256xf32> to vector<4x256xf32>
    %128 = arith.mulf %126, %127 : vector<4x256xf32>
    %c36_79 = arith.constant 36 : index
    %c0_80 = arith.constant 0 : index
    %129 = vector.load %arg10[%c36_79, %c0_80] : memref<72x256xf32, #tpu.memory_space<vmem>>, vector<4x256xf32>
    tpu.vector_store %arg10[%c36_79, %c0_80], %128 {strides = array<i32>} : memref<72x256xf32, #tpu.memory_space<vmem>>, vector<4x256xf32>,
    %c16_i32_81 = arith.constant 16 : i32
    %130 = tpu.dynamic_rotate %92 by %c16_i32_81 dim 1 : vector<4x256xf32>, i32 -> vector<4x256xf32>
    %131 = vector.broadcast %5 : vector<1x256xf32> to vector<4x256xf32>
    %132 = arith.mulf %130, %131 : vector<4x256xf32>
    %c40_82 = arith.constant 40 : index
    %c0_83 = arith.constant 0 : index
    %133 = vector.load %arg10[%c40_82, %c0_83] : memref<72x256xf32, #tpu.memory_space<vmem>>, vector<4x256xf32>
    tpu.vector_store %arg10[%c40_82, %c0_83], %132 {strides = array<i32>} : memref<72x256xf32, #tpu.memory_space<vmem>>, vector<4x256xf32>,
    %c15_i32_84 = arith.constant 15 : i32
    %134 = tpu.dynamic_rotate %92 by %c15_i32_84 dim 1 : vector<4x256xf32>, i32 -> vector<4x256xf32>
    %135 = vector.broadcast %6 : vector<1x256xf32> to vector<4x256xf32>
    %136 = arith.mulf %134, %135 : vector<4x256xf32>
    %c44_85 = arith.constant 44 : index
    %c0_86 = arith.constant 0 : index
    %137 = vector.load %arg10[%c44_85, %c0_86] : memref<72x256xf32, #tpu.memory_space<vmem>>, vector<4x256xf32>
    tpu.vector_store %arg10[%c44_85, %c0_86], %136 {strides = array<i32>} : memref<72x256xf32, #tpu.memory_space<vmem>>, vector<4x256xf32>,
    %c1_i32_87 = arith.constant 1 : i32
    %138 = tpu.dynamic_rotate %92 by %c1_i32_87 dim 1 : vector<4x256xf32>, i32 -> vector<4x256xf32>
    %139 = vector.broadcast %7 : vector<1x256xf32> to vector<4x256xf32>
    %140 = arith.mulf %138, %139 : vector<4x256xf32>
    %c48_88 = arith.constant 48 : index
    %c0_89 = arith.constant 0 : index
    %141 = vector.load %arg10[%c48_88, %c0_89] : memref<72x256xf32, #tpu.memory_space<vmem>>, vector<4x256xf32>
    tpu.vector_store %arg10[%c48_88, %c0_89], %140 {strides = array<i32>} : memref<72x256xf32, #tpu.memory_space<vmem>>, vector<4x256xf32>,
    %c52_90 = arith.constant 52 : index
    %c0_91 = arith.constant 0 : index
    %142 = vector.load %arg10[%c52_90, %c0_91] : memref<72x256xf32, #tpu.memory_space<vmem>>, vector<4x256xf32>
    tpu.vector_store %arg10[%c52_90, %c0_91], %92 {strides = array<i32>} : memref<72x256xf32, #tpu.memory_space<vmem>>, vector<4x256xf32>,
    %c255_i32_92 = arith.constant 255 : i32
    %143 = tpu.dynamic_rotate %92 by %c255_i32_92 dim 1 : vector<4x256xf32>, i32 -> vector<4x256xf32>
    %144 = vector.broadcast %8 : vector<1x256xf32> to vector<4x256xf32>
    %145 = arith.mulf %143, %144 : vector<4x256xf32>
    %c56_93 = arith.constant 56 : index
    %c0_94 = arith.constant 0 : index
    %146 = vector.load %arg10[%c56_93, %c0_94] : memref<72x256xf32, #tpu.memory_space<vmem>>, vector<4x256xf32>
    tpu.vector_store %arg10[%c56_93, %c0_94], %145 {strides = array<i32>} : memref<72x256xf32, #tpu.memory_space<vmem>>, vector<4x256xf32>,
    %c241_i32_95 = arith.constant 241 : i32
    %147 = tpu.dynamic_rotate %92 by %c241_i32_95 dim 1 : vector<4x256xf32>, i32 -> vector<4x256xf32>
    %148 = vector.broadcast %9 : vector<1x256xf32> to vector<4x256xf32>
    %149 = arith.mulf %147, %148 : vector<4x256xf32>
    %c60_96 = arith.constant 60 : index
    %c0_97 = arith.constant 0 : index
    %150 = vector.load %arg10[%c60_96, %c0_97] : memref<72x256xf32, #tpu.memory_space<vmem>>, vector<4x256xf32>
    tpu.vector_store %arg10[%c60_96, %c0_97], %149 {strides = array<i32>} : memref<72x256xf32, #tpu.memory_space<vmem>>, vector<4x256xf32>,
    %c240_i32_98 = arith.constant 240 : i32
    %151 = tpu.dynamic_rotate %92 by %c240_i32_98 dim 1 : vector<4x256xf32>, i32 -> vector<4x256xf32>
    %152 = vector.broadcast %10 : vector<1x256xf32> to vector<4x256xf32>
    %153 = arith.mulf %151, %152 : vector<4x256xf32>
    %c64_99 = arith.constant 64 : index
    %c0_100 = arith.constant 0 : index
    %154 = vector.load %arg10[%c64_99, %c0_100] : memref<72x256xf32, #tpu.memory_space<vmem>>, vector<4x256xf32>
    tpu.vector_store %arg10[%c64_99, %c0_100], %153 {strides = array<i32>} : memref<72x256xf32, #tpu.memory_space<vmem>>, vector<4x256xf32>,
    %c239_i32_101 = arith.constant 239 : i32
    %155 = tpu.dynamic_rotate %92 by %c239_i32_101 dim 1 : vector<4x256xf32>, i32 -> vector<4x256xf32>
    %156 = vector.broadcast %11 : vector<1x256xf32> to vector<4x256xf32>
    %157 = arith.mulf %155, %156 : vector<4x256xf32>
    %c68_102 = arith.constant 68 : index
    %c0_103 = arith.constant 0 : index
    %158 = vector.load %arg10[%c68_102, %c0_103] : memref<72x256xf32, #tpu.memory_space<vmem>>, vector<4x256xf32>
    tpu.vector_store %arg10[%c68_102, %c0_103], %157 {strides = array<i32>} : memref<72x256xf32, #tpu.memory_space<vmem>>, vector<4x256xf32>,
    %c0_104 = arith.constant 0 : index
    %c0_105 = arith.constant 0 : index
    %c0_106 = arith.constant 0 : index
    %159 = vector.load %arg6[%c0_104, %c0_105, %c0_106] : memref<3x8x72xf32, #tpu.memory_space<vmem>>, vector<1x8x72xf32>
    %160 = vector.shape_cast %159 : vector<1x8x72xf32> to vector<8x72xf32>
    %c0_107 = arith.constant 0 : index
    %c0_108 = arith.constant 0 : index
    %161 = vector.load %arg10[%c0_107, %c0_108] : memref<72x256xf32, #tpu.memory_space<vmem>>, vector<72x256xf32>
    %cst_109 = arith.constant dense<0.000000e+00> : vector<8x256xf32>
    %162 = tpu.matmul %160, %161, %cst_109 {dimension_numbers = #tpu.dot_dimension_numbers<[1], [0], [0], [1], [0, 0, 1, 1], [], []>} : vector<8x72xf32>, vector<72x256xf32>, vector<8x256xf32> -> vector<8x256xf32>
    %c0_110 = arith.constant 0 : index
    %c0_111 = arith.constant 0 : index
    %c0_112 = arith.constant 0 : index
    %163 = vector.load %arg7[%c0_110, %c0_111, %c0_112] : memref<3x8x1xf32, #tpu.memory_space<vmem>>, vector<1x8x1xf32>
    %164 = vector.shape_cast %163 : vector<1x8x1xf32> to vector<8x1xf32>
    %165 = vector.broadcast %164 : vector<8x1xf32> to vector<8x256xf32>
    %166 = arith.addf %162, %165 : vector<8x256xf32>
    %167 = vector.extract_strided_slice %166 {offsets = [0, 0], sizes = [4, 256], strides = [1, 1]} : vector<8x256xf32> to vector<4x256xf32>
    %168 = vector.extract_strided_slice %166 {offsets = [4, 0], sizes = [4, 256], strides = [1, 1]} : vector<8x256xf32> to vector<4x256xf32>
    %169 = arith.mulf %167, %168 : vector<4x256xf32>
    %170 = arith.addf %1, %169 : vector<4x256xf32>
    %171 = arith.addf %3, %168 : vector<4x256xf32>
    %c17_i32_113 = arith.constant 17 : i32
    %172 = tpu.dynamic_rotate %170 by %c17_i32_113 dim 1 : vector<4x256xf32>, i32 -> vector<4x256xf32>
    %173 = vector.broadcast %4 : vector<1x256xf32> to vector<4x256xf32>
    %174 = arith.mulf %172, %173 : vector<4x256xf32>
    %c0_114 = arith.constant 0 : index
    %c0_115 = arith.constant 0 : index
    %175 = vector.load %arg10[%c0_114, %c0_115] : memref<72x256xf32, #tpu.memory_space<vmem>>, vector<4x256xf32>
    tpu.vector_store %arg10[%c0_114, %c0_115], %174 {strides = array<i32>} : memref<72x256xf32, #tpu.memory_space<vmem>>, vector<4x256xf32>,
    %c16_i32_116 = arith.constant 16 : i32
    %176 = tpu.dynamic_rotate %170 by %c16_i32_116 dim 1 : vector<4x256xf32>, i32 -> vector<4x256xf32>
    %177 = vector.broadcast %5 : vector<1x256xf32> to vector<4x256xf32>
    %178 = arith.mulf %176, %177 : vector<4x256xf32>
    %c4_117 = arith.constant 4 : index
    %c0_118 = arith.constant 0 : index
    %179 = vector.load %arg10[%c4_117, %c0_118] : memref<72x256xf32, #tpu.memory_space<vmem>>, vector<4x256xf32>
    tpu.vector_store %arg10[%c4_117, %c0_118], %178 {strides = array<i32>} : memref<72x256xf32, #tpu.memory_space<vmem>>, vector<4x256xf32>,
    %c15_i32_119 = arith.constant 15 : i32
    %180 = tpu.dynamic_rotate %170 by %c15_i32_119 dim 1 : vector<4x256xf32>, i32 -> vector<4x256xf32>
    %181 = vector.broadcast %6 : vector<1x256xf32> to vector<4x256xf32>
    %182 = arith.mulf %180, %181 : vector<4x256xf32>
    %c8_120 = arith.constant 8 : index
    %c0_121 = arith.constant 0 : index
    %183 = vector.load %arg10[%c8_120, %c0_121] : memref<72x256xf32, #tpu.memory_space<vmem>>, vector<4x256xf32>
    tpu.vector_store %arg10[%c8_120, %c0_121], %182 {strides = array<i32>} : memref<72x256xf32, #tpu.memory_space<vmem>>, vector<4x256xf32>,
    %c1_i32_122 = arith.constant 1 : i32
    %184 = tpu.dynamic_rotate %170 by %c1_i32_122 dim 1 : vector<4x256xf32>, i32 -> vector<4x256xf32>
    %185 = vector.broadcast %7 : vector<1x256xf32> to vector<4x256xf32>
    %186 = arith.mulf %184, %185 : vector<4x256xf32>
    %c12_123 = arith.constant 12 : index
    %c0_124 = arith.constant 0 : index
    %187 = vector.load %arg10[%c12_123, %c0_124] : memref<72x256xf32, #tpu.memory_space<vmem>>, vector<4x256xf32>
    tpu.vector_store %arg10[%c12_123, %c0_124], %186 {strides = array<i32>} : memref<72x256xf32, #tpu.memory_space<vmem>>, vector<4x256xf32>,
    %c16_125 = arith.constant 16 : index
    %c0_126 = arith.constant 0 : index
    %188 = vector.load %arg10[%c16_125, %c0_126] : memref<72x256xf32, #tpu.memory_space<vmem>>, vector<4x256xf32>
    tpu.vector_store %arg10[%c16_125, %c0_126], %170 {strides = array<i32>} : memref<72x256xf32, #tpu.memory_space<vmem>>, vector<4x256xf32>,
    %c255_i32_127 = arith.constant 255 : i32
    %189 = tpu.dynamic_rotate %170 by %c255_i32_127 dim 1 : vector<4x256xf32>, i32 -> vector<4x256xf32>
    %190 = vector.broadcast %8 : vector<1x256xf32> to vector<4x256xf32>
    %191 = arith.mulf %189, %190 : vector<4x256xf32>
    %c20_128 = arith.constant 20 : index
    %c0_129 = arith.constant 0 : index
    %192 = vector.load %arg10[%c20_128, %c0_129] : memref<72x256xf32, #tpu.memory_space<vmem>>, vector<4x256xf32>
    tpu.vector_store %arg10[%c20_128, %c0_129], %191 {strides = array<i32>} : memref<72x256xf32, #tpu.memory_space<vmem>>, vector<4x256xf32>,
    %c241_i32_130 = arith.constant 241 : i32
    %193 = tpu.dynamic_rotate %170 by %c241_i32_130 dim 1 : vector<4x256xf32>, i32 -> vector<4x256xf32>
    %194 = vector.broadcast %9 : vector<1x256xf32> to vector<4x256xf32>
    %195 = arith.mulf %193, %194 : vector<4x256xf32>
    %c24_131 = arith.constant 24 : index
    %c0_132 = arith.constant 0 : index
    %196 = vector.load %arg10[%c24_131, %c0_132] : memref<72x256xf32, #tpu.memory_space<vmem>>, vector<4x256xf32>
    tpu.vector_store %arg10[%c24_131, %c0_132], %195 {strides = array<i32>} : memref<72x256xf32, #tpu.memory_space<vmem>>, vector<4x256xf32>,
    %c240_i32_133 = arith.constant 240 : i32
    %197 = tpu.dynamic_rotate %170 by %c240_i32_133 dim 1 : vector<4x256xf32>, i32 -> vector<4x256xf32>
    %198 = vector.broadcast %10 : vector<1x256xf32> to vector<4x256xf32>
    %199 = arith.mulf %197, %198 : vector<4x256xf32>
    %c28_134 = arith.constant 28 : index
    %c0_135 = arith.constant 0 : index
    %200 = vector.load %arg10[%c28_134, %c0_135] : memref<72x256xf32, #tpu.memory_space<vmem>>, vector<4x256xf32>
    tpu.vector_store %arg10[%c28_134, %c0_135], %199 {strides = array<i32>} : memref<72x256xf32, #tpu.memory_space<vmem>>, vector<4x256xf32>,
    %c239_i32_136 = arith.constant 239 : i32
    %201 = tpu.dynamic_rotate %170 by %c239_i32_136 dim 1 : vector<4x256xf32>, i32 -> vector<4x256xf32>
    %202 = vector.broadcast %11 : vector<1x256xf32> to vector<4x256xf32>
    %203 = arith.mulf %201, %202 : vector<4x256xf32>
    %c32_137 = arith.constant 32 : index
    %c0_138 = arith.constant 0 : index
    %204 = vector.load %arg10[%c32_137, %c0_138] : memref<72x256xf32, #tpu.memory_space<vmem>>, vector<4x256xf32>
    tpu.vector_store %arg10[%c32_137, %c0_138], %203 {strides = array<i32>} : memref<72x256xf32, #tpu.memory_space<vmem>>, vector<4x256xf32>,
    %c17_i32_139 = arith.constant 17 : i32
    %205 = tpu.dynamic_rotate %171 by %c17_i32_139 dim 1 : vector<4x256xf32>, i32 -> vector<4x256xf32>
    %206 = vector.broadcast %4 : vector<1x256xf32> to vector<4x256xf32>
    %207 = arith.mulf %205, %206 : vector<4x256xf32>
    %c36_140 = arith.constant 36 : index
    %c0_141 = arith.constant 0 : index
    %208 = vector.load %arg10[%c36_140, %c0_141] : memref<72x256xf32, #tpu.memory_space<vmem>>, vector<4x256xf32>
    tpu.vector_store %arg10[%c36_140, %c0_141], %207 {strides = array<i32>} : memref<72x256xf32, #tpu.memory_space<vmem>>, vector<4x256xf32>,
    %c16_i32_142 = arith.constant 16 : i32
    %209 = tpu.dynamic_rotate %171 by %c16_i32_142 dim 1 : vector<4x256xf32>, i32 -> vector<4x256xf32>
    %210 = vector.broadcast %5 : vector<1x256xf32> to vector<4x256xf32>
    %211 = arith.mulf %209, %210 : vector<4x256xf32>
    %c40_143 = arith.constant 40 : index
    %c0_144 = arith.constant 0 : index
    %212 = vector.load %arg10[%c40_143, %c0_144] : memref<72x256xf32, #tpu.memory_space<vmem>>, vector<4x256xf32>
    tpu.vector_store %arg10[%c40_143, %c0_144], %211 {strides = array<i32>} : memref<72x256xf32, #tpu.memory_space<vmem>>, vector<4x256xf32>,
    %c15_i32_145 = arith.constant 15 : i32
    %213 = tpu.dynamic_rotate %171 by %c15_i32_145 dim 1 : vector<4x256xf32>, i32 -> vector<4x256xf32>
    %214 = vector.broadcast %6 : vector<1x256xf32> to vector<4x256xf32>
    %215 = arith.mulf %213, %214 : vector<4x256xf32>
    %c44_146 = arith.constant 44 : index
    %c0_147 = arith.constant 0 : index
    %216 = vector.load %arg10[%c44_146, %c0_147] : memref<72x256xf32, #tpu.memory_space<vmem>>, vector<4x256xf32>
    tpu.vector_store %arg10[%c44_146, %c0_147], %215 {strides = array<i32>} : memref<72x256xf32, #tpu.memory_space<vmem>>, vector<4x256xf32>,
    %c1_i32_148 = arith.constant 1 : i32
    %217 = tpu.dynamic_rotate %171 by %c1_i32_148 dim 1 : vector<4x256xf32>, i32 -> vector<4x256xf32>
    %218 = vector.broadcast %7 : vector<1x256xf32> to vector<4x256xf32>
    %219 = arith.mulf %217, %218 : vector<4x256xf32>
    %c48_149 = arith.constant 48 : index
    %c0_150 = arith.constant 0 : index
    %220 = vector.load %arg10[%c48_149, %c0_150] : memref<72x256xf32, #tpu.memory_space<vmem>>, vector<4x256xf32>
    tpu.vector_store %arg10[%c48_149, %c0_150], %219 {strides = array<i32>} : memref<72x256xf32, #tpu.memory_space<vmem>>, vector<4x256xf32>,
    %c52_151 = arith.constant 52 : index
    %c0_152 = arith.constant 0 : index
    %221 = vector.load %arg10[%c52_151, %c0_152] : memref<72x256xf32, #tpu.memory_space<vmem>>, vector<4x256xf32>
    tpu.vector_store %arg10[%c52_151, %c0_152], %171 {strides = array<i32>} : memref<72x256xf32, #tpu.memory_space<vmem>>, vector<4x256xf32>,
    %c255_i32_153 = arith.constant 255 : i32
    %222 = tpu.dynamic_rotate %171 by %c255_i32_153 dim 1 : vector<4x256xf32>, i32 -> vector<4x256xf32>
    %223 = vector.broadcast %8 : vector<1x256xf32> to vector<4x256xf32>
    %224 = arith.mulf %222, %223 : vector<4x256xf32>
    %c56_154 = arith.constant 56 : index
    %c0_155 = arith.constant 0 : index
    %225 = vector.load %arg10[%c56_154, %c0_155] : memref<72x256xf32, #tpu.memory_space<vmem>>, vector<4x256xf32>
    tpu.vector_store %arg10[%c56_154, %c0_155], %224 {strides = array<i32>} : memref<72x256xf32, #tpu.memory_space<vmem>>, vector<4x256xf32>,
    %c241_i32_156 = arith.constant 241 : i32
    %226 = tpu.dynamic_rotate %171 by %c241_i32_156 dim 1 : vector<4x256xf32>, i32 -> vector<4x256xf32>
    %227 = vector.broadcast %9 : vector<1x256xf32> to vector<4x256xf32>
    %228 = arith.mulf %226, %227 : vector<4x256xf32>
    %c60_157 = arith.constant 60 : index
    %c0_158 = arith.constant 0 : index
    %229 = vector.load %arg10[%c60_157, %c0_158] : memref<72x256xf32, #tpu.memory_space<vmem>>, vector<4x256xf32>
    tpu.vector_store %arg10[%c60_157, %c0_158], %228 {strides = array<i32>} : memref<72x256xf32, #tpu.memory_space<vmem>>, vector<4x256xf32>,
    %c240_i32_159 = arith.constant 240 : i32
    %230 = tpu.dynamic_rotate %171 by %c240_i32_159 dim 1 : vector<4x256xf32>, i32 -> vector<4x256xf32>
    %231 = vector.broadcast %10 : vector<1x256xf32> to vector<4x256xf32>
    %232 = arith.mulf %230, %231 : vector<4x256xf32>
    %c64_160 = arith.constant 64 : index
    %c0_161 = arith.constant 0 : index
    %233 = vector.load %arg10[%c64_160, %c0_161] : memref<72x256xf32, #tpu.memory_space<vmem>>, vector<4x256xf32>
    tpu.vector_store %arg10[%c64_160, %c0_161], %232 {strides = array<i32>} : memref<72x256xf32, #tpu.memory_space<vmem>>, vector<4x256xf32>,
    %c239_i32_162 = arith.constant 239 : i32
    %234 = tpu.dynamic_rotate %171 by %c239_i32_162 dim 1 : vector<4x256xf32>, i32 -> vector<4x256xf32>
    %235 = vector.broadcast %11 : vector<1x256xf32> to vector<4x256xf32>
    %236 = arith.mulf %234, %235 : vector<4x256xf32>
    %c68_163 = arith.constant 68 : index
    %c0_164 = arith.constant 0 : index
    %237 = vector.load %arg10[%c68_163, %c0_164] : memref<72x256xf32, #tpu.memory_space<vmem>>, vector<4x256xf32>
    tpu.vector_store %arg10[%c68_163, %c0_164], %236 {strides = array<i32>} : memref<72x256xf32, #tpu.memory_space<vmem>>, vector<4x256xf32>,
    %c1_165 = arith.constant 1 : index
    %c0_166 = arith.constant 0 : index
    %c0_167 = arith.constant 0 : index
    %238 = vector.load %arg4[%c1_165, %c0_166, %c0_167] : memref<3x8x72xf32, #tpu.memory_space<vmem>>, vector<1x8x72xf32>
    %239 = vector.shape_cast %238 : vector<1x8x72xf32> to vector<8x72xf32>
    %c0_168 = arith.constant 0 : index
    %c0_169 = arith.constant 0 : index
    %240 = vector.load %arg10[%c0_168, %c0_169] : memref<72x256xf32, #tpu.memory_space<vmem>>, vector<72x256xf32>
    %cst_170 = arith.constant dense<0.000000e+00> : vector<8x256xf32>
    %241 = tpu.matmul %239, %240, %cst_170 {dimension_numbers = #tpu.dot_dimension_numbers<[1], [0], [0], [1], [0, 0, 1, 1], [], []>} : vector<8x72xf32>, vector<72x256xf32>, vector<8x256xf32> -> vector<8x256xf32>
    %c1_171 = arith.constant 1 : index
    %c0_172 = arith.constant 0 : index
    %c0_173 = arith.constant 0 : index
    %242 = vector.load %arg5[%c1_171, %c0_172, %c0_173] : memref<3x8x1xf32, #tpu.memory_space<vmem>>, vector<1x8x1xf32>
    %243 = vector.shape_cast %242 : vector<1x8x1xf32> to vector<8x1xf32>
    %244 = vector.broadcast %243 : vector<8x1xf32> to vector<8x256xf32>
    %245 = arith.addf %241, %244 : vector<8x256xf32>
    %cst_174 = arith.constant 0.000000e+00 : f32
    %246 = vector.broadcast %cst_174 : f32 to vector<8x256xf32>
    %247 = arith.cmpf ogt, %245, %246 : vector<8x256xf32>
    %cst_175 = arith.constant 2.000000e-01 : f32
    %248 = vector.broadcast %cst_175 : f32 to vector<8x256xf32>
    %249 = arith.mulf %248, %245 : vector<8x256xf32>
    %250 = arith.select %247, %245, %249 : vector<8x256xi1>, vector<8x256xf32>
    %251 = vector.extract_strided_slice %250 {offsets = [0, 0], sizes = [4, 256], strides = [1, 1]} : vector<8x256xf32> to vector<4x256xf32>
    %252 = vector.extract_strided_slice %250 {offsets = [4, 0], sizes = [4, 256], strides = [1, 1]} : vector<8x256xf32> to vector<4x256xf32>
    %c17_i32_176 = arith.constant 17 : i32
    %253 = tpu.dynamic_rotate %251 by %c17_i32_176 dim 1 : vector<4x256xf32>, i32 -> vector<4x256xf32>
    %254 = vector.broadcast %4 : vector<1x256xf32> to vector<4x256xf32>
    %255 = arith.mulf %253, %254 : vector<4x256xf32>
    %c0_177 = arith.constant 0 : index
    %c0_178 = arith.constant 0 : index
    %256 = vector.load %arg10[%c0_177, %c0_178] : memref<72x256xf32, #tpu.memory_space<vmem>>, vector<4x256xf32>
    tpu.vector_store %arg10[%c0_177, %c0_178], %255 {strides = array<i32>} : memref<72x256xf32, #tpu.memory_space<vmem>>, vector<4x256xf32>,
    %c16_i32_179 = arith.constant 16 : i32
    %257 = tpu.dynamic_rotate %251 by %c16_i32_179 dim 1 : vector<4x256xf32>, i32 -> vector<4x256xf32>
    %258 = vector.broadcast %5 : vector<1x256xf32> to vector<4x256xf32>
    %259 = arith.mulf %257, %258 : vector<4x256xf32>
    %c4_180 = arith.constant 4 : index
    %c0_181 = arith.constant 0 : index
    %260 = vector.load %arg10[%c4_180, %c0_181] : memref<72x256xf32, #tpu.memory_space<vmem>>, vector<4x256xf32>
    tpu.vector_store %arg10[%c4_180, %c0_181], %259 {strides = array<i32>} : memref<72x256xf32, #tpu.memory_space<vmem>>, vector<4x256xf32>,
    %c15_i32_182 = arith.constant 15 : i32
    %261 = tpu.dynamic_rotate %251 by %c15_i32_182 dim 1 : vector<4x256xf32>, i32 -> vector<4x256xf32>
    %262 = vector.broadcast %6 : vector<1x256xf32> to vector<4x256xf32>
    %263 = arith.mulf %261, %262 : vector<4x256xf32>
    %c8_183 = arith.constant 8 : index
    %c0_184 = arith.constant 0 : index
    %264 = vector.load %arg10[%c8_183, %c0_184] : memref<72x256xf32, #tpu.memory_space<vmem>>, vector<4x256xf32>
    tpu.vector_store %arg10[%c8_183, %c0_184], %263 {strides = array<i32>} : memref<72x256xf32, #tpu.memory_space<vmem>>, vector<4x256xf32>,
    %c1_i32_185 = arith.constant 1 : i32
    %265 = tpu.dynamic_rotate %251 by %c1_i32_185 dim 1 : vector<4x256xf32>, i32 -> vector<4x256xf32>
    %266 = vector.broadcast %7 : vector<1x256xf32> to vector<4x256xf32>
    %267 = arith.mulf %265, %266 : vector<4x256xf32>
    %c12_186 = arith.constant 12 : index
    %c0_187 = arith.constant 0 : index
    %268 = vector.load %arg10[%c12_186, %c0_187] : memref<72x256xf32, #tpu.memory_space<vmem>>, vector<4x256xf32>
    tpu.vector_store %arg10[%c12_186, %c0_187], %267 {strides = array<i32>} : memref<72x256xf32, #tpu.memory_space<vmem>>, vector<4x256xf32>,
    %c16_188 = arith.constant 16 : index
    %c0_189 = arith.constant 0 : index
    %269 = vector.load %arg10[%c16_188, %c0_189] : memref<72x256xf32, #tpu.memory_space<vmem>>, vector<4x256xf32>
    tpu.vector_store %arg10[%c16_188, %c0_189], %251 {strides = array<i32>} : memref<72x256xf32, #tpu.memory_space<vmem>>, vector<4x256xf32>,
    %c255_i32_190 = arith.constant 255 : i32
    %270 = tpu.dynamic_rotate %251 by %c255_i32_190 dim 1 : vector<4x256xf32>, i32 -> vector<4x256xf32>
    %271 = vector.broadcast %8 : vector<1x256xf32> to vector<4x256xf32>
    %272 = arith.mulf %270, %271 : vector<4x256xf32>
    %c20_191 = arith.constant 20 : index
    %c0_192 = arith.constant 0 : index
    %273 = vector.load %arg10[%c20_191, %c0_192] : memref<72x256xf32, #tpu.memory_space<vmem>>, vector<4x256xf32>
    tpu.vector_store %arg10[%c20_191, %c0_192], %272 {strides = array<i32>} : memref<72x256xf32, #tpu.memory_space<vmem>>, vector<4x256xf32>,
    %c241_i32_193 = arith.constant 241 : i32
    %274 = tpu.dynamic_rotate %251 by %c241_i32_193 dim 1 : vector<4x256xf32>, i32 -> vector<4x256xf32>
    %275 = vector.broadcast %9 : vector<1x256xf32> to vector<4x256xf32>
    %276 = arith.mulf %274, %275 : vector<4x256xf32>
    %c24_194 = arith.constant 24 : index
    %c0_195 = arith.constant 0 : index
    %277 = vector.load %arg10[%c24_194, %c0_195] : memref<72x256xf32, #tpu.memory_space<vmem>>, vector<4x256xf32>
    tpu.vector_store %arg10[%c24_194, %c0_195], %276 {strides = array<i32>} : memref<72x256xf32, #tpu.memory_space<vmem>>, vector<4x256xf32>,
    %c240_i32_196 = arith.constant 240 : i32
    %278 = tpu.dynamic_rotate %251 by %c240_i32_196 dim 1 : vector<4x256xf32>, i32 -> vector<4x256xf32>
    %279 = vector.broadcast %10 : vector<1x256xf32> to vector<4x256xf32>
    %280 = arith.mulf %278, %279 : vector<4x256xf32>
    %c28_197 = arith.constant 28 : index
    %c0_198 = arith.constant 0 : index
    %281 = vector.load %arg10[%c28_197, %c0_198] : memref<72x256xf32, #tpu.memory_space<vmem>>, vector<4x256xf32>
    tpu.vector_store %arg10[%c28_197, %c0_198], %280 {strides = array<i32>} : memref<72x256xf32, #tpu.memory_space<vmem>>, vector<4x256xf32>,
    %c239_i32_199 = arith.constant 239 : i32
    %282 = tpu.dynamic_rotate %251 by %c239_i32_199 dim 1 : vector<4x256xf32>, i32 -> vector<4x256xf32>
    %283 = vector.broadcast %11 : vector<1x256xf32> to vector<4x256xf32>
    %284 = arith.mulf %282, %283 : vector<4x256xf32>
    %c32_200 = arith.constant 32 : index
    %c0_201 = arith.constant 0 : index
    %285 = vector.load %arg10[%c32_200, %c0_201] : memref<72x256xf32, #tpu.memory_space<vmem>>, vector<4x256xf32>
    tpu.vector_store %arg10[%c32_200, %c0_201], %284 {strides = array<i32>} : memref<72x256xf32, #tpu.memory_space<vmem>>, vector<4x256xf32>,
    %c17_i32_202 = arith.constant 17 : i32
    %286 = tpu.dynamic_rotate %252 by %c17_i32_202 dim 1 : vector<4x256xf32>, i32 -> vector<4x256xf32>
    %287 = vector.broadcast %4 : vector<1x256xf32> to vector<4x256xf32>
    %288 = arith.mulf %286, %287 : vector<4x256xf32>
    %c36_203 = arith.constant 36 : index
    %c0_204 = arith.constant 0 : index
    %289 = vector.load %arg10[%c36_203, %c0_204] : memref<72x256xf32, #tpu.memory_space<vmem>>, vector<4x256xf32>
    tpu.vector_store %arg10[%c36_203, %c0_204], %288 {strides = array<i32>} : memref<72x256xf32, #tpu.memory_space<vmem>>, vector<4x256xf32>,
    %c16_i32_205 = arith.constant 16 : i32
    %290 = tpu.dynamic_rotate %252 by %c16_i32_205 dim 1 : vector<4x256xf32>, i32 -> vector<4x256xf32>
    %291 = vector.broadcast %5 : vector<1x256xf32> to vector<4x256xf32>
    %292 = arith.mulf %290, %291 : vector<4x256xf32>
    %c40_206 = arith.constant 40 : index
    %c0_207 = arith.constant 0 : index
    %293 = vector.load %arg10[%c40_206, %c0_207] : memref<72x256xf32, #tpu.memory_space<vmem>>, vector<4x256xf32>
    tpu.vector_store %arg10[%c40_206, %c0_207], %292 {strides = array<i32>} : memref<72x256xf32, #tpu.memory_space<vmem>>, vector<4x256xf32>,
    %c15_i32_208 = arith.constant 15 : i32
    %294 = tpu.dynamic_rotate %252 by %c15_i32_208 dim 1 : vector<4x256xf32>, i32 -> vector<4x256xf32>
    %295 = vector.broadcast %6 : vector<1x256xf32> to vector<4x256xf32>
    %296 = arith.mulf %294, %295 : vector<4x256xf32>
    %c44_209 = arith.constant 44 : index
    %c0_210 = arith.constant 0 : index
    %297 = vector.load %arg10[%c44_209, %c0_210] : memref<72x256xf32, #tpu.memory_space<vmem>>, vector<4x256xf32>
    tpu.vector_store %arg10[%c44_209, %c0_210], %296 {strides = array<i32>} : memref<72x256xf32, #tpu.memory_space<vmem>>, vector<4x256xf32>,
    %c1_i32_211 = arith.constant 1 : i32
    %298 = tpu.dynamic_rotate %252 by %c1_i32_211 dim 1 : vector<4x256xf32>, i32 -> vector<4x256xf32>
    %299 = vector.broadcast %7 : vector<1x256xf32> to vector<4x256xf32>
    %300 = arith.mulf %298, %299 : vector<4x256xf32>
    %c48_212 = arith.constant 48 : index
    %c0_213 = arith.constant 0 : index
    %301 = vector.load %arg10[%c48_212, %c0_213] : memref<72x256xf32, #tpu.memory_space<vmem>>, vector<4x256xf32>
    tpu.vector_store %arg10[%c48_212, %c0_213], %300 {strides = array<i32>} : memref<72x256xf32, #tpu.memory_space<vmem>>, vector<4x256xf32>,
    %c52_214 = arith.constant 52 : index
    %c0_215 = arith.constant 0 : index
    %302 = vector.load %arg10[%c52_214, %c0_215] : memref<72x256xf32, #tpu.memory_space<vmem>>, vector<4x256xf32>
    tpu.vector_store %arg10[%c52_214, %c0_215], %252 {strides = array<i32>} : memref<72x256xf32, #tpu.memory_space<vmem>>, vector<4x256xf32>,
    %c255_i32_216 = arith.constant 255 : i32
    %303 = tpu.dynamic_rotate %252 by %c255_i32_216 dim 1 : vector<4x256xf32>, i32 -> vector<4x256xf32>
    %304 = vector.broadcast %8 : vector<1x256xf32> to vector<4x256xf32>
    %305 = arith.mulf %303, %304 : vector<4x256xf32>
    %c56_217 = arith.constant 56 : index
    %c0_218 = arith.constant 0 : index
    %306 = vector.load %arg10[%c56_217, %c0_218] : memref<72x256xf32, #tpu.memory_space<vmem>>, vector<4x256xf32>
    tpu.vector_store %arg10[%c56_217, %c0_218], %305 {strides = array<i32>} : memref<72x256xf32, #tpu.memory_space<vmem>>, vector<4x256xf32>,
    %c241_i32_219 = arith.constant 241 : i32
    %307 = tpu.dynamic_rotate %252 by %c241_i32_219 dim 1 : vector<4x256xf32>, i32 -> vector<4x256xf32>
    %308 = vector.broadcast %9 : vector<1x256xf32> to vector<4x256xf32>
    %309 = arith.mulf %307, %308 : vector<4x256xf32>
    %c60_220 = arith.constant 60 : index
    %c0_221 = arith.constant 0 : index
    %310 = vector.load %arg10[%c60_220, %c0_221] : memref<72x256xf32, #tpu.memory_space<vmem>>, vector<4x256xf32>
    tpu.vector_store %arg10[%c60_220, %c0_221], %309 {strides = array<i32>} : memref<72x256xf32, #tpu.memory_space<vmem>>, vector<4x256xf32>,
    %c240_i32_222 = arith.constant 240 : i32
    %311 = tpu.dynamic_rotate %252 by %c240_i32_222 dim 1 : vector<4x256xf32>, i32 -> vector<4x256xf32>
    %312 = vector.broadcast %10 : vector<1x256xf32> to vector<4x256xf32>
    %313 = arith.mulf %311, %312 : vector<4x256xf32>
    %c64_223 = arith.constant 64 : index
    %c0_224 = arith.constant 0 : index
    %314 = vector.load %arg10[%c64_223, %c0_224] : memref<72x256xf32, #tpu.memory_space<vmem>>, vector<4x256xf32>
    tpu.vector_store %arg10[%c64_223, %c0_224], %313 {strides = array<i32>} : memref<72x256xf32, #tpu.memory_space<vmem>>, vector<4x256xf32>,
    %c239_i32_225 = arith.constant 239 : i32
    %315 = tpu.dynamic_rotate %252 by %c239_i32_225 dim 1 : vector<4x256xf32>, i32 -> vector<4x256xf32>
    %316 = vector.broadcast %11 : vector<1x256xf32> to vector<4x256xf32>
    %317 = arith.mulf %315, %316 : vector<4x256xf32>
    %c68_226 = arith.constant 68 : index
    %c0_227 = arith.constant 0 : index
    %318 = vector.load %arg10[%c68_226, %c0_227] : memref<72x256xf32, #tpu.memory_space<vmem>>, vector<4x256xf32>
    tpu.vector_store %arg10[%c68_226, %c0_227], %317 {strides = array<i32>} : memref<72x256xf32, #tpu.memory_space<vmem>>, vector<4x256xf32>,
    %c1_228 = arith.constant 1 : index
    %c0_229 = arith.constant 0 : index
    %c0_230 = arith.constant 0 : index
    %319 = vector.load %arg6[%c1_228, %c0_229, %c0_230] : memref<3x8x72xf32, #tpu.memory_space<vmem>>, vector<1x8x72xf32>
    %320 = vector.shape_cast %319 : vector<1x8x72xf32> to vector<8x72xf32>
    %c0_231 = arith.constant 0 : index
    %c0_232 = arith.constant 0 : index
    %321 = vector.load %arg10[%c0_231, %c0_232] : memref<72x256xf32, #tpu.memory_space<vmem>>, vector<72x256xf32>
    %cst_233 = arith.constant dense<0.000000e+00> : vector<8x256xf32>
    %322 = tpu.matmul %320, %321, %cst_233 {dimension_numbers = #tpu.dot_dimension_numbers<[1], [0], [0], [1], [0, 0, 1, 1], [], []>} : vector<8x72xf32>, vector<72x256xf32>, vector<8x256xf32> -> vector<8x256xf32>
    %c1_234 = arith.constant 1 : index
    %c0_235 = arith.constant 0 : index
    %c0_236 = arith.constant 0 : index
    %323 = vector.load %arg7[%c1_234, %c0_235, %c0_236] : memref<3x8x1xf32, #tpu.memory_space<vmem>>, vector<1x8x1xf32>
    %324 = vector.shape_cast %323 : vector<1x8x1xf32> to vector<8x1xf32>
    %325 = vector.broadcast %324 : vector<8x1xf32> to vector<8x256xf32>
    %326 = arith.addf %322, %325 : vector<8x256xf32>
    %327 = vector.extract_strided_slice %326 {offsets = [0, 0], sizes = [4, 256], strides = [1, 1]} : vector<8x256xf32> to vector<4x256xf32>
    %328 = vector.extract_strided_slice %326 {offsets = [4, 0], sizes = [4, 256], strides = [1, 1]} : vector<8x256xf32> to vector<4x256xf32>
    %329 = arith.mulf %327, %328 : vector<4x256xf32>
    %330 = arith.addf %170, %329 : vector<4x256xf32>
    %331 = arith.addf %171, %328 : vector<4x256xf32>
    %c17_i32_237 = arith.constant 17 : i32
    %332 = tpu.dynamic_rotate %330 by %c17_i32_237 dim 1 : vector<4x256xf32>, i32 -> vector<4x256xf32>
    %333 = vector.broadcast %4 : vector<1x256xf32> to vector<4x256xf32>
    %334 = arith.mulf %332, %333 : vector<4x256xf32>
    %c0_238 = arith.constant 0 : index
    %c0_239 = arith.constant 0 : index
    %335 = vector.load %arg10[%c0_238, %c0_239] : memref<72x256xf32, #tpu.memory_space<vmem>>, vector<4x256xf32>
    tpu.vector_store %arg10[%c0_238, %c0_239], %334 {strides = array<i32>} : memref<72x256xf32, #tpu.memory_space<vmem>>, vector<4x256xf32>,
    %c16_i32_240 = arith.constant 16 : i32
    %336 = tpu.dynamic_rotate %330 by %c16_i32_240 dim 1 : vector<4x256xf32>, i32 -> vector<4x256xf32>
    %337 = vector.broadcast %5 : vector<1x256xf32> to vector<4x256xf32>
    %338 = arith.mulf %336, %337 : vector<4x256xf32>
    %c4_241 = arith.constant 4 : index
    %c0_242 = arith.constant 0 : index
    %339 = vector.load %arg10[%c4_241, %c0_242] : memref<72x256xf32, #tpu.memory_space<vmem>>, vector<4x256xf32>
    tpu.vector_store %arg10[%c4_241, %c0_242], %338 {strides = array<i32>} : memref<72x256xf32, #tpu.memory_space<vmem>>, vector<4x256xf32>,
    %c15_i32_243 = arith.constant 15 : i32
    %340 = tpu.dynamic_rotate %330 by %c15_i32_243 dim 1 : vector<4x256xf32>, i32 -> vector<4x256xf32>
    %341 = vector.broadcast %6 : vector<1x256xf32> to vector<4x256xf32>
    %342 = arith.mulf %340, %341 : vector<4x256xf32>
    %c8_244 = arith.constant 8 : index
    %c0_245 = arith.constant 0 : index
    %343 = vector.load %arg10[%c8_244, %c0_245] : memref<72x256xf32, #tpu.memory_space<vmem>>, vector<4x256xf32>
    tpu.vector_store %arg10[%c8_244, %c0_245], %342 {strides = array<i32>} : memref<72x256xf32, #tpu.memory_space<vmem>>, vector<4x256xf32>,
    %c1_i32_246 = arith.constant 1 : i32
    %344 = tpu.dynamic_rotate %330 by %c1_i32_246 dim 1 : vector<4x256xf32>, i32 -> vector<4x256xf32>
    %345 = vector.broadcast %7 : vector<1x256xf32> to vector<4x256xf32>
    %346 = arith.mulf %344, %345 : vector<4x256xf32>
    %c12_247 = arith.constant 12 : index
    %c0_248 = arith.constant 0 : index
    %347 = vector.load %arg10[%c12_247, %c0_248] : memref<72x256xf32, #tpu.memory_space<vmem>>, vector<4x256xf32>
    tpu.vector_store %arg10[%c12_247, %c0_248], %346 {strides = array<i32>} : memref<72x256xf32, #tpu.memory_space<vmem>>, vector<4x256xf32>,
    %c16_249 = arith.constant 16 : index
    %c0_250 = arith.constant 0 : index
    %348 = vector.load %arg10[%c16_249, %c0_250] : memref<72x256xf32, #tpu.memory_space<vmem>>, vector<4x256xf32>
    tpu.vector_store %arg10[%c16_249, %c0_250], %330 {strides = array<i32>} : memref<72x256xf32, #tpu.memory_space<vmem>>, vector<4x256xf32>,
    %c255_i32_251 = arith.constant 255 : i32
    %349 = tpu.dynamic_rotate %330 by %c255_i32_251 dim 1 : vector<4x256xf32>, i32 -> vector<4x256xf32>
    %350 = vector.broadcast %8 : vector<1x256xf32> to vector<4x256xf32>
    %351 = arith.mulf %349, %350 : vector<4x256xf32>
    %c20_252 = arith.constant 20 : index
    %c0_253 = arith.constant 0 : index
    %352 = vector.load %arg10[%c20_252, %c0_253] : memref<72x256xf32, #tpu.memory_space<vmem>>, vector<4x256xf32>
    tpu.vector_store %arg10[%c20_252, %c0_253], %351 {strides = array<i32>} : memref<72x256xf32, #tpu.memory_space<vmem>>, vector<4x256xf32>,
    %c241_i32_254 = arith.constant 241 : i32
    %353 = tpu.dynamic_rotate %330 by %c241_i32_254 dim 1 : vector<4x256xf32>, i32 -> vector<4x256xf32>
    %354 = vector.broadcast %9 : vector<1x256xf32> to vector<4x256xf32>
    %355 = arith.mulf %353, %354 : vector<4x256xf32>
    %c24_255 = arith.constant 24 : index
    %c0_256 = arith.constant 0 : index
    %356 = vector.load %arg10[%c24_255, %c0_256] : memref<72x256xf32, #tpu.memory_space<vmem>>, vector<4x256xf32>
    tpu.vector_store %arg10[%c24_255, %c0_256], %355 {strides = array<i32>} : memref<72x256xf32, #tpu.memory_space<vmem>>, vector<4x256xf32>,
    %c240_i32_257 = arith.constant 240 : i32
    %357 = tpu.dynamic_rotate %330 by %c240_i32_257 dim 1 : vector<4x256xf32>, i32 -> vector<4x256xf32>
    %358 = vector.broadcast %10 : vector<1x256xf32> to vector<4x256xf32>
    %359 = arith.mulf %357, %358 : vector<4x256xf32>
    %c28_258 = arith.constant 28 : index
    %c0_259 = arith.constant 0 : index
    %360 = vector.load %arg10[%c28_258, %c0_259] : memref<72x256xf32, #tpu.memory_space<vmem>>, vector<4x256xf32>
    tpu.vector_store %arg10[%c28_258, %c0_259], %359 {strides = array<i32>} : memref<72x256xf32, #tpu.memory_space<vmem>>, vector<4x256xf32>,
    %c239_i32_260 = arith.constant 239 : i32
    %361 = tpu.dynamic_rotate %330 by %c239_i32_260 dim 1 : vector<4x256xf32>, i32 -> vector<4x256xf32>
    %362 = vector.broadcast %11 : vector<1x256xf32> to vector<4x256xf32>
    %363 = arith.mulf %361, %362 : vector<4x256xf32>
    %c32_261 = arith.constant 32 : index
    %c0_262 = arith.constant 0 : index
    %364 = vector.load %arg10[%c32_261, %c0_262] : memref<72x256xf32, #tpu.memory_space<vmem>>, vector<4x256xf32>
    tpu.vector_store %arg10[%c32_261, %c0_262], %363 {strides = array<i32>} : memref<72x256xf32, #tpu.memory_space<vmem>>, vector<4x256xf32>,
    %c17_i32_263 = arith.constant 17 : i32
    %365 = tpu.dynamic_rotate %331 by %c17_i32_263 dim 1 : vector<4x256xf32>, i32 -> vector<4x256xf32>
    %366 = vector.broadcast %4 : vector<1x256xf32> to vector<4x256xf32>
    %367 = arith.mulf %365, %366 : vector<4x256xf32>
    %c36_264 = arith.constant 36 : index
    %c0_265 = arith.constant 0 : index
    %368 = vector.load %arg10[%c36_264, %c0_265] : memref<72x256xf32, #tpu.memory_space<vmem>>, vector<4x256xf32>
    tpu.vector_store %arg10[%c36_264, %c0_265], %367 {strides = array<i32>} : memref<72x256xf32, #tpu.memory_space<vmem>>, vector<4x256xf32>,
    %c16_i32_266 = arith.constant 16 : i32
    %369 = tpu.dynamic_rotate %331 by %c16_i32_266 dim 1 : vector<4x256xf32>, i32 -> vector<4x256xf32>
    %370 = vector.broadcast %5 : vector<1x256xf32> to vector<4x256xf32>
    %371 = arith.mulf %369, %370 : vector<4x256xf32>
    %c40_267 = arith.constant 40 : index
    %c0_268 = arith.constant 0 : index
    %372 = vector.load %arg10[%c40_267, %c0_268] : memref<72x256xf32, #tpu.memory_space<vmem>>, vector<4x256xf32>
    tpu.vector_store %arg10[%c40_267, %c0_268], %371 {strides = array<i32>} : memref<72x256xf32, #tpu.memory_space<vmem>>, vector<4x256xf32>,
    %c15_i32_269 = arith.constant 15 : i32
    %373 = tpu.dynamic_rotate %331 by %c15_i32_269 dim 1 : vector<4x256xf32>, i32 -> vector<4x256xf32>
    %374 = vector.broadcast %6 : vector<1x256xf32> to vector<4x256xf32>
    %375 = arith.mulf %373, %374 : vector<4x256xf32>
    %c44_270 = arith.constant 44 : index
    %c0_271 = arith.constant 0 : index
    %376 = vector.load %arg10[%c44_270, %c0_271] : memref<72x256xf32, #tpu.memory_space<vmem>>, vector<4x256xf32>
    tpu.vector_store %arg10[%c44_270, %c0_271], %375 {strides = array<i32>} : memref<72x256xf32, #tpu.memory_space<vmem>>, vector<4x256xf32>,
    %c1_i32_272 = arith.constant 1 : i32
    %377 = tpu.dynamic_rotate %331 by %c1_i32_272 dim 1 : vector<4x256xf32>, i32 -> vector<4x256xf32>
    %378 = vector.broadcast %7 : vector<1x256xf32> to vector<4x256xf32>
    %379 = arith.mulf %377, %378 : vector<4x256xf32>
    %c48_273 = arith.constant 48 : index
    %c0_274 = arith.constant 0 : index
    %380 = vector.load %arg10[%c48_273, %c0_274] : memref<72x256xf32, #tpu.memory_space<vmem>>, vector<4x256xf32>
    tpu.vector_store %arg10[%c48_273, %c0_274], %379 {strides = array<i32>} : memref<72x256xf32, #tpu.memory_space<vmem>>, vector<4x256xf32>,
    %c52_275 = arith.constant 52 : index
    %c0_276 = arith.constant 0 : index
    %381 = vector.load %arg10[%c52_275, %c0_276] : memref<72x256xf32, #tpu.memory_space<vmem>>, vector<4x256xf32>
    tpu.vector_store %arg10[%c52_275, %c0_276], %331 {strides = array<i32>} : memref<72x256xf32, #tpu.memory_space<vmem>>, vector<4x256xf32>,
    %c255_i32_277 = arith.constant 255 : i32
    %382 = tpu.dynamic_rotate %331 by %c255_i32_277 dim 1 : vector<4x256xf32>, i32 -> vector<4x256xf32>
    %383 = vector.broadcast %8 : vector<1x256xf32> to vector<4x256xf32>
    %384 = arith.mulf %382, %383 : vector<4x256xf32>
    %c56_278 = arith.constant 56 : index
    %c0_279 = arith.constant 0 : index
    %385 = vector.load %arg10[%c56_278, %c0_279] : memref<72x256xf32, #tpu.memory_space<vmem>>, vector<4x256xf32>
    tpu.vector_store %arg10[%c56_278, %c0_279], %384 {strides = array<i32>} : memref<72x256xf32, #tpu.memory_space<vmem>>, vector<4x256xf32>,
    %c241_i32_280 = arith.constant 241 : i32
    %386 = tpu.dynamic_rotate %331 by %c241_i32_280 dim 1 : vector<4x256xf32>, i32 -> vector<4x256xf32>
    %387 = vector.broadcast %9 : vector<1x256xf32> to vector<4x256xf32>
    %388 = arith.mulf %386, %387 : vector<4x256xf32>
    %c60_281 = arith.constant 60 : index
    %c0_282 = arith.constant 0 : index
    %389 = vector.load %arg10[%c60_281, %c0_282] : memref<72x256xf32, #tpu.memory_space<vmem>>, vector<4x256xf32>
    tpu.vector_store %arg10[%c60_281, %c0_282], %388 {strides = array<i32>} : memref<72x256xf32, #tpu.memory_space<vmem>>, vector<4x256xf32>,
    %c240_i32_283 = arith.constant 240 : i32
    %390 = tpu.dynamic_rotate %331 by %c240_i32_283 dim 1 : vector<4x256xf32>, i32 -> vector<4x256xf32>
    %391 = vector.broadcast %10 : vector<1x256xf32> to vector<4x256xf32>
    %392 = arith.mulf %390, %391 : vector<4x256xf32>
    %c64_284 = arith.constant 64 : index
    %c0_285 = arith.constant 0 : index
    %393 = vector.load %arg10[%c64_284, %c0_285] : memref<72x256xf32, #tpu.memory_space<vmem>>, vector<4x256xf32>
    tpu.vector_store %arg10[%c64_284, %c0_285], %392 {strides = array<i32>} : memref<72x256xf32, #tpu.memory_space<vmem>>, vector<4x256xf32>,
    %c239_i32_286 = arith.constant 239 : i32
    %394 = tpu.dynamic_rotate %331 by %c239_i32_286 dim 1 : vector<4x256xf32>, i32 -> vector<4x256xf32>
    %395 = vector.broadcast %11 : vector<1x256xf32> to vector<4x256xf32>
    %396 = arith.mulf %394, %395 : vector<4x256xf32>
    %c68_287 = arith.constant 68 : index
    %c0_288 = arith.constant 0 : index
    %397 = vector.load %arg10[%c68_287, %c0_288] : memref<72x256xf32, #tpu.memory_space<vmem>>, vector<4x256xf32>
    tpu.vector_store %arg10[%c68_287, %c0_288], %396 {strides = array<i32>} : memref<72x256xf32, #tpu.memory_space<vmem>>, vector<4x256xf32>,
    %c2_289 = arith.constant 2 : index
    %c0_290 = arith.constant 0 : index
    %c0_291 = arith.constant 0 : index
    %398 = vector.load %arg4[%c2_289, %c0_290, %c0_291] : memref<3x8x72xf32, #tpu.memory_space<vmem>>, vector<1x8x72xf32>
    %399 = vector.shape_cast %398 : vector<1x8x72xf32> to vector<8x72xf32>
    %c0_292 = arith.constant 0 : index
    %c0_293 = arith.constant 0 : index
    %400 = vector.load %arg10[%c0_292, %c0_293] : memref<72x256xf32, #tpu.memory_space<vmem>>, vector<72x256xf32>
    %cst_294 = arith.constant dense<0.000000e+00> : vector<8x256xf32>
    %401 = tpu.matmul %399, %400, %cst_294 {dimension_numbers = #tpu.dot_dimension_numbers<[1], [0], [0], [1], [0, 0, 1, 1], [], []>} : vector<8x72xf32>, vector<72x256xf32>, vector<8x256xf32> -> vector<8x256xf32>
    %c2_295 = arith.constant 2 : index
    %c0_296 = arith.constant 0 : index
    %c0_297 = arith.constant 0 : index
    %402 = vector.load %arg5[%c2_295, %c0_296, %c0_297] : memref<3x8x1xf32, #tpu.memory_space<vmem>>, vector<1x8x1xf32>
    %403 = vector.shape_cast %402 : vector<1x8x1xf32> to vector<8x1xf32>
    %404 = vector.broadcast %403 : vector<8x1xf32> to vector<8x256xf32>
    %405 = arith.addf %401, %404 : vector<8x256xf32>
    %cst_298 = arith.constant 0.000000e+00 : f32
    %406 = vector.broadcast %cst_298 : f32 to vector<8x256xf32>
    %407 = arith.cmpf ogt, %405, %406 : vector<8x256xf32>
    %cst_299 = arith.constant 2.000000e-01 : f32
    %408 = vector.broadcast %cst_299 : f32 to vector<8x256xf32>
    %409 = arith.mulf %408, %405 : vector<8x256xf32>
    %410 = arith.select %407, %405, %409 : vector<8x256xi1>, vector<8x256xf32>
    %411 = vector.extract_strided_slice %410 {offsets = [0, 0], sizes = [4, 256], strides = [1, 1]} : vector<8x256xf32> to vector<4x256xf32>
    %412 = vector.extract_strided_slice %410 {offsets = [4, 0], sizes = [4, 256], strides = [1, 1]} : vector<8x256xf32> to vector<4x256xf32>
    %c17_i32_300 = arith.constant 17 : i32
    %413 = tpu.dynamic_rotate %411 by %c17_i32_300 dim 1 : vector<4x256xf32>, i32 -> vector<4x256xf32>
    %414 = vector.broadcast %4 : vector<1x256xf32> to vector<4x256xf32>
    %415 = arith.mulf %413, %414 : vector<4x256xf32>
    %c0_301 = arith.constant 0 : index
    %c0_302 = arith.constant 0 : index
    %416 = vector.load %arg10[%c0_301, %c0_302] : memref<72x256xf32, #tpu.memory_space<vmem>>, vector<4x256xf32>
    tpu.vector_store %arg10[%c0_301, %c0_302], %415 {strides = array<i32>} : memref<72x256xf32, #tpu.memory_space<vmem>>, vector<4x256xf32>,
    %c16_i32_303 = arith.constant 16 : i32
    %417 = tpu.dynamic_rotate %411 by %c16_i32_303 dim 1 : vector<4x256xf32>, i32 -> vector<4x256xf32>
    %418 = vector.broadcast %5 : vector<1x256xf32> to vector<4x256xf32>
    %419 = arith.mulf %417, %418 : vector<4x256xf32>
    %c4_304 = arith.constant 4 : index
    %c0_305 = arith.constant 0 : index
    %420 = vector.load %arg10[%c4_304, %c0_305] : memref<72x256xf32, #tpu.memory_space<vmem>>, vector<4x256xf32>
    tpu.vector_store %arg10[%c4_304, %c0_305], %419 {strides = array<i32>} : memref<72x256xf32, #tpu.memory_space<vmem>>, vector<4x256xf32>,
    %c15_i32_306 = arith.constant 15 : i32
    %421 = tpu.dynamic_rotate %411 by %c15_i32_306 dim 1 : vector<4x256xf32>, i32 -> vector<4x256xf32>
    %422 = vector.broadcast %6 : vector<1x256xf32> to vector<4x256xf32>
    %423 = arith.mulf %421, %422 : vector<4x256xf32>
    %c8_307 = arith.constant 8 : index
    %c0_308 = arith.constant 0 : index
    %424 = vector.load %arg10[%c8_307, %c0_308] : memref<72x256xf32, #tpu.memory_space<vmem>>, vector<4x256xf32>
    tpu.vector_store %arg10[%c8_307, %c0_308], %423 {strides = array<i32>} : memref<72x256xf32, #tpu.memory_space<vmem>>, vector<4x256xf32>,
    %c1_i32_309 = arith.constant 1 : i32
    %425 = tpu.dynamic_rotate %411 by %c1_i32_309 dim 1 : vector<4x256xf32>, i32 -> vector<4x256xf32>
    %426 = vector.broadcast %7 : vector<1x256xf32> to vector<4x256xf32>
    %427 = arith.mulf %425, %426 : vector<4x256xf32>
    %c12_310 = arith.constant 12 : index
    %c0_311 = arith.constant 0 : index
    %428 = vector.load %arg10[%c12_310, %c0_311] : memref<72x256xf32, #tpu.memory_space<vmem>>, vector<4x256xf32>
    tpu.vector_store %arg10[%c12_310, %c0_311], %427 {strides = array<i32>} : memref<72x256xf32, #tpu.memory_space<vmem>>, vector<4x256xf32>,
    %c16_312 = arith.constant 16 : index
    %c0_313 = arith.constant 0 : index
    %429 = vector.load %arg10[%c16_312, %c0_313] : memref<72x256xf32, #tpu.memory_space<vmem>>, vector<4x256xf32>
    tpu.vector_store %arg10[%c16_312, %c0_313], %411 {strides = array<i32>} : memref<72x256xf32, #tpu.memory_space<vmem>>, vector<4x256xf32>,
    %c255_i32_314 = arith.constant 255 : i32
    %430 = tpu.dynamic_rotate %411 by %c255_i32_314 dim 1 : vector<4x256xf32>, i32 -> vector<4x256xf32>
    %431 = vector.broadcast %8 : vector<1x256xf32> to vector<4x256xf32>
    %432 = arith.mulf %430, %431 : vector<4x256xf32>
    %c20_315 = arith.constant 20 : index
    %c0_316 = arith.constant 0 : index
    %433 = vector.load %arg10[%c20_315, %c0_316] : memref<72x256xf32, #tpu.memory_space<vmem>>, vector<4x256xf32>
    tpu.vector_store %arg10[%c20_315, %c0_316], %432 {strides = array<i32>} : memref<72x256xf32, #tpu.memory_space<vmem>>, vector<4x256xf32>,
    %c241_i32_317 = arith.constant 241 : i32
    %434 = tpu.dynamic_rotate %411 by %c241_i32_317 dim 1 : vector<4x256xf32>, i32 -> vector<4x256xf32>
    %435 = vector.broadcast %9 : vector<1x256xf32> to vector<4x256xf32>
    %436 = arith.mulf %434, %435 : vector<4x256xf32>
    %c24_318 = arith.constant 24 : index
    %c0_319 = arith.constant 0 : index
    %437 = vector.load %arg10[%c24_318, %c0_319] : memref<72x256xf32, #tpu.memory_space<vmem>>, vector<4x256xf32>
    tpu.vector_store %arg10[%c24_318, %c0_319], %436 {strides = array<i32>} : memref<72x256xf32, #tpu.memory_space<vmem>>, vector<4x256xf32>,
    %c240_i32_320 = arith.constant 240 : i32
    %438 = tpu.dynamic_rotate %411 by %c240_i32_320 dim 1 : vector<4x256xf32>, i32 -> vector<4x256xf32>
    %439 = vector.broadcast %10 : vector<1x256xf32> to vector<4x256xf32>
    %440 = arith.mulf %438, %439 : vector<4x256xf32>
    %c28_321 = arith.constant 28 : index
    %c0_322 = arith.constant 0 : index
    %441 = vector.load %arg10[%c28_321, %c0_322] : memref<72x256xf32, #tpu.memory_space<vmem>>, vector<4x256xf32>
    tpu.vector_store %arg10[%c28_321, %c0_322], %440 {strides = array<i32>} : memref<72x256xf32, #tpu.memory_space<vmem>>, vector<4x256xf32>,
    %c239_i32_323 = arith.constant 239 : i32
    %442 = tpu.dynamic_rotate %411 by %c239_i32_323 dim 1 : vector<4x256xf32>, i32 -> vector<4x256xf32>
    %443 = vector.broadcast %11 : vector<1x256xf32> to vector<4x256xf32>
    %444 = arith.mulf %442, %443 : vector<4x256xf32>
    %c32_324 = arith.constant 32 : index
    %c0_325 = arith.constant 0 : index
    %445 = vector.load %arg10[%c32_324, %c0_325] : memref<72x256xf32, #tpu.memory_space<vmem>>, vector<4x256xf32>
    tpu.vector_store %arg10[%c32_324, %c0_325], %444 {strides = array<i32>} : memref<72x256xf32, #tpu.memory_space<vmem>>, vector<4x256xf32>,
    %c17_i32_326 = arith.constant 17 : i32
    %446 = tpu.dynamic_rotate %412 by %c17_i32_326 dim 1 : vector<4x256xf32>, i32 -> vector<4x256xf32>
    %447 = vector.broadcast %4 : vector<1x256xf32> to vector<4x256xf32>
    %448 = arith.mulf %446, %447 : vector<4x256xf32>
    %c36_327 = arith.constant 36 : index
    %c0_328 = arith.constant 0 : index
    %449 = vector.load %arg10[%c36_327, %c0_328] : memref<72x256xf32, #tpu.memory_space<vmem>>, vector<4x256xf32>
    tpu.vector_store %arg10[%c36_327, %c0_328], %448 {strides = array<i32>} : memref<72x256xf32, #tpu.memory_space<vmem>>, vector<4x256xf32>,
    %c16_i32_329 = arith.constant 16 : i32
    %450 = tpu.dynamic_rotate %412 by %c16_i32_329 dim 1 : vector<4x256xf32>, i32 -> vector<4x256xf32>
    %451 = vector.broadcast %5 : vector<1x256xf32> to vector<4x256xf32>
    %452 = arith.mulf %450, %451 : vector<4x256xf32>
    %c40_330 = arith.constant 40 : index
    %c0_331 = arith.constant 0 : index
    %453 = vector.load %arg10[%c40_330, %c0_331] : memref<72x256xf32, #tpu.memory_space<vmem>>, vector<4x256xf32>
    tpu.vector_store %arg10[%c40_330, %c0_331], %452 {strides = array<i32>} : memref<72x256xf32, #tpu.memory_space<vmem>>, vector<4x256xf32>,
    %c15_i32_332 = arith.constant 15 : i32
    %454 = tpu.dynamic_rotate %412 by %c15_i32_332 dim 1 : vector<4x256xf32>, i32 -> vector<4x256xf32>
    %455 = vector.broadcast %6 : vector<1x256xf32> to vector<4x256xf32>
    %456 = arith.mulf %454, %455 : vector<4x256xf32>
    %c44_333 = arith.constant 44 : index
    %c0_334 = arith.constant 0 : index
    %457 = vector.load %arg10[%c44_333, %c0_334] : memref<72x256xf32, #tpu.memory_space<vmem>>, vector<4x256xf32>
    tpu.vector_store %arg10[%c44_333, %c0_334], %456 {strides = array<i32>} : memref<72x256xf32, #tpu.memory_space<vmem>>, vector<4x256xf32>,
    %c1_i32_335 = arith.constant 1 : i32
    %458 = tpu.dynamic_rotate %412 by %c1_i32_335 dim 1 : vector<4x256xf32>, i32 -> vector<4x256xf32>
    %459 = vector.broadcast %7 : vector<1x256xf32> to vector<4x256xf32>
    %460 = arith.mulf %458, %459 : vector<4x256xf32>
    %c48_336 = arith.constant 48 : index
    %c0_337 = arith.constant 0 : index
    %461 = vector.load %arg10[%c48_336, %c0_337] : memref<72x256xf32, #tpu.memory_space<vmem>>, vector<4x256xf32>
    tpu.vector_store %arg10[%c48_336, %c0_337], %460 {strides = array<i32>} : memref<72x256xf32, #tpu.memory_space<vmem>>, vector<4x256xf32>,
    %c52_338 = arith.constant 52 : index
    %c0_339 = arith.constant 0 : index
    %462 = vector.load %arg10[%c52_338, %c0_339] : memref<72x256xf32, #tpu.memory_space<vmem>>, vector<4x256xf32>
    tpu.vector_store %arg10[%c52_338, %c0_339], %412 {strides = array<i32>} : memref<72x256xf32, #tpu.memory_space<vmem>>, vector<4x256xf32>,
    %c255_i32_340 = arith.constant 255 : i32
    %463 = tpu.dynamic_rotate %412 by %c255_i32_340 dim 1 : vector<4x256xf32>, i32 -> vector<4x256xf32>
    %464 = vector.broadcast %8 : vector<1x256xf32> to vector<4x256xf32>
    %465 = arith.mulf %463, %464 : vector<4x256xf32>
    %c56_341 = arith.constant 56 : index
    %c0_342 = arith.constant 0 : index
    %466 = vector.load %arg10[%c56_341, %c0_342] : memref<72x256xf32, #tpu.memory_space<vmem>>, vector<4x256xf32>
    tpu.vector_store %arg10[%c56_341, %c0_342], %465 {strides = array<i32>} : memref<72x256xf32, #tpu.memory_space<vmem>>, vector<4x256xf32>,
    %c241_i32_343 = arith.constant 241 : i32
    %467 = tpu.dynamic_rotate %412 by %c241_i32_343 dim 1 : vector<4x256xf32>, i32 -> vector<4x256xf32>
    %468 = vector.broadcast %9 : vector<1x256xf32> to vector<4x256xf32>
    %469 = arith.mulf %467, %468 : vector<4x256xf32>
    %c60_344 = arith.constant 60 : index
    %c0_345 = arith.constant 0 : index
    %470 = vector.load %arg10[%c60_344, %c0_345] : memref<72x256xf32, #tpu.memory_space<vmem>>, vector<4x256xf32>
    tpu.vector_store %arg10[%c60_344, %c0_345], %469 {strides = array<i32>} : memref<72x256xf32, #tpu.memory_space<vmem>>, vector<4x256xf32>,
    %c240_i32_346 = arith.constant 240 : i32
    %471 = tpu.dynamic_rotate %412 by %c240_i32_346 dim 1 : vector<4x256xf32>, i32 -> vector<4x256xf32>
    %472 = vector.broadcast %10 : vector<1x256xf32> to vector<4x256xf32>
    %473 = arith.mulf %471, %472 : vector<4x256xf32>
    %c64_347 = arith.constant 64 : index
    %c0_348 = arith.constant 0 : index
    %474 = vector.load %arg10[%c64_347, %c0_348] : memref<72x256xf32, #tpu.memory_space<vmem>>, vector<4x256xf32>
    tpu.vector_store %arg10[%c64_347, %c0_348], %473 {strides = array<i32>} : memref<72x256xf32, #tpu.memory_space<vmem>>, vector<4x256xf32>,
    %c239_i32_349 = arith.constant 239 : i32
    %475 = tpu.dynamic_rotate %412 by %c239_i32_349 dim 1 : vector<4x256xf32>, i32 -> vector<4x256xf32>
    %476 = vector.broadcast %11 : vector<1x256xf32> to vector<4x256xf32>
    %477 = arith.mulf %475, %476 : vector<4x256xf32>
    %c68_350 = arith.constant 68 : index
    %c0_351 = arith.constant 0 : index
    %478 = vector.load %arg10[%c68_350, %c0_351] : memref<72x256xf32, #tpu.memory_space<vmem>>, vector<4x256xf32>
    tpu.vector_store %arg10[%c68_350, %c0_351], %477 {strides = array<i32>} : memref<72x256xf32, #tpu.memory_space<vmem>>, vector<4x256xf32>,
    %c2_352 = arith.constant 2 : index
    %c0_353 = arith.constant 0 : index
    %c0_354 = arith.constant 0 : index
    %479 = vector.load %arg6[%c2_352, %c0_353, %c0_354] : memref<3x8x72xf32, #tpu.memory_space<vmem>>, vector<1x8x72xf32>
    %480 = vector.shape_cast %479 : vector<1x8x72xf32> to vector<8x72xf32>
    %c0_355 = arith.constant 0 : index
    %c0_356 = arith.constant 0 : index
    %481 = vector.load %arg10[%c0_355, %c0_356] : memref<72x256xf32, #tpu.memory_space<vmem>>, vector<72x256xf32>
    %cst_357 = arith.constant dense<0.000000e+00> : vector<8x256xf32>
    %482 = tpu.matmul %480, %481, %cst_357 {dimension_numbers = #tpu.dot_dimension_numbers<[1], [0], [0], [1], [0, 0, 1, 1], [], []>} : vector<8x72xf32>, vector<72x256xf32>, vector<8x256xf32> -> vector<8x256xf32>
    %c2_358 = arith.constant 2 : index
    %c0_359 = arith.constant 0 : index
    %c0_360 = arith.constant 0 : index
    %483 = vector.load %arg7[%c2_358, %c0_359, %c0_360] : memref<3x8x1xf32, #tpu.memory_space<vmem>>, vector<1x8x1xf32>
    %484 = vector.shape_cast %483 : vector<1x8x1xf32> to vector<8x1xf32>
    %485 = vector.broadcast %484 : vector<8x1xf32> to vector<8x256xf32>
    %486 = arith.addf %482, %485 : vector<8x256xf32>
    %487 = vector.extract_strided_slice %486 {offsets = [0, 0], sizes = [4, 256], strides = [1, 1]} : vector<8x256xf32> to vector<4x256xf32>
    %488 = vector.extract_strided_slice %486 {offsets = [4, 0], sizes = [4, 256], strides = [1, 1]} : vector<8x256xf32> to vector<4x256xf32>
    %489 = arith.mulf %487, %488 : vector<4x256xf32>
    %490 = arith.addf %330, %489 : vector<4x256xf32>
    %491 = arith.addf %331, %488 : vector<4x256xf32>
    %492 = arith.addf %1, %490 : vector<4x256xf32>
    %c0_361 = arith.constant 0 : index
    %c0_362 = arith.constant 0 : index
    %c0_363 = arith.constant 0 : index
    %493 = vector.load %arg8[%c0_361, %c0_362, %c0_363] : memref<1x4x256xf32, #tpu.memory_space<vmem>>, vector<1x4x256xf32>
    %494 = vector.shape_cast %493 : vector<1x4x256xf32> to vector<4x256xf32>
    %495 = vector.shape_cast %492 : vector<4x256xf32> to vector<1x4x256xf32>
    tpu.vector_store %arg8[%c0_361, %c0_362, %c0_363], %495 {strides = array<i32>} : memref<1x4x256xf32, #tpu.memory_space<vmem>>, vector<1x4x256xf32>,
    %496 = arith.addf %3, %491 : vector<4x256xf32>
    %c0_364 = arith.constant 0 : index
    %c0_365 = arith.constant 0 : index
    %c0_366 = arith.constant 0 : index
    %497 = vector.load %arg9[%c0_364, %c0_365, %c0_366] : memref<1x4x256xf32, #tpu.memory_space<vmem>>, vector<1x4x256xf32>
    %498 = vector.shape_cast %497 : vector<1x4x256xf32> to vector<4x256xf32>
    %499 = vector.shape_cast %496 : vector<4x256xf32> to vector<1x4x256xf32>
    tpu.vector_store %arg9[%c0_364, %c0_365, %c0_366], %499 {strides = array<i32>} : memref<1x4x256xf32, #tpu.memory_space<vmem>>, vector<1x4x256xf32>,
    return
  }
  func.func @transform_0(%arg0: i32) -> (i32, i32) {
    %c0_i32 = arith.constant 0 : i32
    %c0_i32_0 = arith.constant 0 : i32
    %c0_i32_1 = arith.constant 0 : i32
    return %c0_i32, %c0_i32_0 : i32, i32
  }
  func.func @transform_1(%arg0: i32) -> (i32, i32, i32) {
    %c0_i32 = arith.constant 0 : i32
    %c0_i32_0 = arith.constant 0 : i32
    %c0_i32_1 = arith.constant 0 : i32
    return %arg0, %c0_i32, %c0_i32_0 : i32, i32, i32
  }
  func.func @transform_2(%arg0: i32) -> (i32, i32, i32) {
    %c0_i32 = arith.constant 0 : i32
    %c0_i32_0 = arith.constant 0 : i32
    %c0_i32_1 = arith.constant 0 : i32
    return %arg0, %c0_i32, %c0_i32_0 : i32, i32, i32
  }
  func.func @transform_3(%arg0: i32) -> (i32, i32, i32) {
    %c0_i32 = arith.constant 0 : i32
    %c0_i32_0 = arith.constant 0 : i32
    %c0_i32_1 = arith.constant 0 : i32
    %c0_i32_2 = arith.constant 0 : i32
    return %c0_i32, %c0_i32_0, %c0_i32_1 : i32, i32, i32
  }
  func.func @transform_4(%arg0: i32) -> (i32, i32, i32) {
    %c0_i32 = arith.constant 0 : i32
    %c0_i32_0 = arith.constant 0 : i32
    %c0_i32_1 = arith.constant 0 : i32
    %c0_i32_2 = arith.constant 0 : i32
    return %c0_i32, %c0_i32_0, %c0_i32_1 : i32, i32, i32
  }
  func.func @transform_5(%arg0: i32) -> (i32, i32, i32) {
    %c0_i32 = arith.constant 0 : i32
    %c0_i32_0 = arith.constant 0 : i32
    %c0_i32_1 = arith.constant 0 : i32
    %c0_i32_2 = arith.constant 0 : i32
    return %c0_i32, %c0_i32_0, %c0_i32_1 : i32, i32, i32
  }
  func.func @transform_6(%arg0: i32) -> (i32, i32, i32) {
    %c0_i32 = arith.constant 0 : i32
    %c0_i32_0 = arith.constant 0 : i32
    %c0_i32_1 = arith.constant 0 : i32
    %c0_i32_2 = arith.constant 0 : i32
    return %c0_i32, %c0_i32_0, %c0_i32_1 : i32, i32, i32
  }
  func.func @transform_7(%arg0: i32) -> (i32, i32, i32) {
    %c0_i32 = arith.constant 0 : i32
    %c0_i32_0 = arith.constant 0 : i32
    %c0_i32_1 = arith.constant 0 : i32
    return %arg0, %c0_i32, %c0_i32_0 : i32, i32, i32
  }
  func.func @transform_8(%arg0: i32) -> (i32, i32, i32) {
    %c0_i32 = arith.constant 0 : i32
    %c0_i32_0 = arith.constant 0 : i32
    %c0_i32_1 = arith.constant 0 : i32
    return %arg0, %c0_i32, %c0_i32_0 : i32, i32, i32
  }
}

</mosaic_0001>

<llo_original>
// kernel: dpcg_forward.1
$region0: #{dpcg_forward.1}
  #allocation0 [shape = 'u32[]', space=smem, size = 0x4, offset = 0x4, fixed_abs, tag = 'smem constant byte address 0x4 - core index']
  #allocation1 [shape = 'u32[144,128]{1,0:T(1,128)}', space=vmem, size = 0x12000, scoped, tag = 'internal scratch']
  #allocation2 [shape = 'f32[72,256]{1,0:T(8,128)}', space=vmem, size = 0x12000, scoped, tag = 'scratch operand']
  %s0 = inlined_call_operand.vmem [shape: f32[9,256], index: 0, kind: input, shape index: {}]
  %s1 = inlined_call_operand.vmem [shape: f32[2,4,256], index: 1, kind: input, shape index: {}]
  %s2 = inlined_call_operand.vmem [shape: f32[2,4,256], index: 2, kind: input, shape index: {}]
  %s3 = inlined_call_operand.vmem [shape: f32[3,8,72], index: 3, kind: input, shape index: {}]
  %s4 = inlined_call_operand.vmem [shape: f32[3,8,1], index: 4, kind: input, shape index: {}]
  %s5 = inlined_call_operand.vmem [shape: f32[3,8,72], index: 5, kind: input, shape index: {}]
  %s6 = inlined_call_operand.vmem [shape: f32[3,8,1], index: 6, kind: input, shape index: {}]
  %s7 = inlined_call_operand.vmem [shape: f32[2,4,256], index: 7, kind: output, shape index: {0}]
  %s8 = inlined_call_operand.vmem [shape: f32[2,4,256], index: 8, kind: output, shape index: {1}]
  %9 = xla_tuple %s7, %s8
  %s10 = sld [smem:[#allocation0]]
  $region69: #{dpcg_forward.1} parent=0
    _
  %s12 = ssub.s32 1, %s10
  %s13 = scalar_select 0, %s12, %s10
  loop: start=0, step=1, limit=4
  $region2: #{dpcg_forward.1} parent=0 // loop_pre_header
    _
  $region3: #{dpcg_forward.1} parent=0 // loop_header
    %s15 = sphi 0, %s19
    %p16 = scmp.ge.s32.totalorder %s15, 4
    %s23 = sphi 0, %s23
    %s25 = sphi 0, %s23
    %s26 = sphi 0, %s25
    %s40 = sphi 0, %s26
    %s46 = sphi 0, %s48
    %s49 = sphi 0, %s46
    %s50 = sphi 0, %s49
    %s66 = sphi 0, %s50
    %s72 = sphi 0, %s74
    %s75 = sphi 0, %s72
    %s76 = sphi 0, %s75
    %s92 = sphi 0, %s76
    %s96 = sphi 0, %s96
    %s98 = sphi 0, %s96
    %s99 = sphi 0, %s98
    %s113 = sphi 0, %s99
    %s117 = sphi 0, %s117
    %s119 = sphi 0, %s117
    %s120 = sphi 0, %s119
    %s134 = sphi 0, %s120
    %s138 = sphi 0, %s138
    %s140 = sphi 0, %s138
    %s141 = sphi 0, %s140
    %s155 = sphi 0, %s141
    %s159 = sphi 0, %s159
    %s161 = sphi 0, %s159
    %s162 = sphi 0, %s161
    %s176 = sphi 0, %s162
    %s182 = sphi 0, %s184
    %s185 = sphi 0, %s182
    %s186 = sphi 0, %s185
    %s202 = sphi 0, %s186
    %s208 = sphi 0, %s210
    %s211 = sphi 0, %s208
    %s212 = sphi 0, %s211
    %s228 = sphi 0, %s212
  $region4: #{dpcg_forward.1} parent=0 // loop_header_branch
    %18 = sbr.rel (%p16) target = $region8
  $region5: #{dpcg_forward.1} parent=0 // loop_body
    %s20 = ssub.s32 %s15, 1
    %s21 = ssub.s32 %s15, 2
    %s22 = sadd.s32 %s15, 1
    %s24 = sadd.s32 %s23, 1
    %p27 = scmp.eq.s32.totalorder %s15, 1
    %p28 = scmp.ne.s32.totalorder %s23, %s25
    %p29 = scmp.eq.s32.totalorder %s15, 0
    %p30 = por %p28, %p29
    %p31 = scmp.ne.s32.totalorder %s23, %s25
    %p32 = scmp.eq.s32.totalorder %s20, 1
    %p33 = por %p31, %p32
    %p34 = scmp.ne.s32.totalorder %s25, %s26
    %p35 = scmp.eq.s32.totalorder %s20, 0
    %p36 = por %p34, %p35
    %p37 = scmp.ne.s32.totalorder %s25, %s26
    %p38 = scmp.eq.s32.totalorder %s21, 1
    %p39 = por %p37, %p38
    %p41 = scmp.ne.s32.totalorder %s26, %s40
    %p42 = scmp.eq.s32.totalorder %s21, 0
    %p43 = por %p41, %p42
    %s44 = ssub.s32 %s15, %s22
    %p45 = scmp.eq.s32.totalorder %s44, 0
    %s47 = sadd.s32 %s46, 1
    %s48 = scalar_select %p45, %s46, %s47
    %p51 = pneg %p45
    %p52 = scmp.eq.s32.totalorder %s15, 1
    %p53 = por %p51, %p52
    %p54 = scmp.ne.s32.totalorder %s46, %s49
    %p55 = scmp.eq.s32.totalorder %s15, 0
    %p56 = por %p54, %p55
    %p57 = scmp.ne.s32.totalorder %s46, %s49
    %p58 = scmp.eq.s32.totalorder %s20, 1
    %p59 = por %p57, %p58
    %p60 = scmp.ne.s32.totalorder %s49, %s50
    %p61 = scmp.eq.s32.totalorder %s20, 0
    %p62 = por %p60, %p61
    %p63 = scmp.ne.s32.totalorder %s49, %s50
    %p64 = scmp.eq.s32.totalorder %s21, 1
    %p65 = por %p63, %p64
    %p67 = scmp.ne.s32.totalorder %s50, %s66
    %p68 = scmp.eq.s32.totalorder %s21, 0
    %p69 = por %p67, %p68
    %s70 = ssub.s32 %s15, %s22
    %p71 = scmp.eq.s32.totalorder %s70, 0
    %s73 = sadd.s32 %s72, 1
    %s74 = scalar_select %p71, %s72, %s73
    %p77 = pneg %p71
    %p78 = scmp.eq.s32.totalorder %s15, 1
    %p79 = por %p77, %p78
    %p80 = scmp.ne.s32.totalorder %s72, %s75
    %p81 = scmp.eq.s32.totalorder %s15, 0
    %p82 = por %p80, %p81
    %p83 = scmp.ne.s32.totalorder %s72, %s75
    %p84 = scmp.eq.s32.totalorder %s20, 1
    %p85 = por %p83, %p84
    %p86 = scmp.ne.s32.totalorder %s75, %s76
    %p87 = scmp.eq.s32.totalorder %s20, 0
    %p88 = por %p86, %p87
    %p89 = scmp.ne.s32.totalorder %s75, %s76
    %p90 = scmp.eq.s32.totalorder %s21, 1
    %p91 = por %p89, %p90
    %p93 = scmp.ne.s32.totalorder %s76, %s92
    %p94 = scmp.eq.s32.totalorder %s21, 0
    %p95 = por %p93, %p94
    %s97 = sadd.s32 %s96, 1
    %p100 = scmp.eq.s32.totalorder %s15, 1
    %p101 = scmp.ne.s32.totalorder %s96, %s98
    %p102 = scmp.eq.s32.totalorder %s15, 0
    %p103 = por %p101, %p102
    %p104 = scmp.ne.s32.totalorder %s96, %s98
    %p105 = scmp.eq.s32.totalorder %s20, 1
    %p106 = por %p104, %p105
    %p107 = scmp.ne.s32.totalorder %s98, %s99
    %p108 = scmp.eq.s32.totalorder %s20, 0
    %p109 = por %p107, %p108
    %p110 = scmp.ne.s32.totalorder %s98, %s99
    %p111 = scmp.eq.s32.totalorder %s21, 1
    %p112 = por %p110, %p111
    %p114 = scmp.ne.s32.totalorder %s99, %s113
    %p115 = scmp.eq.s32.totalorder %s21, 0
    %p116 = por %p114, %p115
    %s118 = sadd.s32 %s117, 1
    %p121 = scmp.eq.s32.totalorder %s15, 1
    %p122 = scmp.ne.s32.totalorder %s117, %s119
    %p123 = scmp.eq.s32.totalorder %s15, 0
    %p124 = por %p122, %p123
    %p125 = scmp.ne.s32.totalorder %s117, %s119
    %p126 = scmp.eq.s32.totalorder %s20, 1
    %p127 = por %p125, %p126
    %p128 = scmp.ne.s32.totalorder %s119, %s120
    %p129 = scmp.eq.s32.totalorder %s20, 0
    %p130 = por %p128, %p129
    %p131 = scmp.ne.s32.totalorder %s119, %s120
    %p132 = scmp.eq.s32.totalorder %s21, 1
    %p133 = por %p131, %p132
    %p135 = scmp.ne.s32.totalorder %s120, %s134
    %p136 = scmp.eq.s32.totalorder %s21, 0
    %p137 = por %p135, %p136
    %s139 = sadd.s32 %s138, 1
    %p142 = scmp.eq.s32.totalorder %s15, 1
    %p143 = scmp.ne.s32.totalorder %s138, %s140
    %p144 = scmp.eq.s32.totalorder %s15, 0
    %p145 = por %p143, %p144
    %p146 = scmp.ne.s32.totalorder %s138, %s140
    %p147 = scmp.eq.s32.totalorder %s20, 1
    %p148 = por %p146, %p147
    %p149 = scmp.ne.s32.totalorder %s140, %s141
    %p150 = scmp.eq.s32.totalorder %s20, 0
    %p151 = por %p149, %p150
    %p152 = scmp.ne.s32.totalorder %s140, %s141
    %p153 = scmp.eq.s32.totalorder %s21, 1
    %p154 = por %p152, %p153
    %p156 = scmp.ne.s32.totalorder %s141, %s155
    %p157 = scmp.eq.s32.totalorder %s21, 0
    %p158 = por %p156, %p157
    %s160 = sadd.s32 %s159, 1
    %p163 = scmp.eq.s32.totalorder %s15, 1
    %p164 = scmp.ne.s32.totalorder %s159, %s161
    %p165 = scmp.eq.s32.totalorder %s15, 0
    %p166 = por %p164, %p165
    %p167 = scmp.ne.s32.totalorder %s159, %s161
    %p168 = scmp.eq.s32.totalorder %s20, 1
    %p169 = por %p167, %p168
    %p170 = scmp.ne.s32.totalorder %s161, %s162
    %p171 = scmp.eq.s32.totalorder %s20, 0
    %p172 = por %p170, %p171
    %p173 = scmp.ne.s32.totalorder %s161, %s162
    %p174 = scmp.eq.s32.totalorder %s21, 1
    %p175 = por %p173, %p174
    %p177 = scmp.ne.s32.totalorder %s162, %s176
    %p178 = scmp.eq.s32.totalorder %s21, 0
    %p179 = por %p177, %p178
    %s180 = ssub.s32 %s15, %s22
    %p181 = scmp.eq.s32.totalorder %s180, 0
    %s183 = sadd.s32 %s182, 1
    %s184 = scalar_select %p181, %s182, %s183
    %p187 = pneg %p181
    %p188 = scmp.eq.s32.totalorder %s15, 1
    %p189 = por %p187, %p188
    %p190 = scmp.ne.s32.totalorder %s182, %s185
    %p191 = scmp.eq.s32.totalorder %s15, 0
    %p192 = por %p190, %p191
    %p193 = scmp.ne.s32.totalorder %s182, %s185
    %p194 = scmp.eq.s32.totalorder %s20, 1
    %p195 = por %p193, %p194
    %p196 = scmp.ne.s32.totalorder %s185, %s186
    %p197 = scmp.eq.s32.totalorder %s20, 0
    %p198 = por %p196, %p197
    %p199 = scmp.ne.s32.totalorder %s185, %s186
    %p200 = scmp.eq.s32.totalorder %s21, 1
    %p201 = por %p199, %p200
    %p203 = scmp.ne.s32.totalorder %s186, %s202
    %p204 = scmp.eq.s32.totalorder %s21, 0
    %p205 = por %p203, %p204
    %s206 = ssub.s32 %s15, %s22
    %p207 = scmp.eq.s32.totalorder %s206, 0
    %s209 = sadd.s32 %s208, 1
    %s210 = scalar_select %p207, %s208, %s209
    %p213 = pneg %p207
    %p214 = scmp.eq.s32.totalorder %s15, 1
    %p215 = por %p213, %p214
    %p216 = scmp.ne.s32.totalorder %s208, %s211
    %p217 = scmp.eq.s32.totalorder %s15, 0
    %p218 = por %p216, %p217
    %p219 = scmp.ne.s32.totalorder %s208, %s211
    %p220 = scmp.eq.s32.totalorder %s20, 1
    %p221 = por %p219, %p220
    %p222 = scmp.ne.s32.totalorder %s211, %s212
    %p223 = scmp.eq.s32.totalorder %s20, 0
    %p224 = por %p222, %p223
    %p225 = scmp.ne.s32.totalorder %s211, %s212
    %p226 = scmp.eq.s32.totalorder %s21, 1
    %p227 = por %p225, %p226
    %p229 = scmp.ne.s32.totalorder %s212, %s228
    %p230 = scmp.eq.s32.totalorder %s21, 0
    %p231 = por %p229, %p230
    %p232 = scmp.le.s32.totalorder 1, %s15
    %p233 = scmp.lt.s32.totalorder %s15, 3
    %p234 = pnand %p232, %p233
    %p235 = pneg %p234
    // Predicated region
    $region9: #{dpcg_forward.1} parent=5 // pred_check
      _
    $region10: #{dpcg_forward.1} parent=5 // pred_check_branch
      %237 = sbr.rel (%p234) target = $region12
    $region11: #{dpcg_forward.1} parent=5 // pred_region
      %s238 = ssub.s32 %s15, 1
      // Predicated region
      $region13: #{dpcg_forward.1} parent=11 // pred_check
        %p239 = pneg %p36
      $region14: #{dpcg_forward.1} parent=11 // pred_check_branch
        %241 = sbr.rel (%p239) target = $region16
      $region15: #{dpcg_forward.1} parent=11 // pred_region
        _
      $region16: #{dpcg_forward.1} parent=11 // pred_fallthru
        _
      // Predicated region
      $region17: #{dpcg_forward.1} parent=11 // pred_check
        %p242 = pneg %p109
      $region18: #{dpcg_forward.1} parent=11 // pred_check_branch
        %244 = sbr.rel (%p242) target = $region20
      $region19: #{dpcg_forward.1} parent=11 // pred_region
        _
      $region20: #{dpcg_forward.1} parent=11 // pred_fallthru
        _
      // Predicated region
      $region21: #{dpcg_forward.1} parent=11 // pred_check
        %p245 = pneg %p130
      $region22: #{dpcg_forward.1} parent=11 // pred_check_branch
        %247 = sbr.rel (%p245) target = $region24
      $region23: #{dpcg_forward.1} parent=11 // pred_region
        _
      $region24: #{dpcg_forward.1} parent=11 // pred_fallthru
        _
      // Predicated region
      $region25: #{dpcg_forward.1} parent=11 // pred_check
        %p248 = pneg %p151
      $region26: #{dpcg_forward.1} parent=11 // pred_check_branch
        %250 = sbr.rel (%p248) target = $region28
      $region27: #{dpcg_forward.1} parent=11 // pred_region
        _
      $region28: #{dpcg_forward.1} parent=11 // pred_fallthru
        _
      // Predicated region
      $region29: #{dpcg_forward.1} parent=11 // pred_check
        %p251 = pneg %p172
      $region30: #{dpcg_forward.1} parent=11 // pred_check_branch
        %253 = sbr.rel (%p251) target = $region32
      $region31: #{dpcg_forward.1} parent=11 // pred_region
        _
      $region32: #{dpcg_forward.1} parent=11 // pred_fallthru
        _
    $region12: #{dpcg_forward.1} parent=5 // pred_fallthru
      _
    %p254 = scmp.lt.s32.totalorder %s15, 2
    // Predicated region
    $region33: #{dpcg_forward.1} parent=5 // pred_check
      %p255 = pneg %p254
    $region34: #{dpcg_forward.1} parent=5 // pred_check_branch
      %257 = sbr.rel (%p255) target = $region36
    $region35: #{dpcg_forward.1} parent=5 // pred_region
      // Predicated region
      $region37: #{dpcg_forward.1} parent=35 // pred_check
        %p258 = pneg %p56
      $region38: #{dpcg_forward.1} parent=35 // pred_check_branch
        %260 = sbr.rel (%p258) target = $region40
      $region39: #{dpcg_forward.1} parent=35 // pred_region
        %p261 = scmp.lt.s32.totalorder %s15, 1
        %s262 = scalar_select %p261, %s15, 1
        %s263 = smul.addr %s262, 2
        %s264 = smul.addr %s263, 4
        %s265 = scalar_lea.vmem %s1, %s264
      $region40: #{dpcg_forward.1} parent=35 // pred_fallthru
        _
      // Predicated region
      $region41: #{dpcg_forward.1} parent=35 // pred_check
        %p266 = pneg %p82
      $region42: #{dpcg_forward.1} parent=35 // pred_check_branch
        %268 = sbr.rel (%p266) target = $region44
      $region43: #{dpcg_forward.1} parent=35 // pred_region
        %p269 = scmp.lt.s32.totalorder %s15, 1
        %s270 = scalar_select %p269, %s15, 1
        %s271 = smul.addr %s270, 2
        %s272 = smul.addr %s271, 4
        %s273 = scalar_lea.vmem %s2, %s272
      $region44: #{dpcg_forward.1} parent=35 // pred_fallthru
        _
    $region36: #{dpcg_forward.1} parent=5 // pred_fallthru
      _
    %p274 = scmp.le.s32.totalorder 1, %s15
    %p275 = scmp.lt.s32.totalorder %s15, 3
    %p276 = pnand %p274, %p275
    %p277 = pneg %p276
    // Predicated region
    $region45: #{dpcg_forward.1} parent=5 // pred_check
      _
    $region46: #{dpcg_forward.1} parent=5 // pred_check_branch
      %279 = sbr.rel (%p276) target = $region48
    $region47: #{dpcg_forward.1} parent=5 // pred_region
      %s280 = ssub.s32 %s15, 1
      %p281 = pneg %p36
      %p282 = pneg %p33
      %p283 = scmp.lt.s32.totalorder %s20, 1
      %s284 = scalar_select %p283, %s20, 1
      %s285 = smul.addr %s284, 2
      %s286 = smul.addr %s285, 4
      %s287 = scalar_lea.vmem %s1, %s286
      %p288 = pneg %p62
      %p289 = pneg %p59
      %p290 = scmp.lt.s32.totalorder %s20, 1
      %s291 = scalar_select %p290, %s20, 1
      %s292 = smul.addr %s291, 2
      %s293 = smul.addr %s292, 4
      %s294 = scalar_lea.vmem %s2, %s293
      %p295 = pneg %p88
      %p296 = pneg %p85
      %p297 = pneg %p109
      %p298 = pneg %p106
      %p299 = pneg %p130
      %p300 = pneg %p127
      %p301 = pneg %p151
      %p302 = pneg %p148
      %p303 = pneg %p172
      %p304 = pneg %p169
      %p305 = pneg %p198
      %p306 = pneg %p195
      %p307 = scmp.lt.s32.totalorder %s20, 1
      %s308 = scalar_select %p307, %s20, 1
      %s309 = smul.addr %s308, 2
      %s310 = smul.addr %s309, 4
      %s311 = scalar_lea.vmem %s7, %s310
      %p312 = pneg %p224
      %p313 = pneg %p221
      %p314 = scmp.lt.s32.totalorder %s20, 1
      %s315 = scalar_select %p314, %s20, 1
      %s316 = smul.addr %s315, 2
      %s317 = smul.addr %s316, 4
      %s318 = scalar_lea.vmem %s8, %s317
      %p319 = scmp.lt.s32.totalorder %s20, 1
      %s320 = scalar_select %p319, %s20, 1
      %s321 = smul.addr %s320, 2
      %s322 = smul.addr %s321, 4
      %s323 = scalar_lea.vmem %s1, %s322
      %p324 = scmp.lt.s32.totalorder %s20, 1
      %s325 = scalar_select %p324, %s20, 1
      %s326 = smul.addr %s325, 2
      %s327 = smul.addr %s326, 4
      %s328 = scalar_lea.vmem %s2, %s327
      %p329 = scmp.lt.s32.totalorder %s20, 1
      %s330 = scalar_select %p329, %s20, 1
      %s331 = smul.addr %s330, 2
      %s332 = smul.addr %s331, 4
      %s333 = scalar_lea.vmem %s7, %s332
      %p334 = scmp.lt.s32.totalorder %s20, 1
      %s335 = scalar_select %p334, %s20, 1
      %s336 = smul.addr %s335, 2
      %s337 = smul.addr %s336, 4
      %s338 = scalar_lea.vmem %s8, %s337
      %v339 = vld [vmem:[%s323] sm:$0xff]
      %v340 = vld [vmem:[%s328] sm:$0xff]
      %v341 = vld [vmem:[%s0] ss:$8 sm:$0x3]
      %s342 = scalar_lea.vmem %s0, 1
      %v343 = vld [vmem:[%s342] ss:$8 sm:$0x3]
      %s344 = scalar_lea.vmem %s0, 2
      %v345 = vld [vmem:[%s344] ss:$8 sm:$0x3]
      %s346 = scalar_lea.vmem %s0, 3
      %v347 = vld [vmem:[%s346] ss:$8 sm:$0x3]
      %s348 = scalar_lea.vmem %s0, 5
      %v349 = vld [vmem:[%s348] ss:$8 sm:$0x3]
      %s350 = scalar_lea.vmem %s0, 6
      %v351 = vld [vmem:[%s350] ss:$8 sm:$0x3]
      %s352 = scalar_lea.vmem %s0, 7
      %v353 = vld [vmem:[%s352] ss:$8 sm:$0x3]
      %s354 = scalar_lea.vmem %s0, 16
      %v355 = vld [vmem:[%s354] ss:$8 sm:$0x3]
      %v357 = vcombine.high %v339, %v339
      %359 = vrot.lane.b32.xlu0 %v339, 17
      %v360 = vpop.permute.xlu0 %359
      %361 = vrot.lane.b32.xlu0 %v357, 17
      %v362 = vpop.permute.xlu0 %361
      %v363 = vlaneseq
      %v364 = vand.u32 %v363, 127
      %vm365 = vcmp.lt.s32.totalorder %v364, 17
      %v366 = vsel %vm365, %v360, %v362
      %v367 = vsel %vm365, %v362, %v360
      %v369 = vlaneseq
      %v370 = vshrl.u32 %v369, 7
      %v371 = vsub.s32 0, %v370
      %v372 = vrot.slane %v341, %v371
      %v373 = vlaneseq
      %v374 = vshrl.u32 %v373, 7
      %v375 = vsub.s32 1, %v374
      %v376 = vrot.slane %v341, %v375
      %v379 = vmul.f32 %v367, %v372
      %v380 = vmul.f32 %v366, %v376
      %381 = vst [vmem:[#allocation2] sm:$0xf] %v379
      %382 = vst [vmem:[#allocation2 + $0x8] sm:$0xf] %v380
      %383 = vrot.lane.b32.xlu0 %v339, 16
      %v384 = vpop.permute.xlu0 %383
      %385 = vrot.lane.b32.xlu0 %v357, 16
      %v386 = vpop.permute.xlu0 %385
      %vm387 = vcmp.lt.s32.totalorder %v364, 16
      %v388 = vsel %vm387, %v384, %v386
      %v389 = vsel %vm387, %v386, %v384
      %v391 = vlaneseq
      %v392 = vshrl.u32 %v391, 7
      %v393 = vsub.s32 0, %v392
      %v394 = vrot.slane %v343, %v393
      %v395 = vlaneseq
      %v396 = vshrl.u32 %v395, 7
      %v397 = vsub.s32 1, %v396
      %v398 = vrot.slane %v343, %v397
      %v401 = vmul.f32 %v389, %v394
      %v402 = vmul.f32 %v388, %v398
      %v405 = vrot.slane %v401, 4
      %v406 = vrot.slane %v402, 4
      %409 = vst [vmem:[#allocation2] sm:$0xf0] %v405
      %410 = vst [vmem:[#allocation2 + $0x8] sm:$0xf0] %v406
      %411 = vrot.lane.b32.xlu0 %v339, 15
      %v412 = vpop.permute.xlu0 %411
      %413 = vrot.lane.b32.xlu0 %v357, 15
      %v414 = vpop.permute.xlu0 %413
      %vm415 = vcmp.lt.s32.totalorder %v364, 15
      %v416 = vsel %vm415, %v412, %v414
      %v417 = vsel %vm415, %v414, %v412
      %v419 = vlaneseq
      %v420 = vshrl.u32 %v419, 7
      %v421 = vsub.s32 0, %v420
      %v422 = vrot.slane %v345, %v421
      %v423 = vlaneseq
      %v424 = vshrl.u32 %v423, 7
      %v425 = vsub.s32 1, %v424
      %v426 = vrot.slane %v345, %v425
      %v429 = vmul.f32 %v417, %v422
      %v430 = vmul.f32 %v416, %v426
      %431 = vst [vmem:[#allocation2 + $0x10] sm:$0xf] %v429
      %432 = vst [vmem:[#allocation2 + $0x18] sm:$0xf] %v430
      %433 = vrot.lane.b32.xlu0 %v339, 1
      %v434 = vpop.permute.xlu0 %433
      %435 = vrot.lane.b32.xlu0 %v357, 1
      %v436 = vpop.permute.xlu0 %435
      %vm437 = vcmp.lt.s32.totalorder %v364, 1
      %v438 = vsel %vm437, %v434, %v436
      %v439 = vsel %vm437, %v436, %v434
      %v441 = vlaneseq
      %v442 = vshrl.u32 %v441, 7
      %v443 = vsub.s32 0, %v442
      %v444 = vrot.slane %v347, %v443
      %v445 = vlaneseq
      %v446 = vshrl.u32 %v445, 7
      %v447 = vsub.s32 1, %v446
      %v448 = vrot.slane %v347, %v447
      %v451 = vmul.f32 %v439, %v444
      %v452 = vmul.f32 %v438, %v448
      %v455 = vrot.slane %v451, 4
      %v456 = vrot.slane %v452, 4
      %459 = vst [vmem:[#allocation2 + $0x10] sm:$0xf0] %v455
      %460 = vst [vmem:[#allocation2 + $0x18] sm:$0xf0] %v456
      %461 = vst [vmem:[#allocation2 + $0x20] sm:$0xf] %v339
      %462 = vst [vmem:[#allocation2 + $0x28] sm:$0xf] %v357
      %463 = vrot.lane.b32.xlu0 %v339, 127
      %v464 = vpop.permute.xlu0 %463
      %465 = vrot.lane.b32.xlu0 %v357, 127
      %v466 = vpop.permute.xlu0 %465
      %vm467 = vcmp.lt.s32.totalorder %v364, 127
      %v468 = vsel %vm467, %v464, %v466
      %v469 = vsel %vm467, %v466, %v464
      %v471 = vlaneseq
      %v472 = vshrl.u32 %v471, 7
      %v473 = vsub.s32 0, %v472
      %v474 = vrot.slane %v349, %v473
      %v475 = vlaneseq
      %v476 = vshrl.u32 %v475, 7
      %v477 = vsub.s32 1, %v476
      %v478 = vrot.slane %v349, %v477
      %v481 = vmul.f32 %v468, %v474
      %v482 = vmul.f32 %v469, %v478
      %v485 = vrot.slane %v481, 4
      %v486 = vrot.slane %v482, 4
      %489 = vst [vmem:[#allocation2 + $0x20] sm:$0xf0] %v485
      %490 = vst [vmem:[#allocation2 + $0x28] sm:$0xf0] %v486
      %491 = vrot.lane.b32.xlu0 %v339, 113
      %v492 = vpop.permute.xlu0 %491
      %493 = vrot.lane.b32.xlu0 %v357, 113
      %v494 = vpop.permute.xlu0 %493
      %vm495 = vcmp.lt.s32.totalorder %v364, 113
      %v496 = vsel %vm495, %v492, %v494
      %v497 = vsel %vm495, %v494, %v492
      %v499 = vlaneseq
      %v500 = vshrl.u32 %v499, 7
      %v501 = vsub.s32 0, %v500
      %v502 = vrot.slane %v351, %v501
      %v503 = vlaneseq
      %v504 = vshrl.u32 %v503, 7
      %v505 = vsub.s32 1, %v504
      %v506 = vrot.slane %v351, %v505
      %v509 = vmul.f32 %v496, %v502
      %v510 = vmul.f32 %v497, %v506
      %511 = vst [vmem:[#allocation2 + $0x30] sm:$0xf] %v509
      %512 = vst [vmem:[#allocation2 + $0x38] sm:$0xf] %v510
      %513 = vrot.lane.b32.xlu0 %v339, 112
      %v514 = vpop.permute.xlu0 %513
      %515 = vrot.lane.b32.xlu0 %v357, 112
      %v516 = vpop.permute.xlu0 %515
      %vm517 = vcmp.lt.s32.totalorder %v364, 112
      %v518 = vsel %vm517, %v514, %v516
      %v519 = vsel %vm517, %v516, %v514
      %v521 = vlaneseq
      %v522 = vshrl.u32 %v521, 7
      %v523 = vsub.s32 0, %v522
      %v524 = vrot.slane %v353, %v523
      %v525 = vlaneseq
      %v526 = vshrl.u32 %v525, 7
      %v527 = vsub.s32 1, %v526
      %v528 = vrot.slane %v353, %v527
      %v531 = vmul.f32 %v518, %v524
      %v532 = vmul.f32 %v519, %v528
      %v535 = vrot.slane %v531, 4
      %v536 = vrot.slane %v532, 4
      %539 = vst [vmem:[#allocation2 + $0x30] sm:$0xf0] %v535
      %540 = vst [vmem:[#allocation2 + $0x38] sm:$0xf0] %v536
      %541 = vrot.lane.b32.xlu0 %v339, 111
      %v542 = vpop.permute.xlu0 %541
      %543 = vrot.lane.b32.xlu0 %v357, 111
      %v544 = vpop.permute.xlu0 %543
      %vm545 = vcmp.lt.s32.totalorder %v364, 111
      %v546 = vsel %vm545, %v542, %v544
      %v547 = vsel %vm545, %v544, %v542
      %v549 = vlaneseq
      %v550 = vshrl.u32 %v549, 7
      %v551 = vsub.s32 0, %v550
      %v552 = vrot.slane %v355, %v551
      %v553 = vlaneseq
      %v554 = vshrl.u32 %v553, 7
      %v555 = vsub.s32 1, %v554
      %v556 = vrot.slane %v355, %v555
      %v559 = vmul.f32 %v546, %v552
      %v560 = vmul.f32 %v547, %v556
      %561 = vst [vmem:[#allocation2 + $0x40] sm:$0xf] %v559
      %562 = vst [vmem:[#allocation2 + $0x48] sm:$0xf] %v560
      %v564 = vcombine.high %v340, %v340
      %566 = vrot.lane.b32.xlu0 %v340, 17
      %v567 = vpop.permute.xlu0 %566
      %568 = vrot.lane.b32.xlu0 %v564, 17
      %v569 = vpop.permute.xlu0 %568
      %v570 = vsel %vm365, %v567, %v569
      %v571 = vsel %vm365, %v569, %v567
      %v572 = vmul.f32 %v571, %v372
      %v573 = vmul.f32 %v570, %v376
      %v576 = vrot.slane %v572, 4
      %v577 = vrot.slane %v573, 4
      %580 = vst [vmem:[#allocation2 + $0x40] sm:$0xf0] %v576
      %581 = vst [vmem:[#allocation2 + $0x48] sm:$0xf0] %v577
      %582 = vrot.lane.b32.xlu0 %v340, 16
      %v583 = vpop.permute.xlu0 %582
      %584 = vrot.lane.b32.xlu0 %v564, 16
      %v585 = vpop.permute.xlu0 %584
      %v586 = vsel %vm387, %v583, %v585
      %v587 = vsel %vm387, %v585, %v583
      %v588 = vmul.f32 %v587, %v394
      %v589 = vmul.f32 %v586, %v398
      %590 = vst [vmem:[#allocation2 + $0x50] sm:$0xf] %v588
      %591 = vst [vmem:[#allocation2 + $0x58] sm:$0xf] %v589
      %592 = vrot.lane.b32.xlu0 %v340, 15
      %v593 = vpop.permute.xlu0 %592
      %594 = vrot.lane.b32.xlu0 %v564, 15
      %v595 = vpop.permute.xlu0 %594
      %v596 = vsel %vm415, %v593, %v595
      %v597 = vsel %vm415, %v595, %v593
      %v598 = vmul.f32 %v597, %v422
      %v599 = vmul.f32 %v596, %v426
      %v602 = vrot.slane %v598, 4
      %v603 = vrot.slane %v599, 4
      %606 = vst [vmem:[#allocation2 + $0x50] sm:$0xf0] %v602
      %607 = vst [vmem:[#allocation2 + $0x58] sm:$0xf0] %v603
      %608 = vrot.lane.b32.xlu0 %v340, 1
      %v609 = vpop.permute.xlu0 %608
      %610 = vrot.lane.b32.xlu0 %v564, 1
      %v611 = vpop.permute.xlu0 %610
      %v612 = vsel %vm437, %v609, %v611
      %v613 = vsel %vm437, %v611, %v609
      %v614 = vmul.f32 %v613, %v444
      %v615 = vmul.f32 %v612, %v448
      %616 = vst [vmem:[#allocation2 + $0x60] sm:$0xf] %v614
      %617 = vst [vmem:[#allocation2 + $0x68] sm:$0xf] %v615
      %v618 = vcombine.low %v340, %v340
      %620 = vst [vmem:[#allocation2 + $0x60] sm:$0xf0] %v618
      %621 = vst [vmem:[#allocation2 + $0x68] sm:$0xf0] %v340
      %622 = vrot.lane.b32.xlu0 %v340, 127
      %v623 = vpop.permute.xlu0 %622
      %624 = vrot.lane.b32.xlu0 %v564, 127
      %v625 = vpop.permute.xlu0 %624
      %v626 = vsel %vm467, %v623, %v625
      %v627 = vsel %vm467, %v625, %v623
      %v628 = vmul.f32 %v626, %v474
      %v629 = vmul.f32 %v627, %v478
      %630 = vst [vmem:[#allocation2 + $0x70] sm:$0xf] %v628
      %631 = vst [vmem:[#allocation2 + $0x78] sm:$0xf] %v629
      %632 = vrot.lane.b32.xlu0 %v340, 113
      %v633 = vpop.permute.xlu0 %632
      %634 = vrot.lane.b32.xlu0 %v564, 113
      %v635 = vpop.permute.xlu0 %634
      %v636 = vsel %vm495, %v633, %v635
      %v637 = vsel %vm495, %v635, %v633
      %v638 = vmul.f32 %v636, %v502
      %v639 = vmul.f32 %v637, %v506
      %v642 = vrot.slane %v638, 4
      %v643 = vrot.slane %v639, 4
      %646 = vst [vmem:[#allocation2 + $0x70] sm:$0xf0] %v642
      %647 = vst [vmem:[#allocation2 + $0x78] sm:$0xf0] %v643
      %648 = vrot.lane.b32.xlu0 %v340, 112
      %v649 = vpop.permute.xlu0 %648
      %650 = vrot.lane.b32.xlu0 %v564, 112
      %v651 = vpop.permute.xlu0 %650
      %v652 = vsel %vm517, %v649, %v651
      %v653 = vsel %vm517, %v651, %v649
      %v654 = vmul.f32 %v652, %v524
      %v655 = vmul.f32 %v653, %v528
      %656 = vst [vmem:[#allocation2 + $0x80] sm:$0xf] %v654
      %657 = vst [vmem:[#allocation2 + $0x88] sm:$0xf] %v655
      %658 = vrot.lane.b32.xlu0 %v340, 111
      %v659 = vpop.permute.xlu0 %658
      %660 = vrot.lane.b32.xlu0 %v564, 111
      %v661 = vpop.permute.xlu0 %660
      %v662 = vsel %vm545, %v659, %v661
      %v663 = vsel %vm545, %v661, %v659
      %v664 = vmul.f32 %v662, %v552
      %v665 = vmul.f32 %v663, %v556
      %v668 = vrot.slane %v664, 4
      %v669 = vrot.slane %v665, 4
      %672 = vst [vmem:[#allocation2 + $0x80] sm:$0xf0] %v668
      %673 = vst [vmem:[#allocation2 + $0x88] sm:$0xf0] %v669
      %v674 = vld [vmem:[%s3] sm:$0xff]
      %v675 = vld [vmem:[#allocation2] sm:$0xff]
      %v676 = vld [vmem:[#allocation2 + $0x8] sm:$0xff]
      %v677 = vld [vmem:[#allocation2 + $0x10] sm:$0xff]
      %v678 = vld [vmem:[#allocation2 + $0x18] sm:$0xff]
      %v679 = vld [vmem:[#allocation2 + $0x20] sm:$0xff]
      %v680 = vld [vmem:[#allocation2 + $0x28] sm:$0xff]
      %v681 = vld [vmem:[#allocation2 + $0x30] sm:$0xff]
      %v682 = vld [vmem:[#allocation2 + $0x38] sm:$0xff]
      %v683 = vld [vmem:[#allocation2 + $0x40] sm:$0xff]
      %v684 = vld [vmem:[#allocation2 + $0x48] sm:$0xff]
      %v685 = vld [vmem:[#allocation2 + $0x50] sm:$0xff]
      %v686 = vld [vmem:[#allocation2 + $0x58] sm:$0xff]
      %v687 = vld [vmem:[#allocation2 + $0x60] sm:$0xff]
      %v688 = vld [vmem:[#allocation2 + $0x68] sm:$0xff]
      %v689 = vld [vmem:[#allocation2 + $0x70] sm:$0xff]
      %v690 = vld [vmem:[#allocation2 + $0x78] sm:$0xff]
      %v691 = vld [vmem:[#allocation2 + $0x80] sm:$0xff]
      %v692 = vld [vmem:[#allocation2 + $0x88] sm:$0xff]
      %v693 = vld [vmem:[%s4] sm:$0xff]
      %695 = vset.pattern.permute.xlu0 0
      %696 = vperm.xlu0 %695, %v693
      %v697 = vpop.permute.xlu0 %696
      %vm699 = vcmask 588800
      %v701 = vsel %vm699, %v674, 0
      %703 = vmatprep.subr.mxu0 %v676
      %704 = vmatpush1.msra.mxu0 %v675
      %705 = vmatprep.subr.mxu0 %v678
      %706 = vmatpush1.msra.mxu0 %v677
      %707 = vmatprep.subr.mxu0 %v680
      %708 = vmatpush1.msra.mxu0 %v679
      %709 = vmatprep.subr.mxu0 %v682
      %710 = vmatpush1.msra.mxu0 %v681
      %711 = vmatprep.subr.mxu0 %v684
      %712 = vmatpush1.msra.mxu0 %v683
      %713 = vmatprep.subr.mxu0 %v686
      %714 = vmatpush1.msra.mxu0 %v685
      %715 = vmatprep.subr.mxu0 %v688
      %716 = vmatpush1.msra.mxu0 %v687
      %717 = vmatprep.subr.mxu0 %v690
      %718 = vmatpush1.msra.mxu0 %v689
      %719 = vmatprep.subr.mxu0 %v692
      %720 = vmatpush1.msra.mxu0 %v691
      %721 = vmatprep.subr.mxu0 0.0
      %722 = vmatpush1.msra.mxu0 0.0
      %723 = vmatprep.subr.mxu0 0.0
      %724 = vmatpush1.msra.mxu0 0.0
      %725 = vmatprep.subr.mxu0 0.0
      %726 = vmatpush1.msra.mxu0 0.0
      %727 = vmatprep.subr.mxu0 0.0
      %728 = vmatpush1.msra.mxu0 0.0
      %729 = vmatprep.subr.mxu0 0.0
      %730 = vmatpush1.msra.mxu0 0.0
      %731 = vmatprep.subr.mxu0 0.0
      %732 = vmatpush1.msra.mxu0 0.0
      %733 = vmatprep.subr.mxu0 0.0
      %734 = vmatpush1.msra.mxu0 0.0
      %735 = vmatprep.subr.mxu0 0.0
      %736 = vmatpush1.msra.mxu0 0.0
      %737 = vmatprep.subr.mxu0 0.0
      %738 = vmatpush1.msra.mxu0 0.0
      %739 = vmatprep.subr.mxu0 0.0
      %740 = vmatpush1.msra.mxu0 0.0
      %741 = vmatprep.subr.mxu0 0.0
      %742 = vmatpush1.msra.mxu0 0.0
      %743 = vmatprep.subr.mxu0 0.0
      %744 = vmatpush1.msra.mxu0 0.0
      %745 = vmatprep.subr.mxu0 0.0
      %746 = vmatpush1.msra.mxu0 0.0
      %747 = vmatprep.subr.mxu0 0.0
      %748 = vmatpush1.msra.mxu0 0.0
      %749 = vmatprep.subr.mxu0 0.0
      %750 = vmatpush1.msra.mxu0 0.0
      %751 = vmatprep.subr.mxu0 0.0
      %752 = vmatpush1.msra.mxu0 0.0
      %753 = vmatprep.subr.mxu0 0.0
      %754 = vmatpush1.msra.mxu0 0.0
      %755 = vmatprep.subr.mxu0 0.0
      %756 = vmatpush1.msra.mxu0 0.0
      %757 = vmatprep.subr.mxu0 0.0
      %758 = vmatpush1.msra.mxu0 0.0
      %759 = vmatprep.subr.mxu0 0.0
      %760 = vmatpush1.msra.mxu0 0.0
      %761 = vmatprep.subr.mxu0 0.0
      %762 = vmatpush1.msra.mxu0 0.0
      %763 = vmatprep.subr.mxu0 0.0
      %764 = vmatpush1.msra.mxu0 0.0
      %765 = vmatprep.subr.mxu0 0.0
      %766 = vmatpush1.msra.mxu0 0.0
      %767 = vmatprep.mubr.f32.mxu0 0.0
      %768 = vmatmul.mubr.f32.gmra.mrb[0].mxu0 %v701
      %v769 = vpop.f32.mrb[0].mxu0
      %v770 = vadd.f32 %v697, %v769
      %v771 = vpop.f32.mrb[0].mxu0
      %v772 = vadd.f32 %v697, %v771
      %773 = vdwg.mxu0
      %vm774 = vcmp.gt.f32.partialorder %v770, 0.0
      %vm775 = vcmp.gt.f32.partialorder %v772, 0.0
      %v776 = vmul.f32 %v770, 0.2
      %v777 = vmul.f32 %v772, 0.2
      %v778 = vsel %vm774, %v770, %v776
      %v779 = vsel %vm775, %v772, %v777
      %780 = vrot.lane.b32.xlu0 %v778, 17
      %v781 = vpop.permute.xlu0 %780
      %782 = vrot.lane.b32.xlu0 %v779, 17
      %v783 = vpop.permute.xlu0 %782
      %v784 = vsel %vm365, %v781, %v783
      %v785 = vsel %vm365, %v783, %v781
      %v786 = vmul.f32 %v785, %v372
      %v787 = vmul.f32 %v784, %v376
      %788 = vst [vmem:[#allocation2] sm:$0xf] %v786
      %789 = vst [vmem:[#allocation2 + $0x8] sm:$0xf] %v787
      %790 = vrot.lane.b32.xlu0 %v778, 16
      %v791 = vpop.permute.xlu0 %790
      %792 = vrot.lane.b32.xlu0 %v779, 16
      %v793 = vpop.permute.xlu0 %792
      %v794 = vsel %vm387, %v791, %v793
      %v795 = vsel %vm387, %v793, %v791
      %v796 = vmul.f32 %v795, %v394
      %v797 = vmul.f32 %v794, %v398
      %v800 = vrot.slane %v796, 4
      %v801 = vrot.slane %v797, 4
      %804 = vst [vmem:[#allocation2] sm:$0xf0] %v800
      %805 = vst [vmem:[#allocation2 + $0x8] sm:$0xf0] %v801
      %806 = vrot.lane.b32.xlu0 %v778, 15
      %v807 = vpop.permute.xlu0 %806
      %808 = vrot.lane.b32.xlu0 %v779, 15
      %v809 = vpop.permute.xlu0 %808
      %v810 = vsel %vm415, %v807, %v809
      %v811 = vsel %vm415, %v809, %v807
      %v812 = vmul.f32 %v811, %v422
      %v813 = vmul.f32 %v810, %v426
      %814 = vst [vmem:[#allocation2 + $0x10] sm:$0xf] %v812
      %815 = vst [vmem:[#allocation2 + $0x18] sm:$0xf] %v813
      %816 = vrot.lane.b32.xlu0 %v778, 1
      %v817 = vpop.permute.xlu0 %816
      %818 = vrot.lane.b32.xlu0 %v779, 1
      %v819 = vpop.permute.xlu0 %818
      %v820 = vsel %vm437, %v817, %v819
      %v821 = vsel %vm437, %v819, %v817
      %v822 = vmul.f32 %v821, %v444
      %v823 = vmul.f32 %v820, %v448
      %v826 = vrot.slane %v822, 4
      %v827 = vrot.slane %v823, 4
      %830 = vst [vmem:[#allocation2 + $0x10] sm:$0xf0] %v826
      %831 = vst [vmem:[#allocation2 + $0x18] sm:$0xf0] %v827
      %832 = vst [vmem:[#allocation2 + $0x20] sm:$0xf] %v778
      %833 = vst [vmem:[#allocation2 + $0x28] sm:$0xf] %v779
      %834 = vrot.lane.b32.xlu0 %v778, 127
      %v835 = vpop.permute.xlu0 %834
      %836 = vrot.lane.b32.xlu0 %v779, 127
      %v837 = vpop.permute.xlu0 %836
      %v838 = vsel %vm467, %v835, %v837
      %v839 = vsel %vm467, %v837, %v835
      %v840 = vmul.f32 %v838, %v474
      %v841 = vmul.f32 %v839, %v478
      %v844 = vrot.slane %v840, 4
      %v845 = vrot.slane %v841, 4
      %848 = vst [vmem:[#allocation2 + $0x20] sm:$0xf0] %v844
      %849 = vst [vmem:[#allocation2 + $0x28] sm:$0xf0] %v845
      %850 = vrot.lane.b32.xlu0 %v778, 113
      %v851 = vpop.permute.xlu0 %850
      %852 = vrot.lane.b32.xlu0 %v779, 113
      %v853 = vpop.permute.xlu0 %852
      %v854 = vsel %vm495, %v851, %v853
      %v855 = vsel %vm495, %v853, %v851
      %v856 = vmul.f32 %v854, %v502
      %v857 = vmul.f32 %v855, %v506
      %858 = vst [vmem:[#allocation2 + $0x30] sm:$0xf] %v856
      %859 = vst [vmem:[#allocation2 + $0x38] sm:$0xf] %v857
      %860 = vrot.lane.b32.xlu0 %v778, 112
      %v861 = vpop.permute.xlu0 %860
      %862 = vrot.lane.b32.xlu0 %v779, 112
      %v863 = vpop.permute.xlu0 %862
      %v864 = vsel %vm517, %v861, %v863
      %v865 = vsel %vm517, %v863, %v861
      %v866 = vmul.f32 %v864, %v524
      %v867 = vmul.f32 %v865, %v528
      %v870 = vrot.slane %v866, 4
      %v871 = vrot.slane %v867, 4
      %874 = vst [vmem:[#allocation2 + $0x30] sm:$0xf0] %v870
      %875 = vst [vmem:[#allocation2 + $0x38] sm:$0xf0] %v871
      %876 = vrot.lane.b32.xlu0 %v778, 111
      %v877 = vpop.permute.xlu0 %876
      %878 = vrot.lane.b32.xlu0 %v779, 111
      %v879 = vpop.permute.xlu0 %878
      %v880 = vsel %vm545, %v877, %v879
      %v881 = vsel %vm545, %v879, %v877
      %v882 = vmul.f32 %v880, %v552
      %v883 = vmul.f32 %v881, %v556
      %884 = vst [vmem:[#allocation2 + $0x40] sm:$0xf] %v882
      %885 = vst [vmem:[#allocation2 + $0x48] sm:$0xf] %v883
      %v888 = vrot.slane %v778, 4
      %v889 = vrot.slane %v779, 4
      %892 = vrot.lane.b32.xlu0 %v888, 17
      %v893 = vpop.permute.xlu0 %892
      %894 = vrot.lane.b32.xlu0 %v889, 17
      %v895 = vpop.permute.xlu0 %894
      %v896 = vsel %vm365, %v893, %v895
      %v897 = vsel %vm365, %v895, %v893
      %v898 = vmul.f32 %v897, %v372
      %v899 = vmul.f32 %v896, %v376
      %v902 = vrot.slane %v898, 4
      %v903 = vrot.slane %v899, 4
      %906 = vst [vmem:[#allocation2 + $0x40] sm:$0xf0] %v902
      %907 = vst [vmem:[#allocation2 + $0x48] sm:$0xf0] %v903
      %908 = vrot.lane.b32.xlu0 %v888, 16
      %v909 = vpop.permute.xlu0 %908
      %910 = vrot.lane.b32.xlu0 %v889, 16
      %v911 = vpop.permute.xlu0 %910
      %v912 = vsel %vm387, %v909, %v911
      %v913 = vsel %vm387, %v911, %v909
      %v914 = vmul.f32 %v913, %v394
      %v915 = vmul.f32 %v912, %v398
      %916 = vst [vmem:[#allocation2 + $0x50] sm:$0xf] %v914
      %917 = vst [vmem:[#allocation2 + $0x58] sm:$0xf] %v915
      %918 = vrot.lane.b32.xlu0 %v888, 15
      %v919 = vpop.permute.xlu0 %918
      %920 = vrot.lane.b32.xlu0 %v889, 15
      %v921 = vpop.permute.xlu0 %920
      %v922 = vsel %vm415, %v919, %v921
      %v923 = vsel %vm415, %v921, %v919
      %v924 = vmul.f32 %v923, %v422
      %v925 = vmul.f32 %v922, %v426
      %v928 = vrot.slane %v924, 4
      %v929 = vrot.slane %v925, 4
      %932 = vst [vmem:[#allocation2 + $0x50] sm:$0xf0] %v928
      %933 = vst [vmem:[#allocation2 + $0x58] sm:$0xf0] %v929
      %934 = vrot.lane.b32.xlu0 %v888, 1
      %v935 = vpop.permute.xlu0 %934
      %936 = vrot.lane.b32.xlu0 %v889, 1
      %v937 = vpop.permute.xlu0 %936
      %v938 = vsel %vm437, %v935, %v937
      %v939 = vsel %vm437, %v937, %v935
      %v940 = vmul.f32 %v939, %v444
      %v941 = vmul.f32 %v938, %v448
      %942 = vst [vmem:[#allocation2 + $0x60] sm:$0xf] %v940
      %943 = vst [vmem:[#allocation2 + $0x68] sm:$0xf] %v941
      %944 = vst [vmem:[#allocation2 + $0x60] sm:$0xf0] %v778
      %945 = vst [vmem:[#allocation2 + $0x68] sm:$0xf0] %v779
      %946 = vrot.lane.b32.xlu0 %v888, 127
      %v947 = vpop.permute.xlu0 %946
      %948 = vrot.lane.b32.xlu0 %v889, 127
      %v949 = vpop.permute.xlu0 %948
      %v950 = vsel %vm467, %v947, %v949
      %v951 = vsel %vm467, %v949, %v947
      %v952 = vmul.f32 %v950, %v474
      %v953 = vmul.f32 %v951, %v478
      %954 = vst [vmem:[#allocation2 + $0x70] sm:$0xf] %v952
      %955 = vst [vmem:[#allocation2 + $0x78] sm:$0xf] %v953
      %956 = vrot.lane.b32.xlu0 %v888, 113
      %v957 = vpop.permute.xlu0 %956
      %958 = vrot.lane.b32.xlu0 %v889, 113
      %v959 = vpop.permute.xlu0 %958
      %v960 = vsel %vm495, %v957, %v959
      %v961 = vsel %vm495, %v959, %v957
      %v962 = vmul.f32 %v960, %v502
      %v963 = vmul.f32 %v961, %v506
      %v966 = vrot.slane %v962, 4
      %v967 = vrot.slane %v963, 4
      %970 = vst [vmem:[#allocation2 + $0x70] sm:$0xf0] %v966
      %971 = vst [vmem:[#allocation2 + $0x78] sm:$0xf0] %v967
      %972 = vrot.lane.b32.xlu0 %v888, 112
      %v973 = vpop.permute.xlu0 %972
      %974 = vrot.lane.b32.xlu0 %v889, 112
      %v975 = vpop.permute.xlu0 %974
      %v976 = vsel %vm517, %v973, %v975
      %v977 = vsel %vm517, %v975, %v973
      %v978 = vmul.f32 %v976, %v524
      %v979 = vmul.f32 %v977, %v528
      %980 = vst [vmem:[#allocation2 + $0x80] sm:$0xf] %v978
      %981 = vst [vmem:[#allocation2 + $0x88] sm:$0xf] %v979
      %982 = vrot.lane.b32.xlu0 %v888, 111
      %v983 = vpop.permute.xlu0 %982
      %984 = vrot.lane.b32.xlu0 %v889, 111
      %v985 = vpop.permute.xlu0 %984
      %v986 = vsel %vm545, %v983, %v985
      %v987 = vsel %vm545, %v985, %v983
      %v988 = vmul.f32 %v986, %v552
      %v989 = vmul.f32 %v987, %v556
      %v992 = vrot.slane %v988, 4
      %v993 = vrot.slane %v989, 4
      %996 = vst [vmem:[#allocation2 + $0x80] sm:$0xf0] %v992
      %997 = vst [vmem:[#allocation2 + $0x88] sm:$0xf0] %v993
      %v998 = vld [vmem:[%s5] sm:$0xff]
      %v999 = vld [vmem:[#allocation2] sm:$0xff]
      %v1000 = vld [vmem:[#allocation2 + $0x8] sm:$0xff]
      %v1001 = vld [vmem:[#allocation2 + $0x10] sm:$0xff]
      %v1002 = vld [vmem:[#allocation2 + $0x18] sm:$0xff]
      %v1003 = vld [vmem:[#allocation2 + $0x20] sm:$0xff]
      %v1004 = vld [vmem:[#allocation2 + $0x28] sm:$0xff]
      %v1005 = vld [vmem:[#allocation2 + $0x30] sm:$0xff]
      %v1006 = vld [vmem:[#allocation2 + $0x38] sm:$0xff]
      %v1007 = vld [vmem:[#allocation2 + $0x40] sm:$0xff]
      %v1008 = vld [vmem:[#allocation2 + $0x48] sm:$0xff]
      %v1009 = vld [vmem:[#allocation2 + $0x50] sm:$0xff]
      %v1010 = vld [vmem:[#allocation2 + $0x58] sm:$0xff]
      %v1011 = vld [vmem:[#allocation2 + $0x60] sm:$0xff]
      %v1012 = vld [vmem:[#allocation2 + $0x68] sm:$0xff]
      %v1013 = vld [vmem:[#allocation2 + $0x70] sm:$0xff]
      %v1014 = vld [vmem:[#allocation2 + $0x78] sm:$0xff]
      %v1015 = vld [vmem:[#allocation2 + $0x80] sm:$0xff]
      %v1016 = vld [vmem:[#allocation2 + $0x88] sm:$0xff]
      %v1017 = vld [vmem:[%s6] sm:$0xff]
      %1019 = vset.pattern.permute.xlu0 0
      %1020 = vperm.xlu0 %1019, %v1017
      %v1021 = vpop.permute.xlu0 %1020
      %v1024 = vsel %vm699, %v998, 0
      %1026 = vmatprep.subr.mxu0 %v1000
      %1027 = vmatpush1.msra.mxu0 %v999
      %1028 = vmatprep.subr.mxu0 %v1002
      %1029 = vmatpush1.msra.mxu0 %v1001
      %1030 = vmatprep.subr.mxu0 %v1004
      %1031 = vmatpush1.msra.mxu0 %v1003
      %1032 = vmatprep.subr.mxu0 %v1006
      %1033 = vmatpush1.msra.mxu0 %v1005
      %1034 = vmatprep.subr.mxu0 %v1008
      %1035 = vmatpush1.msra.mxu0 %v1007
      %1036 = vmatprep.subr.mxu0 %v1010
      %1037 = vmatpush1.msra.mxu0 %v1009
      %1038 = vmatprep.subr.mxu0 %v1012
      %1039 = vmatpush1.msra.mxu0 %v1011
      %1040 = vmatprep.subr.mxu0 %v1014
      %1041 = vmatpush1.msra.mxu0 %v1013
      %1042 = vmatprep.subr.mxu0 %v1016
      %1043 = vmatpush1.msra.mxu0 %v1015
      %1044 = vmatprep.subr.mxu0 0.0
      %1045 = vmatpush1.msra.mxu0 0.0
      %1046 = vmatprep.subr.mxu0 0.0
      %1047 = vmatpush1.msra.mxu0 0.0
      %1048 = vmatprep.subr.mxu0 0.0
      %1049 = vmatpush1.msra.mxu0 0.0
      %1050 = vmatprep.subr.mxu0 0.0
      %1051 = vmatpush1.msra.mxu0 0.0
      %1052 = vmatprep.subr.mxu0 0.0
      %1053 = vmatpush1.msra.mxu0 0.0
      %1054 = vmatprep.subr.mxu0 0.0
      %1055 = vmatpush1.msra.mxu0 0.0
      %1056 = vmatprep.subr.mxu0 0.0
      %1057 = vmatpush1.msra.mxu0 0.0
      %1058 = vmatprep.subr.mxu0 0.0
      %1059 = vmatpush1.msra.mxu0 0.0
      %1060 = vmatprep.subr.mxu0 0.0
      %1061 = vmatpush1.msra.mxu0 0.0
      %1062 = vmatprep.subr.mxu0 0.0
      %1063 = vmatpush1.msra.mxu0 0.0
      %1064 = vmatprep.subr.mxu0 0.0
      %1065 = vmatpush1.msra.mxu0 0.0
      %1066 = vmatprep.subr.mxu0 0.0
      %1067 = vmatpush1.msra.mxu0 0.0
      %1068 = vmatprep.subr.mxu0 0.0
      %1069 = vmatpush1.msra.mxu0 0.0
      %1070 = vmatprep.subr.mxu0 0.0
      %1071 = vmatpush1.msra.mxu0 0.0
      %1072 = vmatprep.subr.mxu0 0.0
      %1073 = vmatpush1.msra.mxu0 0.0
      %1074 = vmatprep.subr.mxu0 0.0
      %1075 = vmatpush1.msra.mxu0 0.0
      %1076 = vmatprep.subr.mxu0 0.0
      %1077 = vmatpush1.msra.mxu0 0.0
      %1078 = vmatprep.subr.mxu0 0.0
      %1079 = vmatpush1.msra.mxu0 0.0
      %1080 = vmatprep.subr.mxu0 0.0
      %1081 = vmatpush1.msra.mxu0 0.0
      %1082 = vmatprep.subr.mxu0 0.0
      %1083 = vmatpush1.msra.mxu0 0.0
      %1084 = vmatprep.subr.mxu0 0.0
      %1085 = vmatpush1.msra.mxu0 0.0
      %1086 = vmatprep.subr.mxu0 0.0
      %1087 = vmatpush1.msra.mxu0 0.0
      %1088 = vmatprep.subr.mxu0 0.0
      %1089 = vmatpush1.msra.mxu0 0.0
      %1090 = vmatprep.mubr.f32.mxu0 0.0
      %1091 = vmatmul.mubr.f32.gmra.mrb[0].mxu0 %v1024
      %v1092 = vpop.f32.mrb[0].mxu0
      %v1093 = vadd.f32 %v1021, %v1092
      %v1094 = vpop.f32.mrb[0].mxu0
      %v1095 = vadd.f32 %v1021, %v1094
      %1096 = vdwg.mxu0
      %v1099 = vrot.slane %v1093, 4
      %v1100 = vrot.slane %v1095, 4
      %v1103 = vmul.f32 %v1093, %v1099
      %v1104 = vmul.f32 %v1095, %v1100
      %v1107 = vcombine.low %v1103, %v1104
      %v1109 = vadd.f32 %v339, %v1107
      %v1110 = vcombine.high %v1093, %v1095
      %v1112 = vadd.f32 %v340, %v1110
      %v1114 = vcombine.high %v1109, %v1109
      %1116 = vrot.lane.b32.xlu0 %v1109, 17
      %v1117 = vpop.permute.xlu0 %1116
      %1118 = vrot.lane.b32.xlu0 %v1114, 17
      %v1119 = vpop.permute.xlu0 %1118
      %v1120 = vsel %vm365, %v1117, %v1119
      %v1121 = vsel %vm365, %v1119, %v1117
      %v1122 = vmul.f32 %v1121, %v372
      %v1123 = vmul.f32 %v1120, %v376
      %1124 = vst [vmem:[#allocation2] sm:$0xf] %v1122
      %1125 = vst [vmem:[#allocation2 + $0x8] sm:$0xf] %v1123
      %1126 = vrot.lane.b32.xlu0 %v1109, 16
      %v1127 = vpop.permute.xlu0 %1126
      %1128 = vrot.lane.b32.xlu0 %v1114, 16
      %v1129 = vpop.permute.xlu0 %1128
      %v1130 = vsel %vm387, %v1127, %v1129
      %v1131 = vsel %vm387, %v1129, %v1127
      %v1132 = vmul.f32 %v1131, %v394
      %v1133 = vmul.f32 %v1130, %v398
      %v1136 = vrot.slane %v1132, 4
      %v1137 = vrot.slane %v1133, 4
      %1140 = vst [vmem:[#allocation2] sm:$0xf0] %v1136
      %1141 = vst [vmem:[#allocation2 + $0x8] sm:$0xf0] %v1137
      %1142 = vrot.lane.b32.xlu0 %v1109, 15
      %v1143 = vpop.permute.xlu0 %1142
      %1144 = vrot.lane.b32.xlu0 %v1114, 15
      %v1145 = vpop.permute.xlu0 %1144
      %v1146 = vsel %vm415, %v1143, %v1145
      %v1147 = vsel %vm415, %v1145, %v1143
      %v1148 = vmul.f32 %v1147, %v422
      %v1149 = vmul.f32 %v1146, %v426
      %1150 = vst [vmem:[#allocation2 + $0x10] sm:$0xf] %v1148
      %1151 = vst [vmem:[#allocation2 + $0x18] sm:$0xf] %v1149
      %1152 = vrot.lane.b32.xlu0 %v1109, 1
      %v1153 = vpop.permute.xlu0 %1152
      %1154 = vrot.lane.b32.xlu0 %v1114, 1
      %v1155 = vpop.permute.xlu0 %1154
      %v1156 = vsel %vm437, %v1153, %v1155
      %v1157 = vsel %vm437, %v1155, %v1153
      %v1158 = vmul.f32 %v1157, %v444
      %v1159 = vmul.f32 %v1156, %v448
      %v1162 = vrot.slane %v1158, 4
      %v1163 = vrot.slane %v1159, 4
      %1166 = vst [vmem:[#allocation2 + $0x10] sm:$0xf0] %v1162
      %1167 = vst [vmem:[#allocation2 + $0x18] sm:$0xf0] %v1163
      %1168 = vst [vmem:[#allocation2 + $0x20] sm:$0xf] %v1109
      %1169 = vst [vmem:[#allocation2 + $0x28] sm:$0xf] %v1114
      %1170 = vrot.lane.b32.xlu0 %v1109, 127
      %v1171 = vpop.permute.xlu0 %1170
      %1172 = vrot.lane.b32.xlu0 %v1114, 127
      %v1173 = vpop.permute.xlu0 %1172
      %v1174 = vsel %vm467, %v1171, %v1173
      %v1175 = vsel %vm467, %v1173, %v1171
      %v1176 = vmul.f32 %v1174, %v474
      %v1177 = vmul.f32 %v1175, %v478
      %v1180 = vrot.slane %v1176, 4
      %v1181 = vrot.slane %v1177, 4
      %1184 = vst [vmem:[#allocation2 + $0x20] sm:$0xf0] %v1180
      %1185 = vst [vmem:[#allocation2 + $0x28] sm:$0xf0] %v1181
      %1186 = vrot.lane.b32.xlu0 %v1109, 113
      %v1187 = vpop.permute.xlu0 %1186
      %1188 = vrot.lane.b32.xlu0 %v1114, 113
      %v1189 = vpop.permute.xlu0 %1188
      %v1190 = vsel %vm495, %v1187, %v1189
      %v1191 = vsel %vm495, %v1189, %v1187
      %v1192 = vmul.f32 %v1190, %v502
      %v1193 = vmul.f32 %v1191, %v506
      %1194 = vst [vmem:[#allocation2 + $0x30] sm:$0xf] %v1192
      %1195 = vst [vmem:[#allocation2 + $0x38] sm:$0xf] %v1193
      %1196 = vrot.lane.b32.xlu0 %v1109, 112
      %v1197 = vpop.permute.xlu0 %1196
      %1198 = vrot.lane.b32.xlu0 %v1114, 112
      %v1199 = vpop.permute.xlu0 %1198
      %v1200 = vsel %vm517, %v1197, %v1199
      %v1201 = vsel %vm517, %v1199, %v1197
      %v1202 = vmul.f32 %v1200, %v524
      %v1203 = vmul.f32 %v1201, %v528
      %v1206 = vrot.slane %v1202, 4
      %v1207 = vrot.slane %v1203, 4
      %1210 = vst [vmem:[#allocation2 + $0x30] sm:$0xf0] %v1206
      %1211 = vst [vmem:[#allocation2 + $0x38] sm:$0xf0] %v1207
      %1212 = vrot.lane.b32.xlu0 %v1109, 111
      %v1213 = vpop.permute.xlu0 %1212
      %1214 = vrot.lane.b32.xlu0 %v1114, 111
      %v1215 = vpop.permute.xlu0 %1214
      %v1216 = vsel %vm545, %v1213, %v1215
      %v1217 = vsel %vm545, %v1215, %v1213
      %v1218 = vmul.f32 %v1216, %v552
      %v1219 = vmul.f32 %v1217, %v556
      %1220 = vst [vmem:[#allocation2 + $0x40] sm:$0xf] %v1218
      %1221 = vst [vmem:[#allocation2 + $0x48] sm:$0xf] %v1219
      %v1223 = vcombine.high %v1112, %v1112
      %1225 = vrot.lane.b32.xlu0 %v1112, 17
      %v1226 = vpop.permute.xlu0 %1225
      %1227 = vrot.lane.b32.xlu0 %v1223, 17
      %v1228 = vpop.permute.xlu0 %1227
      %v1229 = vsel %vm365, %v1226, %v1228
      %v1230 = vsel %vm365, %v1228, %v1226
      %v1231 = vmul.f32 %v1230, %v372
      %v1232 = vmul.f32 %v1229, %v376
      %v1235 = vrot.slane %v1231, 4
      %v1236 = vrot.slane %v1232, 4
      %1239 = vst [vmem:[#allocation2 + $0x40] sm:$0xf0] %v1235
      %1240 = vst [vmem:[#allocation2 + $0x48] sm:$0xf0] %v1236
      %1241 = vrot.lane.b32.xlu0 %v1112, 16
      %v1242 = vpop.permute.xlu0 %1241
      %1243 = vrot.lane.b32.xlu0 %v1223, 16
      %v1244 = vpop.permute.xlu0 %1243
      %v1245 = vsel %vm387, %v1242, %v1244
      %v1246 = vsel %vm387, %v1244, %v1242
      %v1247 = vmul.f32 %v1246, %v394
      %v1248 = vmul.f32 %v1245, %v398
      %1249 = vst [vmem:[#allocation2 + $0x50] sm:$0xf] %v1247
      %1250 = vst [vmem:[#allocation2 + $0x58] sm:$0xf] %v1248
      %1251 = vrot.lane.b32.xlu0 %v1112, 15
      %v1252 = vpop.permute.xlu0 %1251
      %1253 = vrot.lane.b32.xlu0 %v1223, 15
      %v1254 = vpop.permute.xlu0 %1253
      %v1255 = vsel %vm415, %v1252, %v1254
      %v1256 = vsel %vm415, %v1254, %v1252
      %v1257 = vmul.f32 %v1256, %v422
      %v1258 = vmul.f32 %v1255, %v426
      %v1261 = vrot.slane %v1257, 4
      %v1262 = vrot.slane %v1258, 4
      %1265 = vst [vmem:[#allocation2 + $0x50] sm:$0xf0] %v1261
      %1266 = vst [vmem:[#allocation2 + $0x58] sm:$0xf0] %v1262
      %1267 = vrot.lane.b32.xlu0 %v1112, 1
      %v1268 = vpop.permute.xlu0 %1267
      %1269 = vrot.lane.b32.xlu0 %v1223, 1
      %v1270 = vpop.permute.xlu0 %1269
      %v1271 = vsel %vm437, %v1268, %v1270
      %v1272 = vsel %vm437, %v1270, %v1268
      %v1273 = vmul.f32 %v1272, %v444
      %v1274 = vmul.f32 %v1271, %v448
      %1275 = vst [vmem:[#allocation2 + $0x60] sm:$0xf] %v1273
      %1276 = vst [vmem:[#allocation2 + $0x68] sm:$0xf] %v1274
      %v1277 = vcombine.low %v1112, %v1112
      %1279 = vst [vmem:[#allocation2 + $0x60] sm:$0xf0] %v1277
      %1280 = vst [vmem:[#allocation2 + $0x68] sm:$0xf0] %v1112
      %1281 = vrot.lane.b32.xlu0 %v1112, 127
      %v1282 = vpop.permute.xlu0 %1281
      %1283 = vrot.lane.b32.xlu0 %v1223, 127
      %v1284 = vpop.permute.xlu0 %1283
      %v1285 = vsel %vm467, %v1282, %v1284
      %v1286 = vsel %vm467, %v1284, %v1282
      %v1287 = vmul.f32 %v1285, %v474
      %v1288 = vmul.f32 %v1286, %v478
      %1289 = vst [vmem:[#allocation2 + $0x70] sm:$0xf] %v1287
      %1290 = vst [vmem:[#allocation2 + $0x78] sm:$0xf] %v1288
      %1291 = vrot.lane.b32.xlu0 %v1112, 113
      %v1292 = vpop.permute.xlu0 %1291
      %1293 = vrot.lane.b32.xlu0 %v1223, 113
      %v1294 = vpop.permute.xlu0 %1293
      %v1295 = vsel %vm495, %v1292, %v1294
      %v1296 = vsel %vm495, %v1294, %v1292
      %v1297 = vmul.f32 %v1295, %v502
      %v1298 = vmul.f32 %v1296, %v506
      %v1301 = vrot.slane %v1297, 4
      %v1302 = vrot.slane %v1298, 4
      %1305 = vst [vmem:[#allocation2 + $0x70] sm:$0xf0] %v1301
      %1306 = vst [vmem:[#allocation2 + $0x78] sm:$0xf0] %v1302
      %1307 = vrot.lane.b32.xlu0 %v1112, 112
      %v1308 = vpop.permute.xlu0 %1307
      %1309 = vrot.lane.b32.xlu0 %v1223, 112
      %v1310 = vpop.permute.xlu0 %1309
      %v1311 = vsel %vm517, %v1308, %v1310
      %v1312 = vsel %vm517, %v1310, %v1308
      %v1313 = vmul.f32 %v1311, %v524
      %v1314 = vmul.f32 %v1312, %v528
      %1315 = vst [vmem:[#allocation2 + $0x80] sm:$0xf] %v1313
      %1316 = vst [vmem:[#allocation2 + $0x88] sm:$0xf] %v1314
      %1317 = vrot.lane.b32.xlu0 %v1112, 111
      %v1318 = vpop.permute.xlu0 %1317
      %1319 = vrot.lane.b32.xlu0 %v1223, 111
      %v1320 = vpop.permute.xlu0 %1319
      %v1321 = vsel %vm545, %v1318, %v1320
      %v1322 = vsel %vm545, %v1320, %v1318
      %v1323 = vmul.f32 %v1321, %v552
      %v1324 = vmul.f32 %v1322, %v556
      %v1327 = vrot.slane %v1323, 4
      %v1328 = vrot.slane %v1324, 4
      %1331 = vst [vmem:[#allocation2 + $0x80] sm:$0xf0] %v1327
      %1332 = vst [vmem:[#allocation2 + $0x88] sm:$0xf0] %v1328
      %s1333 = scalar_lea.vmem %s3, 8
      %v1334 = vld [vmem:[%s1333] sm:$0xff]
      %v1335 = vld [vmem:[#allocation2] sm:$0xff]
      %v1336 = vld [vmem:[#allocation2 + $0x8] sm:$0xff]
      %v1337 = vld [vmem:[#allocation2 + $0x10] sm:$0xff]
      %v1338 = vld [vmem:[#allocation2 + $0x18] sm:$0xff]
      %v1339 = vld [vmem:[#allocation2 + $0x20] sm:$0xff]
      %v1340 = vld [vmem:[#allocation2 + $0x28] sm:$0xff]
      %v1341 = vld [vmem:[#allocation2 + $0x30] sm:$0xff]
      %v1342 = vld [vmem:[#allocation2 + $0x38] sm:$0xff]
      %v1343 = vld [vmem:[#allocation2 + $0x40] sm:$0xff]
      %v1344 = vld [vmem:[#allocation2 + $0x48] sm:$0xff]
      %v1345 = vld [vmem:[#allocation2 + $0x50] sm:$0xff]
      %v1346 = vld [vmem:[#allocation2 + $0x58] sm:$0xff]
      %v1347 = vld [vmem:[#allocation2 + $0x60] sm:$0xff]
      %v1348 = vld [vmem:[#allocation2 + $0x68] sm:$0xff]
      %v1349 = vld [vmem:[#allocation2 + $0x70] sm:$0xff]
      %v1350 = vld [vmem:[#allocation2 + $0x78] sm:$0xff]
      %v1351 = vld [vmem:[#allocation2 + $0x80] sm:$0xff]
      %v1352 = vld [vmem:[#allocation2 + $0x88] sm:$0xff]
      %s1353 = scalar_lea.vmem %s4, 8
      %v1354 = vld [vmem:[%s1353] sm:$0xff]
      %1356 = vset.pattern.permute.xlu0 0
      %1357 = vperm.xlu0 %1356, %v1354
      %v1358 = vpop.permute.xlu0 %1357
      %v1361 = vsel %vm699, %v1334, 0
      %1363 = vmatprep.subr.mxu0 %v1336
      %1364 = vmatpush1.msra.mxu0 %v1335
      %1365 = vmatprep.subr.mxu0 %v1338
      %1366 = vmatpush1.msra.mxu0 %v1337
      %1367 = vmatprep.subr.mxu0 %v1340
      %1368 = vmatpush1.msra.mxu0 %v1339
      %1369 = vmatprep.subr.mxu0 %v1342
      %1370 = vmatpush1.msra.mxu0 %v1341
      %1371 = vmatprep.subr.mxu0 %v1344
      %1372 = vmatpush1.msra.mxu0 %v1343
      %1373 = vmatprep.subr.mxu0 %v1346
      %1374 = vmatpush1.msra.mxu0 %v1345
      %1375 = vmatprep.subr.mxu0 %v1348
      %1376 = vmatpush1.msra.mxu0 %v1347
      %1377 = vmatprep.subr.mxu0 %v1350
      %1378 = vmatpush1.msra.mxu0 %v1349
      %1379 = vmatprep.subr.mxu0 %v1352
      %1380 = vmatpush1.msra.mxu0 %v1351
      %1381 = vmatprep.subr.mxu0 0.0
      %1382 = vmatpush1.msra.mxu0 0.0
      %1383 = vmatprep.subr.mxu0 0.0
      %1384 = vmatpush1.msra.mxu0 0.0
      %1385 = vmatprep.subr.mxu0 0.0
      %1386 = vmatpush1.msra.mxu0 0.0
      %1387 = vmatprep.subr.mxu0 0.0
      %1388 = vmatpush1.msra.mxu0 0.0
      %1389 = vmatprep.subr.mxu0 0.0
      %1390 = vmatpush1.msra.mxu0 0.0
      %1391 = vmatprep.subr.mxu0 0.0
      %1392 = vmatpush1.msra.mxu0 0.0
      %1393 = vmatprep.subr.mxu0 0.0
      %1394 = vmatpush1.msra.mxu0 0.0
      %1395 = vmatprep.subr.mxu0 0.0
      %1396 = vmatpush1.msra.mxu0 0.0
      %1397 = vmatprep.subr.mxu0 0.0
      %1398 = vmatpush1.msra.mxu0 0.0
      %1399 = vmatprep.subr.mxu0 0.0
      %1400 = vmatpush1.msra.mxu0 0.0
      %1401 = vmatprep.subr.mxu0 0.0
      %1402 = vmatpush1.msra.mxu0 0.0
      %1403 = vmatprep.subr.mxu0 0.0
      %1404 = vmatpush1.msra.mxu0 0.0
      %1405 = vmatprep.subr.mxu0 0.0
      %1406 = vmatpush1.msra.mxu0 0.0
      %1407 = vmatprep.subr.mxu0 0.0
      %1408 = vmatpush1.msra.mxu0 0.0
      %1409 = vmatprep.subr.mxu0 0.0
      %1410 = vmatpush1.msra.mxu0 0.0
      %1411 = vmatprep.subr.mxu0 0.0
      %1412 = vmatpush1.msra.mxu0 0.0
      %1413 = vmatprep.subr.mxu0 0.0
      %1414 = vmatpush1.msra.mxu0 0.0
      %1415 = vmatprep.subr.mxu0 0.0
      %1416 = vmatpush1.msra.mxu0 0.0
      %1417 = vmatprep.subr.mxu0 0.0
      %1418 = vmatpush1.msra.mxu0 0.0
      %1419 = vmatprep.subr.mxu0 0.0
      %1420 = vmatpush1.msra.mxu0 0.0
      %1421 = vmatprep.subr.mxu0 0.0
      %1422 = vmatpush1.msra.mxu0 0.0
      %1423 = vmatprep.subr.mxu0 0.0
      %1424 = vmatpush1.msra.mxu0 0.0
      %1425 = vmatprep.subr.mxu0 0.0
      %1426 = vmatpush1.msra.mxu0 0.0
      %1427 = vmatprep.mubr.f32.mxu0 0.0
      %1428 = vmatmul.mubr.f32.gmra.mrb[0].mxu0 %v1361
      %v1429 = vpop.f32.mrb[0].mxu0
      %v1430 = vadd.f32 %v1358, %v1429
      %v1431 = vpop.f32.mrb[0].mxu0
      %v1432 = vadd.f32 %v1358, %v1431
      %1433 = vdwg.mxu0
      %vm1434 = vcmp.gt.f32.partialorder %v1430, 0.0
      %vm1435 = vcmp.gt.f32.partialorder %v1432, 0.0
      %v1436 = vmul.f32 %v1430, 0.2
      %v1437 = vmul.f32 %v1432, 0.2
      %v1438 = vsel %vm1434, %v1430, %v1436
      %v1439 = vsel %vm1435, %v1432, %v1437
      %1440 = vrot.lane.b32.xlu0 %v1438, 17
      %v1441 = vpop.permute.xlu0 %1440
      %1442 = vrot.lane.b32.xlu0 %v1439, 17
      %v1443 = vpop.permute.xlu0 %1442
      %v1444 = vsel %vm365, %v1441, %v1443
      %v1445 = vsel %vm365, %v1443, %v1441
      %v1446 = vmul.f32 %v1445, %v372
      %v1447 = vmul.f32 %v1444, %v376
      %1448 = vst [vmem:[#allocation2] sm:$0xf] %v1446
      %1449 = vst [vmem:[#allocation2 + $0x8] sm:$0xf] %v1447
      %1450 = vrot.lane.b32.xlu0 %v1438, 16
      %v1451 = vpop.permute.xlu0 %1450
      %1452 = vrot.lane.b32.xlu0 %v1439, 16
      %v1453 = vpop.permute.xlu0 %1452
      %v1454 = vsel %vm387, %v1451, %v1453
      %v1455 = vsel %vm387, %v1453, %v1451
      %v1456 = vmul.f32 %v1455, %v394
      %v1457 = vmul.f32 %v1454, %v398
      %v1460 = vrot.slane %v1456, 4
      %v1461 = vrot.slane %v1457, 4
      %1464 = vst [vmem:[#allocation2] sm:$0xf0] %v1460
      %1465 = vst [vmem:[#allocation2 + $0x8] sm:$0xf0] %v1461
      %1466 = vrot.lane.b32.xlu0 %v1438, 15
      %v1467 = vpop.permute.xlu0 %1466
      %1468 = vrot.lane.b32.xlu0 %v1439, 15
      %v1469 = vpop.permute.xlu0 %1468
      %v1470 = vsel %vm415, %v1467, %v1469
      %v1471 = vsel %vm415, %v1469, %v1467
      %v1472 = vmul.f32 %v1471, %v422
      %v1473 = vmul.f32 %v1470, %v426
      %1474 = vst [vmem:[#allocation2 + $0x10] sm:$0xf] %v1472
      %1475 = vst [vmem:[#allocation2 + $0x18] sm:$0xf] %v1473
      %1476 = vrot.lane.b32.xlu0 %v1438, 1
      %v1477 = vpop.permute.xlu0 %1476
      %1478 = vrot.lane.b32.xlu0 %v1439, 1
      %v1479 = vpop.permute.xlu0 %1478
      %v1480 = vsel %vm437, %v1477, %v1479
      %v1481 = vsel %vm437, %v1479, %v1477
      %v1482 = vmul.f32 %v1481, %v444
      %v1483 = vmul.f32 %v1480, %v448
      %v1486 = vrot.slane %v1482, 4
      %v1487 = vrot.slane %v1483, 4
      %1490 = vst [vmem:[#allocation2 + $0x10] sm:$0xf0] %v1486
      %1491 = vst [vmem:[#allocation2 + $0x18] sm:$0xf0] %v1487
      %1492 = vst [vmem:[#allocation2 + $0x20] sm:$0xf] %v1438
      %1493 = vst [vmem:[#allocation2 + $0x28] sm:$0xf] %v1439
      %1494 = vrot.lane.b32.xlu0 %v1438, 127
      %v1495 = vpop.permute.xlu0 %1494
      %1496 = vrot.lane.b32.xlu0 %v1439, 127
      %v1497 = vpop.permute.xlu0 %1496
      %v1498 = vsel %vm467, %v1495, %v1497
      %v1499 = vsel %vm467, %v1497, %v1495
      %v1500 = vmul.f32 %v1498, %v474
      %v1501 = vmul.f32 %v1499, %v478
      %v1504 = vrot.slane %v1500, 4
      %v1505 = vrot.slane %v1501, 4
      %1508 = vst [vmem:[#allocation2 + $0x20] sm:$0xf0] %v1504
      %1509 = vst [vmem:[#allocation2 + $0x28] sm:$0xf0] %v1505
      %1510 = vrot.lane.b32.xlu0 %v1438, 113
      %v1511 = vpop.permute.xlu0 %1510
      %1512 = vrot.lane.b32.xlu0 %v1439, 113
      %v1513 = vpop.permute.xlu0 %1512
      %v1514 = vsel %vm495, %v1511, %v1513
      %v1515 = vsel %vm495, %v1513, %v1511
      %v1516 = vmul.f32 %v1514, %v502
      %v1517 = vmul.f32 %v1515, %v506
      %1518 = vst [vmem:[#allocation2 + $0x30] sm:$0xf] %v1516
      %1519 = vst [vmem:[#allocation2 + $0x38] sm:$0xf] %v1517
      %1520 = vrot.lane.b32.xlu0 %v1438, 112
      %v1521 = vpop.permute.xlu0 %1520
      %1522 = vrot.lane.b32.xlu0 %v1439, 112
      %v1523 = vpop.permute.xlu0 %1522
      %v1524 = vsel %vm517, %v1521, %v1523
      %v1525 = vsel %vm517, %v1523, %v1521
      %v1526 = vmul.f32 %v1524, %v524
      %v1527 = vmul.f32 %v1525, %v528
      %v1530 = vrot.slane %v1526, 4
      %v1531 = vrot.slane %v1527, 4
      %1534 = vst [vmem:[#allocation2 + $0x30] sm:$0xf0] %v1530
      %1535 = vst [vmem:[#allocation2 + $0x38] sm:$0xf0] %v1531
      %1536 = vrot.lane.b32.xlu0 %v1438, 111
      %v1537 = vpop.permute.xlu0 %1536
      %1538 = vrot.lane.b32.xlu0 %v1439, 111
      %v1539 = vpop.permute.xlu0 %1538
      %v1540 = vsel %vm545, %v1537, %v1539
      %v1541 = vsel %vm545, %v1539, %v1537
      %v1542 = vmul.f32 %v1540, %v552
      %v1543 = vmul.f32 %v1541, %v556
      %1544 = vst [vmem:[#allocation2 + $0x40] sm:$0xf] %v1542
      %1545 = vst [vmem:[#allocation2 + $0x48] sm:$0xf] %v1543
      %v1548 = vrot.slane %v1438, 4
      %v1549 = vrot.slane %v1439, 4
      %1552 = vrot.lane.b32.xlu0 %v1548, 17
      %v1553 = vpop.permute.xlu0 %1552
      %1554 = vrot.lane.b32.xlu0 %v1549, 17
      %v1555 = vpop.permute.xlu0 %1554
      %v1556 = vsel %vm365, %v1553, %v1555
      %v1557 = vsel %vm365, %v1555, %v1553
      %v1558 = vmul.f32 %v1557, %v372
      %v1559 = vmul.f32 %v1556, %v376
      %v1562 = vrot.slane %v1558, 4
      %v1563 = vrot.slane %v1559, 4
      %1566 = vst [vmem:[#allocation2 + $0x40] sm:$0xf0] %v1562
      %1567 = vst [vmem:[#allocation2 + $0x48] sm:$0xf0] %v1563
      %1568 = vrot.lane.b32.xlu0 %v1548, 16
      %v1569 = vpop.permute.xlu0 %1568
      %1570 = vrot.lane.b32.xlu0 %v1549, 16
      %v1571 = vpop.permute.xlu0 %1570
      %v1572 = vsel %vm387, %v1569, %v1571
      %v1573 = vsel %vm387, %v1571, %v1569
      %v1574 = vmul.f32 %v1573, %v394
      %v1575 = vmul.f32 %v1572, %v398
      %1576 = vst [vmem:[#allocation2 + $0x50] sm:$0xf] %v1574
      %1577 = vst [vmem:[#allocation2 + $0x58] sm:$0xf] %v1575
      %1578 = vrot.lane.b32.xlu0 %v1548, 15
      %v1579 = vpop.permute.xlu0 %1578
      %1580 = vrot.lane.b32.xlu0 %v1549, 15
      %v1581 = vpop.permute.xlu0 %1580
      %v1582 = vsel %vm415, %v1579, %v1581
      %v1583 = vsel %vm415, %v1581, %v1579
      %v1584 = vmul.f32 %v1583, %v422
      %v1585 = vmul.f32 %v1582, %v426
      %v1588 = vrot.slane %v1584, 4
      %v1589 = vrot.slane %v1585, 4
      %1592 = vst [vmem:[#allocation2 + $0x50] sm:$0xf0] %v1588
      %1593 = vst [vmem:[#allocation2 + $0x58] sm:$0xf0] %v1589
      %1594 = vrot.lane.b32.xlu0 %v1548, 1
      %v1595 = vpop.permute.xlu0 %1594
      %1596 = vrot.lane.b32.xlu0 %v1549, 1
      %v1597 = vpop.permute.xlu0 %1596
      %v1598 = vsel %vm437, %v1595, %v1597
      %v1599 = vsel %vm437, %v1597, %v1595
      %v1600 = vmul.f32 %v1599, %v444
      %v1601 = vmul.f32 %v1598, %v448
      %1602 = vst [vmem:[#allocation2 + $0x60] sm:$0xf] %v1600
      %1603 = vst [vmem:[#allocation2 + $0x68] sm:$0xf] %v1601
      %1604 = vst [vmem:[#allocation2 + $0x60] sm:$0xf0] %v1438
      %1605 = vst [vmem:[#allocation2 + $0x68] sm:$0xf0] %v1439
      %1606 = vrot.lane.b32.xlu0 %v1548, 127
      %v1607 = vpop.permute.xlu0 %1606
      %1608 = vrot.lane.b32.xlu0 %v1549, 127
      %v1609 = vpop.permute.xlu0 %1608
      %v1610 = vsel %vm467, %v1607, %v1609
      %v1611 = vsel %vm467, %v1609, %v1607
      %v1612 = vmul.f32 %v1610, %v474
      %v1613 = vmul.f32 %v1611, %v478
      %1614 = vst [vmem:[#allocation2 + $0x70] sm:$0xf] %v1612
      %1615 = vst [vmem:[#allocation2 + $0x78] sm:$0xf] %v1613
      %1616 = vrot.lane.b32.xlu0 %v1548, 113
      %v1617 = vpop.permute.xlu0 %1616
      %1618 = vrot.lane.b32.xlu0 %v1549, 113
      %v1619 = vpop.permute.xlu0 %1618
      %v1620 = vsel %vm495, %v1617, %v1619
      %v1621 = vsel %vm495, %v1619, %v1617
      %v1622 = vmul.f32 %v1620, %v502
      %v1623 = vmul.f32 %v1621, %v506
      %v1626 = vrot.slane %v1622, 4
      %v1627 = vrot.slane %v1623, 4
      %1630 = vst [vmem:[#allocation2 + $0x70] sm:$0xf0] %v1626
      %1631 = vst [vmem:[#allocation2 + $0x78] sm:$0xf0] %v1627
      %1632 = vrot.lane.b32.xlu0 %v1548, 112
      %v1633 = vpop.permute.xlu0 %1632
      %1634 = vrot.lane.b32.xlu0 %v1549, 112
      %v1635 = vpop.permute.xlu0 %1634
      %v1636 = vsel %vm517, %v1633, %v1635
      %v1637 = vsel %vm517, %v1635, %v1633
      %v1638 = vmul.f32 %v1636, %v524
      %v1639 = vmul.f32 %v1637, %v528
      %1640 = vst [vmem:[#allocation2 + $0x80] sm:$0xf] %v1638
      %1641 = vst [vmem:[#allocation2 + $0x88] sm:$0xf] %v1639
      %1642 = vrot.lane.b32.xlu0 %v1548, 111
      %v1643 = vpop.permute.xlu0 %1642
      %1644 = vrot.lane.b32.xlu0 %v1549, 111
      %v1645 = vpop.permute.xlu0 %1644
      %v1646 = vsel %vm545, %v1643, %v1645
      %v1647 = vsel %vm545, %v1645, %v1643
      %v1648 = vmul.f32 %v1646, %v552
      %v1649 = vmul.f32 %v1647, %v556
      %v1652 = vrot.slane %v1648, 4
      %v1653 = vrot.slane %v1649, 4
      %1656 = vst [vmem:[#allocation2 + $0x80] sm:$0xf0] %v1652
      %1657 = vst [vmem:[#allocation2 + $0x88] sm:$0xf0] %v1653
      %s1658 = scalar_lea.vmem %s5, 8
      %v1659 = vld [vmem:[%s1658] sm:$0xff]
      %v1660 = vld [vmem:[#allocation2] sm:$0xff]
      %v1661 = vld [vmem:[#allocation2 + $0x8] sm:$0xff]
      %v1662 = vld [vmem:[#allocation2 + $0x10] sm:$0xff]
      %v1663 = vld [vmem:[#allocation2 + $0x18] sm:$0xff]
      %v1664 = vld [vmem:[#allocation2 + $0x20] sm:$0xff]
      %v1665 = vld [vmem:[#allocation2 + $0x28] sm:$0xff]
      %v1666 = vld [vmem:[#allocation2 + $0x30] sm:$0xff]
      %v1667 = vld [vmem:[#allocation2 + $0x38] sm:$0xff]
      %v1668 = vld [vmem:[#allocation2 + $0x40] sm:$0xff]
      %v1669 = vld [vmem:[#allocation2 + $0x48] sm:$0xff]
      %v1670 = vld [vmem:[#allocation2 + $0x50] sm:$0xff]
      %v1671 = vld [vmem:[#allocation2 + $0x58] sm:$0xff]
      %v1672 = vld [vmem:[#allocation2 + $0x60] sm:$0xff]
      %v1673 = vld [vmem:[#allocation2 + $0x68] sm:$0xff]
      %v1674 = vld [vmem:[#allocation2 + $0x70] sm:$0xff]
      %v1675 = vld [vmem:[#allocation2 + $0x78] sm:$0xff]
      %v1676 = vld [vmem:[#allocation2 + $0x80] sm:$0xff]
      %v1677 = vld [vmem:[#allocation2 + $0x88] sm:$0xff]
      %s1678 = scalar_lea.vmem %s6, 8
      %v1679 = vld [vmem:[%s1678] sm:$0xff]
      %1681 = vset.pattern.permute.xlu0 0
      %1682 = vperm.xlu0 %1681, %v1679
      %v1683 = vpop.permute.xlu0 %1682
      %v1686 = vsel %vm699, %v1659, 0
      %1688 = vmatprep.subr.mxu0 %v1661
      %1689 = vmatpush1.msra.mxu0 %v1660
      %1690 = vmatprep.subr.mxu0 %v1663
      %1691 = vmatpush1.msra.mxu0 %v1662
      %1692 = vmatprep.subr.mxu0 %v1665
      %1693 = vmatpush1.msra.mxu0 %v1664
      %1694 = vmatprep.subr.mxu0 %v1667
      %1695 = vmatpush1.msra.mxu0 %v1666
      %1696 = vmatprep.subr.mxu0 %v1669
      %1697 = vmatpush1.msra.mxu0 %v1668
      %1698 = vmatprep.subr.mxu0 %v1671
      %1699 = vmatpush1.msra.mxu0 %v1670
      %1700 = vmatprep.subr.mxu0 %v1673
      %1701 = vmatpush1.msra.mxu0 %v1672
      %1702 = vmatprep.subr.mxu0 %v1675
      %1703 = vmatpush1.msra.mxu0 %v1674
      %1704 = vmatprep.subr.mxu0 %v1677
      %1705 = vmatpush1.msra.mxu0 %v1676
      %1706 = vmatprep.subr.mxu0 0.0
      %1707 = vmatpush1.msra.mxu0 0.0
      %1708 = vmatprep.subr.mxu0 0.0
      %1709 = vmatpush1.msra.mxu0 0.0
      %1710 = vmatprep.subr.mxu0 0.0
      %1711 = vmatpush1.msra.mxu0 0.0
      %1712 = vmatprep.subr.mxu0 0.0
      %1713 = vmatpush1.msra.mxu0 0.0
      %1714 = vmatprep.subr.mxu0 0.0
      %1715 = vmatpush1.msra.mxu0 0.0
      %1716 = vmatprep.subr.mxu0 0.0
      %1717 = vmatpush1.msra.mxu0 0.0
      %1718 = vmatprep.subr.mxu0 0.0
      %1719 = vmatpush1.msra.mxu0 0.0
      %1720 = vmatprep.subr.mxu0 0.0
      %1721 = vmatpush1.msra.mxu0 0.0
      %1722 = vmatprep.subr.mxu0 0.0
      %1723 = vmatpush1.msra.mxu0 0.0
      %1724 = vmatprep.subr.mxu0 0.0
      %1725 = vmatpush1.msra.mxu0 0.0
      %1726 = vmatprep.subr.mxu0 0.0
      %1727 = vmatpush1.msra.mxu0 0.0
      %1728 = vmatprep.subr.mxu0 0.0
      %1729 = vmatpush1.msra.mxu0 0.0
      %1730 = vmatprep.subr.mxu0 0.0
      %1731 = vmatpush1.msra.mxu0 0.0
      %1732 = vmatprep.subr.mxu0 0.0
      %1733 = vmatpush1.msra.mxu0 0.0
      %1734 = vmatprep.subr.mxu0 0.0
      %1735 = vmatpush1.msra.mxu0 0.0
      %1736 = vmatprep.subr.mxu0 0.0
      %1737 = vmatpush1.msra.mxu0 0.0
      %1738 = vmatprep.subr.mxu0 0.0
      %1739 = vmatpush1.msra.mxu0 0.0
      %1740 = vmatprep.subr.mxu0 0.0
      %1741 = vmatpush1.msra.mxu0 0.0
      %1742 = vmatprep.subr.mxu0 0.0
      %1743 = vmatpush1.msra.mxu0 0.0
      %1744 = vmatprep.subr.mxu0 0.0
      %1745 = vmatpush1.msra.mxu0 0.0
      %1746 = vmatprep.subr.mxu0 0.0
      %1747 = vmatpush1.msra.mxu0 0.0
      %1748 = vmatprep.subr.mxu0 0.0
      %1749 = vmatpush1.msra.mxu0 0.0
      %1750 = vmatprep.subr.mxu0 0.0
      %1751 = vmatpush1.msra.mxu0 0.0
      %1752 = vmatprep.mubr.f32.mxu0 0.0
      %1753 = vmatmul.mubr.f32.gmra.mrb[0].mxu0 %v1686
      %v1754 = vpop.f32.mrb[0].mxu0
      %v1755 = vadd.f32 %v1683, %v1754
      %v1756 = vpop.f32.mrb[0].mxu0
      %v1757 = vadd.f32 %v1683, %v1756
      %1758 = vdwg.mxu0
      %v1761 = vrot.slane %v1755, 4
      %v1762 = vrot.slane %v1757, 4
      %v1765 = vmul.f32 %v1755, %v1761
      %v1766 = vmul.f32 %v1757, %v1762
      %v1769 = vcombine.low %v1765, %v1766
      %v1771 = vadd.f32 %v1109, %v1769
      %v1772 = vcombine.high %v1755, %v1757
      %v1774 = vadd.f32 %v1112, %v1772
      %v1776 = vcombine.high %v1771, %v1771
      %1778 = vrot.lane.b32.xlu0 %v1771, 17
      %v1779 = vpop.permute.xlu0 %1778
      %1780 = vrot.lane.b32.xlu0 %v1776, 17
      %v1781 = vpop.permute.xlu0 %1780
      %v1782 = vsel %vm365, %v1779, %v1781
      %v1783 = vsel %vm365, %v1781, %v1779
      %v1784 = vmul.f32 %v1783, %v372
      %v1785 = vmul.f32 %v1782, %v376
      %1786 = vst [vmem:[#allocation2] sm:$0xf] %v1784
      %1787 = vst [vmem:[#allocation2 + $0x8] sm:$0xf] %v1785
      %1788 = vrot.lane.b32.xlu0 %v1771, 16
      %v1789 = vpop.permute.xlu0 %1788
      %1790 = vrot.lane.b32.xlu0 %v1776, 16
      %v1791 = vpop.permute.xlu0 %1790
      %v1792 = vsel %vm387, %v1789, %v1791
      %v1793 = vsel %vm387, %v1791, %v1789
      %v1794 = vmul.f32 %v1793, %v394
      %v1795 = vmul.f32 %v1792, %v398
      %v1798 = vrot.slane %v1794, 4
      %v1799 = vrot.slane %v1795, 4
      %1802 = vst [vmem:[#allocation2] sm:$0xf0] %v1798
      %1803 = vst [vmem:[#allocation2 + $0x8] sm:$0xf0] %v1799
      %1804 = vrot.lane.b32.xlu0 %v1771, 15
      %v1805 = vpop.permute.xlu0 %1804
      %1806 = vrot.lane.b32.xlu0 %v1776, 15
      %v1807 = vpop.permute.xlu0 %1806
      %v1808 = vsel %vm415, %v1805, %v1807
      %v1809 = vsel %vm415, %v1807, %v1805
      %v1810 = vmul.f32 %v1809, %v422
      %v1811 = vmul.f32 %v1808, %v426
      %1812 = vst [vmem:[#allocation2 + $0x10] sm:$0xf] %v1810
      %1813 = vst [vmem:[#allocation2 + $0x18] sm:$0xf] %v1811
      %1814 = vrot.lane.b32.xlu0 %v1771, 1
      %v1815 = vpop.permute.xlu0 %1814
      %1816 = vrot.lane.b32.xlu0 %v1776, 1
      %v1817 = vpop.permute.xlu0 %1816
      %v1818 = vsel %vm437, %v1815, %v1817
      %v1819 = vsel %vm437, %v1817, %v1815
      %v1820 = vmul.f32 %v1819, %v444
      %v1821 = vmul.f32 %v1818, %v448
      %v1824 = vrot.slane %v1820, 4
      %v1825 = vrot.slane %v1821, 4
      %1828 = vst [vmem:[#allocation2 + $0x10] sm:$0xf0] %v1824
      %1829 = vst [vmem:[#allocation2 + $0x18] sm:$0xf0] %v1825
      %1830 = vst [vmem:[#allocation2 + $0x20] sm:$0xf] %v1771
      %1831 = vst [vmem:[#allocation2 + $0x28] sm:$0xf] %v1776
      %1832 = vrot.lane.b32.xlu0 %v1771, 127
      %v1833 = vpop.permute.xlu0 %1832
      %1834 = vrot.lane.b32.xlu0 %v1776, 127
      %v1835 = vpop.permute.xlu0 %1834
      %v1836 = vsel %vm467, %v1833, %v1835
      %v1837 = vsel %vm467, %v1835, %v1833
      %v1838 = vmul.f32 %v1836, %v474
      %v1839 = vmul.f32 %v1837, %v478
      %v1842 = vrot.slane %v1838, 4
      %v1843 = vrot.slane %v1839, 4
      %1846 = vst [vmem:[#allocation2 + $0x20] sm:$0xf0] %v1842
      %1847 = vst [vmem:[#allocation2 + $0x28] sm:$0xf0] %v1843
      %1848 = vrot.lane.b32.xlu0 %v1771, 113
      %v1849 = vpop.permute.xlu0 %1848
      %1850 = vrot.lane.b32.xlu0 %v1776, 113
      %v1851 = vpop.permute.xlu0 %1850
      %v1852 = vsel %vm495, %v1849, %v1851
      %v1853 = vsel %vm495, %v1851, %v1849
      %v1854 = vmul.f32 %v1852, %v502
      %v1855 = vmul.f32 %v1853, %v506
      %1856 = vst [vmem:[#allocation2 + $0x30] sm:$0xf] %v1854
      %1857 = vst [vmem:[#allocation2 + $0x38] sm:$0xf] %v1855
      %1858 = vrot.lane.b32.xlu0 %v1771, 112
      %v1859 = vpop.permute.xlu0 %1858
      %1860 = vrot.lane.b32.xlu0 %v1776, 112
      %v1861 = vpop.permute.xlu0 %1860
      %v1862 = vsel %vm517, %v1859, %v1861
      %v1863 = vsel %vm517, %v1861, %v1859
      %v1864 = vmul.f32 %v1862, %v524
      %v1865 = vmul.f32 %v1863, %v528
      %v1868 = vrot.slane %v1864, 4
      %v1869 = vrot.slane %v1865, 4
      %1872 = vst [vmem:[#allocation2 + $0x30] sm:$0xf0] %v1868
      %1873 = vst [vmem:[#allocation2 + $0x38] sm:$0xf0] %v1869
      %1874 = vrot.lane.b32.xlu0 %v1771, 111
      %v1875 = vpop.permute.xlu0 %1874
      %1876 = vrot.lane.b32.xlu0 %v1776, 111
      %v1877 = vpop.permute.xlu0 %1876
      %v1878 = vsel %vm545, %v1875, %v1877
      %v1879 = vsel %vm545, %v1877, %v1875
      %v1880 = vmul.f32 %v1878, %v552
      %v1881 = vmul.f32 %v1879, %v556
      %1882 = vst [vmem:[#allocation2 + $0x40] sm:$0xf] %v1880
      %1883 = vst [vmem:[#allocation2 + $0x48] sm:$0xf] %v1881
      %v1885 = vcombine.high %v1774, %v1774
      %1887 = vrot.lane.b32.xlu0 %v1774, 17
      %v1888 = vpop.permute.xlu0 %1887
      %1889 = vrot.lane.b32.xlu0 %v1885, 17
      %v1890 = vpop.permute.xlu0 %1889
      %v1891 = vsel %vm365, %v1888, %v1890
      %v1892 = vsel %vm365, %v1890, %v1888
      %v1893 = vmul.f32 %v1892, %v372
      %v1894 = vmul.f32 %v1891, %v376
      %v1897 = vrot.slane %v1893, 4
      %v1898 = vrot.slane %v1894, 4
      %1901 = vst [vmem:[#allocation2 + $0x40] sm:$0xf0] %v1897
      %1902 = vst [vmem:[#allocation2 + $0x48] sm:$0xf0] %v1898
      %1903 = vrot.lane.b32.xlu0 %v1774, 16
      %v1904 = vpop.permute.xlu0 %1903
      %1905 = vrot.lane.b32.xlu0 %v1885, 16
      %v1906 = vpop.permute.xlu0 %1905
      %v1907 = vsel %vm387, %v1904, %v1906
      %v1908 = vsel %vm387, %v1906, %v1904
      %v1909 = vmul.f32 %v1908, %v394
      %v1910 = vmul.f32 %v1907, %v398
      %1911 = vst [vmem:[#allocation2 + $0x50] sm:$0xf] %v1909
      %1912 = vst [vmem:[#allocation2 + $0x58] sm:$0xf] %v1910
      %1913 = vrot.lane.b32.xlu0 %v1774, 15
      %v1914 = vpop.permute.xlu0 %1913
      %1915 = vrot.lane.b32.xlu0 %v1885, 15
      %v1916 = vpop.permute.xlu0 %1915
      %v1917 = vsel %vm415, %v1914, %v1916
      %v1918 = vsel %vm415, %v1916, %v1914
      %v1919 = vmul.f32 %v1918, %v422
      %v1920 = vmul.f32 %v1917, %v426
      %v1923 = vrot.slane %v1919, 4
      %v1924 = vrot.slane %v1920, 4
      %1927 = vst [vmem:[#allocation2 + $0x50] sm:$0xf0] %v1923
      %1928 = vst [vmem:[#allocation2 + $0x58] sm:$0xf0] %v1924
      %1929 = vrot.lane.b32.xlu0 %v1774, 1
      %v1930 = vpop.permute.xlu0 %1929
      %1931 = vrot.lane.b32.xlu0 %v1885, 1
      %v1932 = vpop.permute.xlu0 %1931
      %v1933 = vsel %vm437, %v1930, %v1932
      %v1934 = vsel %vm437, %v1932, %v1930
      %v1935 = vmul.f32 %v1934, %v444
      %v1936 = vmul.f32 %v1933, %v448
      %1937 = vst [vmem:[#allocation2 + $0x60] sm:$0xf] %v1935
      %1938 = vst [vmem:[#allocation2 + $0x68] sm:$0xf] %v1936
      %v1939 = vcombine.low %v1774, %v1774
      %1941 = vst [vmem:[#allocation2 + $0x60] sm:$0xf0] %v1939
      %1942 = vst [vmem:[#allocation2 + $0x68] sm:$0xf0] %v1774
      %1943 = vrot.lane.b32.xlu0 %v1774, 127
      %v1944 = vpop.permute.xlu0 %1943
      %1945 = vrot.lane.b32.xlu0 %v1885, 127
      %v1946 = vpop.permute.xlu0 %1945
      %v1947 = vsel %vm467, %v1944, %v1946
      %v1948 = vsel %vm467, %v1946, %v1944
      %v1949 = vmul.f32 %v1947, %v474
      %v1950 = vmul.f32 %v1948, %v478
      %1951 = vst [vmem:[#allocation2 + $0x70] sm:$0xf] %v1949
      %1952 = vst [vmem:[#allocation2 + $0x78] sm:$0xf] %v1950
      %1953 = vrot.lane.b32.xlu0 %v1774, 113
      %v1954 = vpop.permute.xlu0 %1953
      %1955 = vrot.lane.b32.xlu0 %v1885, 113
      %v1956 = vpop.permute.xlu0 %1955
      %v1957 = vsel %vm495, %v1954, %v1956
      %v1958 = vsel %vm495, %v1956, %v1954
      %v1959 = vmul.f32 %v1957, %v502
      %v1960 = vmul.f32 %v1958, %v506
      %v1963 = vrot.slane %v1959, 4
      %v1964 = vrot.slane %v1960, 4
      %1967 = vst [vmem:[#allocation2 + $0x70] sm:$0xf0] %v1963
      %1968 = vst [vmem:[#allocation2 + $0x78] sm:$0xf0] %v1964
      %1969 = vrot.lane.b32.xlu0 %v1774, 112
      %v1970 = vpop.permute.xlu0 %1969
      %1971 = vrot.lane.b32.xlu0 %v1885, 112
      %v1972 = vpop.permute.xlu0 %1971
      %v1973 = vsel %vm517, %v1970, %v1972
      %v1974 = vsel %vm517, %v1972, %v1970
      %v1975 = vmul.f32 %v1973, %v524
      %v1976 = vmul.f32 %v1974, %v528
      %1977 = vst [vmem:[#allocation2 + $0x80] sm:$0xf] %v1975
      %1978 = vst [vmem:[#allocation2 + $0x88] sm:$0xf] %v1976
      %1979 = vrot.lane.b32.xlu0 %v1774, 111
      %v1980 = vpop.permute.xlu0 %1979
      %1981 = vrot.lane.b32.xlu0 %v1885, 111
      %v1982 = vpop.permute.xlu0 %1981
      %v1983 = vsel %vm545, %v1980, %v1982
      %v1984 = vsel %vm545, %v1982, %v1980
      %v1985 = vmul.f32 %v1983, %v552
      %v1986 = vmul.f32 %v1984, %v556
      %v1989 = vrot.slane %v1985, 4
      %v1990 = vrot.slane %v1986, 4
      %1993 = vst [vmem:[#allocation2 + $0x80] sm:$0xf0] %v1989
      %1994 = vst [vmem:[#allocation2 + $0x88] sm:$0xf0] %v1990
      %s1995 = scalar_lea.vmem %s3, 16
      %v1996 = vld [vmem:[%s1995] sm:$0xff]
      %v1997 = vld [vmem:[#allocation2] sm:$0xff]
      %v1998 = vld [vmem:[#allocation2 + $0x8] sm:$0xff]
      %v1999 = vld [vmem:[#allocation2 + $0x10] sm:$0xff]
      %v2000 = vld [vmem:[#allocation2 + $0x18] sm:$0xff]
      %v2001 = vld [vmem:[#allocation2 + $0x20] sm:$0xff]
      %v2002 = vld [vmem:[#allocation2 + $0x28] sm:$0xff]
      %v2003 = vld [vmem:[#allocation2 + $0x30] sm:$0xff]
      %v2004 = vld [vmem:[#allocation2 + $0x38] sm:$0xff]
      %v2005 = vld [vmem:[#allocation2 + $0x40] sm:$0xff]
      %v2006 = vld [vmem:[#allocation2 + $0x48] sm:$0xff]
      %v2007 = vld [vmem:[#allocation2 + $0x50] sm:$0xff]
      %v2008 = vld [vmem:[#allocation2 + $0x58] sm:$0xff]
      %v2009 = vld [vmem:[#allocation2 + $0x60] sm:$0xff]
      %v2010 = vld [vmem:[#allocation2 + $0x68] sm:$0xff]
      %v2011 = vld [vmem:[#allocation2 + $0x70] sm:$0xff]
      %v2012 = vld [vmem:[#allocation2 + $0x78] sm:$0xff]
      %v2013 = vld [vmem:[#allocation2 + $0x80] sm:$0xff]
      %v2014 = vld [vmem:[#allocation2 + $0x88] sm:$0xff]
      %s2015 = scalar_lea.vmem %s4, 16
      %v2016 = vld [vmem:[%s2015] sm:$0xff]
      %2018 = vset.pattern.permute.xlu0 0
      %2019 = vperm.xlu0 %2018, %v2016
      %v2020 = vpop.permute.xlu0 %2019
      %v2023 = vsel %vm699, %v1996, 0
      %2025 = vmatprep.subr.mxu0 %v1998
      %2026 = vmatpush1.msra.mxu0 %v1997
      %2027 = vmatprep.subr.mxu0 %v2000
      %2028 = vmatpush1.msra.mxu0 %v1999
      %2029 = vmatprep.subr.mxu0 %v2002
      %2030 = vmatpush1.msra.mxu0 %v2001
      %2031 = vmatprep.subr.mxu0 %v2004
      %2032 = vmatpush1.msra.mxu0 %v2003
      %2033 = vmatprep.subr.mxu0 %v2006
      %2034 = vmatpush1.msra.mxu0 %v2005
      %2035 = vmatprep.subr.mxu0 %v2008
      %2036 = vmatpush1.msra.mxu0 %v2007
      %2037 = vmatprep.subr.mxu0 %v2010
      %2038 = vmatpush1.msra.mxu0 %v2009
      %2039 = vmatprep.subr.mxu0 %v2012
      %2040 = vmatpush1.msra.mxu0 %v2011
      %2041 = vmatprep.subr.mxu0 %v2014
      %2042 = vmatpush1.msra.mxu0 %v2013
      %2043 = vmatprep.subr.mxu0 0.0
      %2044 = vmatpush1.msra.mxu0 0.0
      %2045 = vmatprep.subr.mxu0 0.0
      %2046 = vmatpush1.msra.mxu0 0.0
      %2047 = vmatprep.subr.mxu0 0.0
      %2048 = vmatpush1.msra.mxu0 0.0
      %2049 = vmatprep.subr.mxu0 0.0
      %2050 = vmatpush1.msra.mxu0 0.0
      %2051 = vmatprep.subr.mxu0 0.0
      %2052 = vmatpush1.msra.mxu0 0.0
      %2053 = vmatprep.subr.mxu0 0.0
      %2054 = vmatpush1.msra.mxu0 0.0
      %2055 = vmatprep.subr.mxu0 0.0
      %2056 = vmatpush1.msra.mxu0 0.0
      %2057 = vmatprep.subr.mxu0 0.0
      %2058 = vmatpush1.msra.mxu0 0.0
      %2059 = vmatprep.subr.mxu0 0.0
      %2060 = vmatpush1.msra.mxu0 0.0
      %2061 = vmatprep.subr.mxu0 0.0
      %2062 = vmatpush1.msra.mxu0 0.0
      %2063 = vmatprep.subr.mxu0 0.0
      %2064 = vmatpush1.msra.mxu0 0.0
      %2065 = vmatprep.subr.mxu0 0.0
      %2066 = vmatpush1.msra.mxu0 0.0
      %2067 = vmatprep.subr.mxu0 0.0
      %2068 = vmatpush1.msra.mxu0 0.0
      %2069 = vmatprep.subr.mxu0 0.0
      %2070 = vmatpush1.msra.mxu0 0.0
      %2071 = vmatprep.subr.mxu0 0.0
      %2072 = vmatpush1.msra.mxu0 0.0
      %2073 = vmatprep.subr.mxu0 0.0
      %2074 = vmatpush1.msra.mxu0 0.0
      %2075 = vmatprep.subr.mxu0 0.0
      %2076 = vmatpush1.msra.mxu0 0.0
      %2077 = vmatprep.subr.mxu0 0.0
      %2078 = vmatpush1.msra.mxu0 0.0
      %2079 = vmatprep.subr.mxu0 0.0
      %2080 = vmatpush1.msra.mxu0 0.0
      %2081 = vmatprep.subr.mxu0 0.0
      %2082 = vmatpush1.msra.mxu0 0.0
      %2083 = vmatprep.subr.mxu0 0.0
      %2084 = vmatpush1.msra.mxu0 0.0
      %2085 = vmatprep.subr.mxu0 0.0
      %2086 = vmatpush1.msra.mxu0 0.0
      %2087 = vmatprep.subr.mxu0 0.0
      %2088 = vmatpush1.msra.mxu0 0.0
      %2089 = vmatprep.mubr.f32.mxu0 0.0
      %2090 = vmatmul.mubr.f32.gmra.mrb[0].mxu0 %v2023
      %v2091 = vpop.f32.mrb[0].mxu0
      %v2092 = vadd.f32 %v2020, %v2091
      %v2093 = vpop.f32.mrb[0].mxu0
      %v2094 = vadd.f32 %v2020, %v2093
      %2095 = vdwg.mxu0
      %vm2096 = vcmp.gt.f32.partialorder %v2092, 0.0
      %vm2097 = vcmp.gt.f32.partialorder %v2094, 0.0
      %v2098 = vmul.f32 %v2092, 0.2
      %v2099 = vmul.f32 %v2094, 0.2
      %v2100 = vsel %vm2096, %v2092, %v2098
      %v2101 = vsel %vm2097, %v2094, %v2099
      %2102 = vrot.lane.b32.xlu0 %v2100, 17
      %v2103 = vpop.permute.xlu0 %2102
      %2104 = vrot.lane.b32.xlu0 %v2101, 17
      %v2105 = vpop.permute.xlu0 %2104
      %v2106 = vsel %vm365, %v2103, %v2105
      %v2107 = vsel %vm365, %v2105, %v2103
      %v2108 = vmul.f32 %v2107, %v372
      %v2109 = vmul.f32 %v2106, %v376
      %2110 = vst [vmem:[#allocation2] sm:$0xf] %v2108
      %2111 = vst [vmem:[#allocation2 + $0x8] sm:$0xf] %v2109
      %2112 = vrot.lane.b32.xlu0 %v2100, 16
      %v2113 = vpop.permute.xlu0 %2112
      %2114 = vrot.lane.b32.xlu0 %v2101, 16
      %v2115 = vpop.permute.xlu0 %2114
      %v2116 = vsel %vm387, %v2113, %v2115
      %v2117 = vsel %vm387, %v2115, %v2113
      %v2118 = vmul.f32 %v2117, %v394
      %v2119 = vmul.f32 %v2116, %v398
      %v2122 = vrot.slane %v2118, 4
      %v2123 = vrot.slane %v2119, 4
      %2126 = vst [vmem:[#allocation2] sm:$0xf0] %v2122
      %2127 = vst [vmem:[#allocation2 + $0x8] sm:$0xf0] %v2123
      %2128 = vrot.lane.b32.xlu0 %v2100, 15
      %v2129 = vpop.permute.xlu0 %2128
      %2130 = vrot.lane.b32.xlu0 %v2101, 15
      %v2131 = vpop.permute.xlu0 %2130
      %v2132 = vsel %vm415, %v2129, %v2131
      %v2133 = vsel %vm415, %v2131, %v2129
      %v2134 = vmul.f32 %v2133, %v422
      %v2135 = vmul.f32 %v2132, %v426
      %2136 = vst [vmem:[#allocation2 + $0x10] sm:$0xf] %v2134
      %2137 = vst [vmem:[#allocation2 + $0x18] sm:$0xf] %v2135
      %2138 = vrot.lane.b32.xlu0 %v2100, 1
      %v2139 = vpop.permute.xlu0 %2138
      %2140 = vrot.lane.b32.xlu0 %v2101, 1
      %v2141 = vpop.permute.xlu0 %2140
      %v2142 = vsel %vm437, %v2139, %v2141
      %v2143 = vsel %vm437, %v2141, %v2139
      %v2144 = vmul.f32 %v2143, %v444
      %v2145 = vmul.f32 %v2142, %v448
      %v2148 = vrot.slane %v2144, 4
      %v2149 = vrot.slane %v2145, 4
      %2152 = vst [vmem:[#allocation2 + $0x10] sm:$0xf0] %v2148
      %2153 = vst [vmem:[#allocation2 + $0x18] sm:$0xf0] %v2149
      %2154 = vst [vmem:[#allocation2 + $0x20] sm:$0xf] %v2100
      %2155 = vst [vmem:[#allocation2 + $0x28] sm:$0xf] %v2101
      %2156 = vrot.lane.b32.xlu0 %v2100, 127
      %v2157 = vpop.permute.xlu0 %2156
      %2158 = vrot.lane.b32.xlu0 %v2101, 127
      %v2159 = vpop.permute.xlu0 %2158
      %v2160 = vsel %vm467, %v2157, %v2159
      %v2161 = vsel %vm467, %v2159, %v2157
      %v2162 = vmul.f32 %v2160, %v474
      %v2163 = vmul.f32 %v2161, %v478
      %v2166 = vrot.slane %v2162, 4
      %v2167 = vrot.slane %v2163, 4
      %2170 = vst [vmem:[#allocation2 + $0x20] sm:$0xf0] %v2166
      %2171 = vst [vmem:[#allocation2 + $0x28] sm:$0xf0] %v2167
      %2172 = vrot.lane.b32.xlu0 %v2100, 113
      %v2173 = vpop.permute.xlu0 %2172
      %2174 = vrot.lane.b32.xlu0 %v2101, 113
      %v2175 = vpop.permute.xlu0 %2174
      %v2176 = vsel %vm495, %v2173, %v2175
      %v2177 = vsel %vm495, %v2175, %v2173
      %v2178 = vmul.f32 %v2176, %v502
      %v2179 = vmul.f32 %v2177, %v506
      %2180 = vst [vmem:[#allocation2 + $0x30] sm:$0xf] %v2178
      %2181 = vst [vmem:[#allocation2 + $0x38] sm:$0xf] %v2179
      %2182 = vrot.lane.b32.xlu0 %v2100, 112
      %v2183 = vpop.permute.xlu0 %2182
      %2184 = vrot.lane.b32.xlu0 %v2101, 112
      %v2185 = vpop.permute.xlu0 %2184
      %v2186 = vsel %vm517, %v2183, %v2185
      %v2187 = vsel %vm517, %v2185, %v2183
      %v2188 = vmul.f32 %v2186, %v524
      %v2189 = vmul.f32 %v2187, %v528
      %v2192 = vrot.slane %v2188, 4
      %v2193 = vrot.slane %v2189, 4
      %2196 = vst [vmem:[#allocation2 + $0x30] sm:$0xf0] %v2192
      %2197 = vst [vmem:[#allocation2 + $0x38] sm:$0xf0] %v2193
      %2198 = vrot.lane.b32.xlu0 %v2100, 111
      %v2199 = vpop.permute.xlu0 %2198
      %2200 = vrot.lane.b32.xlu0 %v2101, 111
      %v2201 = vpop.permute.xlu0 %2200
      %v2202 = vsel %vm545, %v2199, %v2201
      %v2203 = vsel %vm545, %v2201, %v2199
      %v2204 = vmul.f32 %v2202, %v552
      %v2205 = vmul.f32 %v2203, %v556
      %2206 = vst [vmem:[#allocation2 + $0x40] sm:$0xf] %v2204
      %2207 = vst [vmem:[#allocation2 + $0x48] sm:$0xf] %v2205
      %v2210 = vrot.slane %v2100, 4
      %v2211 = vrot.slane %v2101, 4
      %2214 = vrot.lane.b32.xlu0 %v2210, 17
      %v2215 = vpop.permute.xlu0 %2214
      %2216 = vrot.lane.b32.xlu0 %v2211, 17
      %v2217 = vpop.permute.xlu0 %2216
      %v2218 = vsel %vm365, %v2215, %v2217
      %v2219 = vsel %vm365, %v2217, %v2215
      %v2220 = vmul.f32 %v2219, %v372
      %v2221 = vmul.f32 %v2218, %v376
      %v2224 = vrot.slane %v2220, 4
      %v2225 = vrot.slane %v2221, 4
      %2228 = vst [vmem:[#allocation2 + $0x40] sm:$0xf0] %v2224
      %2229 = vst [vmem:[#allocation2 + $0x48] sm:$0xf0] %v2225
      %2230 = vrot.lane.b32.xlu0 %v2210, 16
      %v2231 = vpop.permute.xlu0 %2230
      %2232 = vrot.lane.b32.xlu0 %v2211, 16
      %v2233 = vpop.permute.xlu0 %2232
      %v2234 = vsel %vm387, %v2231, %v2233
      %v2235 = vsel %vm387, %v2233, %v2231
      %v2236 = vmul.f32 %v2235, %v394
      %v2237 = vmul.f32 %v2234, %v398
      %2238 = vst [vmem:[#allocation2 + $0x50] sm:$0xf] %v2236
      %2239 = vst [vmem:[#allocation2 + $0x58] sm:$0xf] %v2237
      %2240 = vrot.lane.b32.xlu0 %v2210, 15
      %v2241 = vpop.permute.xlu0 %2240
      %2242 = vrot.lane.b32.xlu0 %v2211, 15
      %v2243 = vpop.permute.xlu0 %2242
      %v2244 = vsel %vm415, %v2241, %v2243
      %v2245 = vsel %vm415, %v2243, %v2241
      %v2246 = vmul.f32 %v2245, %v422
      %v2247 = vmul.f32 %v2244, %v426
      %v2250 = vrot.slane %v2246, 4
      %v2251 = vrot.slane %v2247, 4
      %2254 = vst [vmem:[#allocation2 + $0x50] sm:$0xf0] %v2250
      %2255 = vst [vmem:[#allocation2 + $0x58] sm:$0xf0] %v2251
      %2256 = vrot.lane.b32.xlu0 %v2210, 1
      %v2257 = vpop.permute.xlu0 %2256
      %2258 = vrot.lane.b32.xlu0 %v2211, 1
      %v2259 = vpop.permute.xlu0 %2258
      %v2260 = vsel %vm437, %v2257, %v2259
      %v2261 = vsel %vm437, %v2259, %v2257
      %v2262 = vmul.f32 %v2261, %v444
      %v2263 = vmul.f32 %v2260, %v448
      %2264 = vst [vmem:[#allocation2 + $0x60] sm:$0xf] %v2262
      %2265 = vst [vmem:[#allocation2 + $0x68] sm:$0xf] %v2263
      %2266 = vst [vmem:[#allocation2 + $0x60] sm:$0xf0] %v2100
      %2267 = vst [vmem:[#allocation2 + $0x68] sm:$0xf0] %v2101
      %2268 = vrot.lane.b32.xlu0 %v2210, 127
      %v2269 = vpop.permute.xlu0 %2268
      %2270 = vrot.lane.b32.xlu0 %v2211, 127
      %v2271 = vpop.permute.xlu0 %2270
      %v2272 = vsel %vm467, %v2269, %v2271
      %v2273 = vsel %vm467, %v2271, %v2269
      %v2274 = vmul.f32 %v2272, %v474
      %v2275 = vmul.f32 %v2273, %v478
      %2276 = vst [vmem:[#allocation2 + $0x70] sm:$0xf] %v2274
      %2277 = vst [vmem:[#allocation2 + $0x78] sm:$0xf] %v2275
      %2278 = vrot.lane.b32.xlu0 %v2210, 113
      %v2279 = vpop.permute.xlu0 %2278
      %2280 = vrot.lane.b32.xlu0 %v2211, 113
      %v2281 = vpop.permute.xlu0 %2280
      %v2282 = vsel %vm495, %v2279, %v2281
      %v2283 = vsel %vm495, %v2281, %v2279
      %v2284 = vmul.f32 %v2282, %v502
      %v2285 = vmul.f32 %v2283, %v506
      %v2288 = vrot.slane %v2284, 4
      %v2289 = vrot.slane %v2285, 4
      %2292 = vst [vmem:[#allocation2 + $0x70] sm:$0xf0] %v2288
      %2293 = vst [vmem:[#allocation2 + $0x78] sm:$0xf0] %v2289
      %2294 = vrot.lane.b32.xlu0 %v2210, 112
      %v2295 = vpop.permute.xlu0 %2294
      %2296 = vrot.lane.b32.xlu0 %v2211, 112
      %v2297 = vpop.permute.xlu0 %2296
      %v2298 = vsel %vm517, %v2295, %v2297
      %v2299 = vsel %vm517, %v2297, %v2295
      %v2300 = vmul.f32 %v2298, %v524
      %v2301 = vmul.f32 %v2299, %v528
      %2302 = vst [vmem:[#allocation2 + $0x80] sm:$0xf] %v2300
      %2303 = vst [vmem:[#allocation2 + $0x88] sm:$0xf] %v2301
      %2304 = vrot.lane.b32.xlu0 %v2210, 111
      %v2305 = vpop.permute.xlu0 %2304
      %2306 = vrot.lane.b32.xlu0 %v2211, 111
      %v2307 = vpop.permute.xlu0 %2306
      %v2308 = vsel %vm545, %v2305, %v2307
      %v2309 = vsel %vm545, %v2307, %v2305
      %v2310 = vmul.f32 %v2308, %v552
      %v2311 = vmul.f32 %v2309, %v556
      %v2314 = vrot.slane %v2310, 4
      %v2315 = vrot.slane %v2311, 4
      %2318 = vst [vmem:[#allocation2 + $0x80] sm:$0xf0] %v2314
      %2319 = vst [vmem:[#allocation2 + $0x88] sm:$0xf0] %v2315
      %s2320 = scalar_lea.vmem %s5, 16
      %v2321 = vld [vmem:[%s2320] sm:$0xff]
      %v2322 = vld [vmem:[#allocation2] sm:$0xff]
      %v2323 = vld [vmem:[#allocation2 + $0x8] sm:$0xff]
      %v2324 = vld [vmem:[#allocation2 + $0x10] sm:$0xff]
      %v2325 = vld [vmem:[#allocation2 + $0x18] sm:$0xff]
      %v2326 = vld [vmem:[#allocation2 + $0x20] sm:$0xff]
      %v2327 = vld [vmem:[#allocation2 + $0x28] sm:$0xff]
      %v2328 = vld [vmem:[#allocation2 + $0x30] sm:$0xff]
      %v2329 = vld [vmem:[#allocation2 + $0x38] sm:$0xff]
      %v2330 = vld [vmem:[#allocation2 + $0x40] sm:$0xff]
      %v2331 = vld [vmem:[#allocation2 + $0x48] sm:$0xff]
      %v2332 = vld [vmem:[#allocation2 + $0x50] sm:$0xff]
      %v2333 = vld [vmem:[#allocation2 + $0x58] sm:$0xff]
      %v2334 = vld [vmem:[#allocation2 + $0x60] sm:$0xff]
      %v2335 = vld [vmem:[#allocation2 + $0x68] sm:$0xff]
      %v2336 = vld [vmem:[#allocation2 + $0x70] sm:$0xff]
      %v2337 = vld [vmem:[#allocation2 + $0x78] sm:$0xff]
      %v2338 = vld [vmem:[#allocation2 + $0x80] sm:$0xff]
      %v2339 = vld [vmem:[#allocation2 + $0x88] sm:$0xff]
      %s2340 = scalar_lea.vmem %s6, 16
      %v2341 = vld [vmem:[%s2340] sm:$0xff]
      %2343 = vset.pattern.permute.xlu0 0
      %2344 = vperm.xlu0 %2343, %v2341
      %v2345 = vpop.permute.xlu0 %2344
      %v2348 = vsel %vm699, %v2321, 0
      %2350 = vmatprep.subr.mxu0 %v2323
      %2351 = vmatpush1.msra.mxu0 %v2322
      %2352 = vmatprep.subr.mxu0 %v2325
      %2353 = vmatpush1.msra.mxu0 %v2324
      %2354 = vmatprep.subr.mxu0 %v2327
      %2355 = vmatpush1.msra.mxu0 %v2326
      %2356 = vmatprep.subr.mxu0 %v2329
      %2357 = vmatpush1.msra.mxu0 %v2328
      %2358 = vmatprep.subr.mxu0 %v2331
      %2359 = vmatpush1.msra.mxu0 %v2330
      %2360 = vmatprep.subr.mxu0 %v2333
      %2361 = vmatpush1.msra.mxu0 %v2332
      %2362 = vmatprep.subr.mxu0 %v2335
      %2363 = vmatpush1.msra.mxu0 %v2334
      %2364 = vmatprep.subr.mxu0 %v2337
      %2365 = vmatpush1.msra.mxu0 %v2336
      %2366 = vmatprep.subr.mxu0 %v2339
      %2367 = vmatpush1.msra.mxu0 %v2338
      %2368 = vmatprep.subr.mxu0 0.0
      %2369 = vmatpush1.msra.mxu0 0.0
      %2370 = vmatprep.subr.mxu0 0.0
      %2371 = vmatpush1.msra.mxu0 0.0
      %2372 = vmatprep.subr.mxu0 0.0
      %2373 = vmatpush1.msra.mxu0 0.0
      %2374 = vmatprep.subr.mxu0 0.0
      %2375 = vmatpush1.msra.mxu0 0.0
      %2376 = vmatprep.subr.mxu0 0.0
      %2377 = vmatpush1.msra.mxu0 0.0
      %2378 = vmatprep.subr.mxu0 0.0
      %2379 = vmatpush1.msra.mxu0 0.0
      %2380 = vmatprep.subr.mxu0 0.0
      %2381 = vmatpush1.msra.mxu0 0.0
      %2382 = vmatprep.subr.mxu0 0.0
      %2383 = vmatpush1.msra.mxu0 0.0
      %2384 = vmatprep.subr.mxu0 0.0
      %2385 = vmatpush1.msra.mxu0 0.0
      %2386 = vmatprep.subr.mxu0 0.0
      %2387 = vmatpush1.msra.mxu0 0.0
      %2388 = vmatprep.subr.mxu0 0.0
      %2389 = vmatpush1.msra.mxu0 0.0
      %2390 = vmatprep.subr.mxu0 0.0
      %2391 = vmatpush1.msra.mxu0 0.0
      %2392 = vmatprep.subr.mxu0 0.0
      %2393 = vmatpush1.msra.mxu0 0.0
      %2394 = vmatprep.subr.mxu0 0.0
      %2395 = vmatpush1.msra.mxu0 0.0
      %2396 = vmatprep.subr.mxu0 0.0
      %2397 = vmatpush1.msra.mxu0 0.0
      %2398 = vmatprep.subr.mxu0 0.0
      %2399 = vmatpush1.msra.mxu0 0.0
      %2400 = vmatprep.subr.mxu0 0.0
      %2401 = vmatpush1.msra.mxu0 0.0
      %2402 = vmatprep.subr.mxu0 0.0
      %2403 = vmatpush1.msra.mxu0 0.0
      %2404 = vmatprep.subr.mxu0 0.0
      %2405 = vmatpush1.msra.mxu0 0.0
      %2406 = vmatprep.subr.mxu0 0.0
      %2407 = vmatpush1.msra.mxu0 0.0
      %2408 = vmatprep.subr.mxu0 0.0
      %2409 = vmatpush1.msra.mxu0 0.0
      %2410 = vmatprep.subr.mxu0 0.0
      %2411 = vmatpush1.msra.mxu0 0.0
      %2412 = vmatprep.subr.mxu0 0.0
      %2413 = vmatpush1.msra.mxu0 0.0
      %2414 = vmatprep.mubr.f32.mxu0 0.0
      %2415 = vmatmul.mubr.f32.gmra.mrb[0].mxu0 %v2348
      %v2416 = vpop.f32.mrb[0].mxu0
      %v2417 = vadd.f32 %v2345, %v2416
      %v2418 = vpop.f32.mrb[0].mxu0
      %v2419 = vadd.f32 %v2345, %v2418
      %2420 = vdwg.mxu0
      %v2423 = vrot.slane %v2417, 4
      %v2424 = vrot.slane %v2419, 4
      %v2427 = vmul.f32 %v2417, %v2423
      %v2428 = vmul.f32 %v2419, %v2424
      %v2431 = vcombine.low %v2427, %v2428
      %v2433 = vadd.f32 %v1771, %v2431
      %v2434 = vcombine.high %v2417, %v2419
      %v2436 = vadd.f32 %v1774, %v2434
      %v2437 = vadd.f32 %v339, %v2433
      %2438 = vst [vmem:[%s333] sm:$0xff] %v2437
      %v2439 = vadd.f32 %v340, %v2436
      %2440 = vst [vmem:[%s338] sm:$0xff] %v2439
      %p2441 = scmp.lt.s32.totalorder %s20, 1
      %s2442 = scalar_select %p2441, %s20, 1
      %s2443 = smul.addr %s2442, 2
      %s2444 = smul.addr %s2443, 4
      %s2445 = scalar_lea.vmem %s7, %s2444
      %p2446 = scmp.lt.s32.totalorder %s20, 1
      %s2447 = scalar_select %p2446, %s20, 1
      %s2448 = smul.addr %s2447, 2
      %s2449 = smul.addr %s2448, 4
      %s2450 = scalar_lea.vmem %s8, %s2449
      // Predicated region
      $region49: #{dpcg_forward.1} parent=47 // pred_check
        %p2451 = pneg %p195
      $region50: #{dpcg_forward.1} parent=47 // pred_check_branch
        %2453 = sbr.rel (%p2451) target = $region52
      $region51: #{dpcg_forward.1} parent=47 // pred_region
        _
      $region52: #{dpcg_forward.1} parent=47 // pred_fallthru
        _
      // Predicated region
      $region53: #{dpcg_forward.1} parent=47 // pred_check
        %p2454 = pneg %p221
      $region54: #{dpcg_forward.1} parent=47 // pred_check_branch
        %2456 = sbr.rel (%p2454) target = $region56
      $region55: #{dpcg_forward.1} parent=47 // pred_region
        _
      $region56: #{dpcg_forward.1} parent=47 // pred_fallthru
        _
    $region48: #{dpcg_forward.1} parent=5 // pred_fallthru
      _
    %p2457 = scmp.le.s32.totalorder 2, %s15
    // Predicated region
    $region57: #{dpcg_forward.1} parent=5 // pred_check
      %p2458 = pneg %p2457
    $region58: #{dpcg_forward.1} parent=5 // pred_check_branch
      %2460 = sbr.rel (%p2458) target = $region60
    $region59: #{dpcg_forward.1} parent=5 // pred_region
      %s2461 = ssub.s32 %s15, 2
      // Predicated region
      $region61: #{dpcg_forward.1} parent=59 // pred_check
        %p2462 = pneg %p201
      $region62: #{dpcg_forward.1} parent=59 // pred_check_branch
        %2464 = sbr.rel (%p2462) target = $region64
      $region63: #{dpcg_forward.1} parent=59 // pred_region
        %p2465 = scmp.lt.s32.totalorder %s21, 1
        %s2466 = scalar_select %p2465, %s21, 1
        %s2467 = smul.addr %s2466, 2
        %s2468 = smul.addr %s2467, 4
        %s2469 = scalar_lea.vmem %s7, %s2468
      $region64: #{dpcg_forward.1} parent=59 // pred_fallthru
        _
      // Predicated region
      $region65: #{dpcg_forward.1} parent=59 // pred_check
        %p2470 = pneg %p227
      $region66: #{dpcg_forward.1} parent=59 // pred_check_branch
        %2472 = sbr.rel (%p2470) target = $region68
      $region67: #{dpcg_forward.1} parent=59 // pred_region
        %p2473 = scmp.lt.s32.totalorder %s21, 1
        %s2474 = scalar_select %p2473, %s21, 1
        %s2475 = smul.addr %s2474, 2
        %s2476 = smul.addr %s2475, 4
        %s2477 = scalar_lea.vmem %s8, %s2476
      $region68: #{dpcg_forward.1} parent=59 // pred_fallthru
        _
    $region60: #{dpcg_forward.1} parent=5 // pred_fallthru
      _
  $region6: #{dpcg_forward.1} parent=0 // loop_footer
    %s19 = sadd.s32 1, %s15
  $region7: #{dpcg_forward.1} parent=0 // loop_footer_branch
    %14 = sbr.rel target = $region3
  $region8: #{dpcg_forward.1} parent=0 // loop_exit
    _

</llo_original>
